<compile_context>
chip_gen: v7x
topology: tpu7x:2x2x1
jax: 0.10.0
libtpu: 0.0.40
codegen_flags: <defaults>
</compile_context>

<pallas_src>
import functools

import jax
import jax.numpy as jnp
from jax import lax
from jax.experimental import pallas as pl
from jax.experimental.pallas import tpu as pltpu


def _masked_conv_kernel(x_ref, w_ref, m_ref, b_ref, out_ref, *, k):
    """One batch image per grid step.

    x_ref:   (1, Hp, Wp, C_in)        spatially pre-padded input (NHWC)
    w_ref:   (K*K, C_in, C_out_pad)   repacked conv weight, lane-padded
    m_ref:   (C_in, C_out_pad)        binarized connectivity mask (transposed, padded)
    b_ref:   (1, C_out_pad)           bias, lane-padded
    out_ref: (1, Ho, Wo, C_out_pad)   stride-1 output, lane-dense last dim
    """
    _, ho, wo, cop = out_ref.shape
    _, _, _, cin = x_ref.shape

    x = x_ref[0]                                      # (Hp, Wp, C_in)
    w = w_ref[...] * m_ref[...][None, :, :]           # fuse connectivity mask once

    # Bias folded into the accumulator init (broadcast hoisted out of the loop).
    acc = jnp.broadcast_to(b_ref[...].astype(jnp.float32), (ho * wo, cop))

    # K*K shifted-window matmuls, statically unrolled (K is small and fixed).
    for kh in range(k):
        for kw in range(k):
            win = x[kh:kh + ho, kw:kw + wo, :].reshape(ho * wo, cin)
            acc = acc + jnp.dot(win, w[kh * k + kw],
                                preferred_element_type=jnp.float32)

    out_ref[...] = acc.reshape(1, ho, wo, cop).astype(out_ref.dtype)


def masked_conv2d(x, weight, bias, connectivity, *, stride=1, padding=0):
    """x: (N, C_in, H, W); weight: (C_out, C_in, K, K); bias: (C_out,) or None;
    connectivity: (c0, c1) chunk mask, C_out % c0 == 0 and C_in % c1 == 0.
    Returns (N, C_out, H_out, W_out), matching F.conv2d with the masked weight."""
    N, C_in, H, W = x.shape
    C_out, C_in_w, K, K2 = weight.shape
    assert C_in_w == C_in and K == K2
    if bias is None:
        bias = jnp.zeros((C_out,), weight.dtype)

    # Binarize-by-threshold, then kron with an all-ones block (== block repeat)
    # to expand the chunk-level mask to (C_out, C_in).
    bin_conn = jnp.where(connectivity > 0.5, 1.0, 0.0).astype(weight.dtype)
    r0 = C_out // connectivity.shape[0]
    r1 = C_in // connectivity.shape[1]
    mask_oc_ic = jnp.repeat(jnp.repeat(bin_conn, r0, axis=0), r1, axis=1)

    # Lane-dense padding of the output-channel axis (multiple of 128).
    C_pad = ((C_out + 127) // 128) * 128

    # ---- layout plumbing (host-side glue) ----
    x_nhwc = jnp.transpose(x, (0, 2, 3, 1))
    x_sp = jnp.pad(x_nhwc, ((0, 0), (padding, padding), (padding, padding), (0, 0)))
    Hp, Wp = H + 2 * padding, W + 2 * padding
    Ho, Wo = Hp - K + 1, Wp - K + 1               # stride-1 output extent

    w_kkio = jnp.transpose(weight, (2, 3, 1, 0)).reshape(K * K, C_in, C_out)
    w_kkio = jnp.pad(w_kkio, ((0, 0), (0, 0), (0, C_pad - C_out)))
    mask_ic_oc = jnp.pad(mask_oc_ic.T, ((0, 0), (0, C_pad - C_out)))
    b_pad = jnp.pad(bias.astype(weight.dtype), (0, C_pad - C_out)).reshape(1, C_pad)

    kernel = functools.partial(_masked_conv_kernel, k=K)
    out = pl.pallas_call(
        kernel,
        out_shape=jax.ShapeDtypeStruct((N, Ho, Wo, C_pad), x.dtype),
        grid_spec=pltpu.PrefetchScalarGridSpec(
            num_scalar_prefetch=0,
            grid=(N,),
            in_specs=[
                pl.BlockSpec((1, Hp, Wp, C_in), lambda n: (n, 0, 0, 0)),
                pl.BlockSpec((K * K, C_in, C_pad), lambda n: (0, 0, 0)),
                pl.BlockSpec((C_in, C_pad), lambda n: (0, 0)),
                pl.BlockSpec((1, C_pad), lambda n: (0, 0)),
            ],
            out_specs=pl.BlockSpec((1, Ho, Wo, C_pad), lambda n: (n, 0, 0, 0)),
        ),
        compiler_params=pltpu.CompilerParams(
            dimension_semantics=("parallel",),
        ),
    )(x_sp, w_kkio, mask_ic_oc, b_pad)

    # TODO(synk): for stride > 1, add in-kernel strided windows instead of
    # subsampling the stride-1 result (correct here, but compute-redundant).
    out = out[:, ::stride, ::stride, :C_out]
    return jnp.transpose(out, (0, 3, 1, 2))       # back to NCHW


if __name__ == "__main__":
    key = jax.random.PRNGKey(0)
    k_x, k_w, k_b = jax.random.split(key, 3)

    N, C_in, H, W = 2, 4, 16, 16
    C_out, K = 8, 3
    stride, padding = 1, 1

    x = jax.random.normal(k_x, (N, C_in, H, W), dtype=jnp.float32)
    weight = jax.random.normal(k_w, (C_out, C_in, K, K), dtype=jnp.float32) * 0.1
    bias = jax.random.normal(k_b, (C_out,), dtype=jnp.float32) * 0.1
    # Chunk-level connectivity (2x2 chunks, kron-expanded to 8x4); values kept
    # away from the 0.5 threshold so binarization is unambiguous.
    connectivity = jnp.array([[0.9, 0.2],
                              [0.4, 0.7]], dtype=jnp.float32)

    conv_fn = jax.jit(masked_conv2d, static_argnames=("stride", "padding"))
    out = conv_fn(x, weight, bias, connectivity, stride=stride, padding=padding)
    jax.block_until_ready(out)

    # Pure-JAX reference: same math as the PyTorch module.
    bin_conn = jnp.where(connectivity > 0.5, 1.0, 0.0)
    mask_full = jnp.repeat(jnp.repeat(bin_conn, C_out // 2, axis=0), C_in // 2, axis=1)
    masked_w = weight * mask_full[:, :, None, None]
    ref = lax.conv_general_dilated(
        x, masked_w, window_strides=(stride, stride),
        padding=[(padding, padding), (padding, padding)],
        dimension_numbers=("NCHW", "OIHW", "NCHW"),
    ) + bias[None, :, None, None]

    assert out.shape == ref.shape == (N, C_out, H, W)
    assert jnp.allclose(out, ref, atol=1e-4, rtol=1e-4)

    print("KERNEL_OK")
</pallas_src>

<mosaic_0001>
module attributes {stable_mosaic.version = 11 : i64} {
  func.func @_masked_conv_kernel(%arg0: i32, %arg1: memref<1x18x18x4xf32, #tpu.memory_space<vmem>>, %arg2: memref<9x4x128xf32, #tpu.memory_space<vmem>>, %arg3: memref<4x128xf32, #tpu.memory_space<vmem>>, %arg4: memref<1x128xf32, #tpu.memory_space<vmem>>, %arg5: memref<1x16x16x128xf32, #tpu.memory_space<vmem>>) attributes {dimension_semantics = [#tpu.dimension_semantics<parallel>], iteration_bounds = array<i64: 2>, scalar_prefetch = 0 : i64, scratch_operands = 0 : i64, tpu.core_type = #tpu.core_type<tc>, window_params = [{transform_indices = @transform_0, window_bounds = array<i64: 1, 18, 18, 4>}, {pipeline_mode = #tpu.pipeline_mode<synchronous>, transform_indices = @transform_1, window_bounds = array<i64: 9, 4, 128>}, {pipeline_mode = #tpu.pipeline_mode<synchronous>, transform_indices = @transform_2, window_bounds = array<i64: 4, 128>}, {pipeline_mode = #tpu.pipeline_mode<synchronous>, transform_indices = @transform_3, window_bounds = array<i64: 1, 128>}, {transform_indices = @transform_4, window_bounds = array<i64: 1, 16, 16, 128>}]} {
    %c0 = arith.constant 0 : index
    %c0_0 = arith.constant 0 : index
    %c0_1 = arith.constant 0 : index
    %c0_2 = arith.constant 0 : index
    %0 = vector.load %arg1[%c0, %c0_0, %c0_1, %c0_2] : memref<1x18x18x4xf32, #tpu.memory_space<vmem>>, vector<1x18x18x4xf32>
    %1 = vector.shape_cast %0 : vector<1x18x18x4xf32> to vector<18x18x4xf32>
    %c0_3 = arith.constant 0 : index
    %c0_4 = arith.constant 0 : index
    %c0_5 = arith.constant 0 : index
    %2 = vector.load %arg2[%c0_3, %c0_4, %c0_5] : memref<9x4x128xf32, #tpu.memory_space<vmem>>, vector<9x4x128xf32>
    %c0_6 = arith.constant 0 : index
    %c0_7 = arith.constant 0 : index
    %3 = vector.load %arg3[%c0_6, %c0_7] : memref<4x128xf32, #tpu.memory_space<vmem>>, vector<4x128xf32>
    %4 = vector.shape_cast %3 : vector<4x128xf32> to vector<1x4x128xf32>
    %5 = vector.broadcast %4 : vector<1x4x128xf32> to vector<9x4x128xf32>
    %6 = arith.mulf %2, %5 : vector<9x4x128xf32>
    %c0_8 = arith.constant 0 : index
    %c0_9 = arith.constant 0 : index
    %7 = vector.load %arg4[%c0_8, %c0_9] : memref<1x128xf32, #tpu.memory_space<vmem>>, vector<1x128xf32>
    %8 = vector.shape_cast %7 : vector<1x128xf32> to vector<1x128xf32>
    %9 = vector.broadcast %8 : vector<1x128xf32> to vector<256x128xf32>
    %10 = vector.extract_strided_slice %1 {offsets = [0, 0, 0], sizes = [16, 16, 4], strides = [1, 1, 1]} : vector<18x18x4xf32> to vector<16x16x4xf32>
    %11 = vector.shape_cast %10 : vector<16x16x4xf32> to vector<256x4xf32>
    %12 = vector.extract_strided_slice %6 {offsets = [0, 0, 0], sizes = [1, 4, 128], strides = [1, 1, 1]} : vector<9x4x128xf32> to vector<1x4x128xf32>
    %13 = vector.shape_cast %12 : vector<1x4x128xf32> to vector<4x128xf32>
    %cst = arith.constant dense<0.000000e+00> : vector<256x128xf32>
    %14 = tpu.matmul %11, %13, %cst {dimension_numbers = #tpu.dot_dimension_numbers<[1], [0], [0], [1], [0, 0, 1, 1], [], []>} : vector<256x4xf32>, vector<4x128xf32>, vector<256x128xf32> -> vector<256x128xf32>
    %15 = arith.addf %9, %14 : vector<256x128xf32>
    %16 = vector.extract_strided_slice %1 {offsets = [0, 1, 0], sizes = [16, 16, 4], strides = [1, 1, 1]} : vector<18x18x4xf32> to vector<16x16x4xf32>
    %17 = vector.shape_cast %16 : vector<16x16x4xf32> to vector<256x4xf32>
    %18 = vector.extract_strided_slice %6 {offsets = [1, 0, 0], sizes = [1, 4, 128], strides = [1, 1, 1]} : vector<9x4x128xf32> to vector<1x4x128xf32>
    %19 = vector.shape_cast %18 : vector<1x4x128xf32> to vector<4x128xf32>
    %cst_10 = arith.constant dense<0.000000e+00> : vector<256x128xf32>
    %20 = tpu.matmul %17, %19, %cst_10 {dimension_numbers = #tpu.dot_dimension_numbers<[1], [0], [0], [1], [0, 0, 1, 1], [], []>} : vector<256x4xf32>, vector<4x128xf32>, vector<256x128xf32> -> vector<256x128xf32>
    %21 = arith.addf %15, %20 : vector<256x128xf32>
    %22 = vector.extract_strided_slice %1 {offsets = [0, 2, 0], sizes = [16, 16, 4], strides = [1, 1, 1]} : vector<18x18x4xf32> to vector<16x16x4xf32>
    %23 = vector.shape_cast %22 : vector<16x16x4xf32> to vector<256x4xf32>
    %24 = vector.extract_strided_slice %6 {offsets = [2, 0, 0], sizes = [1, 4, 128], strides = [1, 1, 1]} : vector<9x4x128xf32> to vector<1x4x128xf32>
    %25 = vector.shape_cast %24 : vector<1x4x128xf32> to vector<4x128xf32>
    %cst_11 = arith.constant dense<0.000000e+00> : vector<256x128xf32>
    %26 = tpu.matmul %23, %25, %cst_11 {dimension_numbers = #tpu.dot_dimension_numbers<[1], [0], [0], [1], [0, 0, 1, 1], [], []>} : vector<256x4xf32>, vector<4x128xf32>, vector<256x128xf32> -> vector<256x128xf32>
    %27 = arith.addf %21, %26 : vector<256x128xf32>
    %28 = vector.extract_strided_slice %1 {offsets = [1, 0, 0], sizes = [16, 16, 4], strides = [1, 1, 1]} : vector<18x18x4xf32> to vector<16x16x4xf32>
    %29 = vector.shape_cast %28 : vector<16x16x4xf32> to vector<256x4xf32>
    %30 = vector.extract_strided_slice %6 {offsets = [3, 0, 0], sizes = [1, 4, 128], strides = [1, 1, 1]} : vector<9x4x128xf32> to vector<1x4x128xf32>
    %31 = vector.shape_cast %30 : vector<1x4x128xf32> to vector<4x128xf32>
    %cst_12 = arith.constant dense<0.000000e+00> : vector<256x128xf32>
    %32 = tpu.matmul %29, %31, %cst_12 {dimension_numbers = #tpu.dot_dimension_numbers<[1], [0], [0], [1], [0, 0, 1, 1], [], []>} : vector<256x4xf32>, vector<4x128xf32>, vector<256x128xf32> -> vector<256x128xf32>
    %33 = arith.addf %27, %32 : vector<256x128xf32>
    %34 = vector.extract_strided_slice %1 {offsets = [1, 1, 0], sizes = [16, 16, 4], strides = [1, 1, 1]} : vector<18x18x4xf32> to vector<16x16x4xf32>
    %35 = vector.shape_cast %34 : vector<16x16x4xf32> to vector<256x4xf32>
    %36 = vector.extract_strided_slice %6 {offsets = [4, 0, 0], sizes = [1, 4, 128], strides = [1, 1, 1]} : vector<9x4x128xf32> to vector<1x4x128xf32>
    %37 = vector.shape_cast %36 : vector<1x4x128xf32> to vector<4x128xf32>
    %cst_13 = arith.constant dense<0.000000e+00> : vector<256x128xf32>
    %38 = tpu.matmul %35, %37, %cst_13 {dimension_numbers = #tpu.dot_dimension_numbers<[1], [0], [0], [1], [0, 0, 1, 1], [], []>} : vector<256x4xf32>, vector<4x128xf32>, vector<256x128xf32> -> vector<256x128xf32>
    %39 = arith.addf %33, %38 : vector<256x128xf32>
    %40 = vector.extract_strided_slice %1 {offsets = [1, 2, 0], sizes = [16, 16, 4], strides = [1, 1, 1]} : vector<18x18x4xf32> to vector<16x16x4xf32>
    %41 = vector.shape_cast %40 : vector<16x16x4xf32> to vector<256x4xf32>
    %42 = vector.extract_strided_slice %6 {offsets = [5, 0, 0], sizes = [1, 4, 128], strides = [1, 1, 1]} : vector<9x4x128xf32> to vector<1x4x128xf32>
    %43 = vector.shape_cast %42 : vector<1x4x128xf32> to vector<4x128xf32>
    %cst_14 = arith.constant dense<0.000000e+00> : vector<256x128xf32>
    %44 = tpu.matmul %41, %43, %cst_14 {dimension_numbers = #tpu.dot_dimension_numbers<[1], [0], [0], [1], [0, 0, 1, 1], [], []>} : vector<256x4xf32>, vector<4x128xf32>, vector<256x128xf32> -> vector<256x128xf32>
    %45 = arith.addf %39, %44 : vector<256x128xf32>
    %46 = vector.extract_strided_slice %1 {offsets = [2, 0, 0], sizes = [16, 16, 4], strides = [1, 1, 1]} : vector<18x18x4xf32> to vector<16x16x4xf32>
    %47 = vector.shape_cast %46 : vector<16x16x4xf32> to vector<256x4xf32>
    %48 = vector.extract_strided_slice %6 {offsets = [6, 0, 0], sizes = [1, 4, 128], strides = [1, 1, 1]} : vector<9x4x128xf32> to vector<1x4x128xf32>
    %49 = vector.shape_cast %48 : vector<1x4x128xf32> to vector<4x128xf32>
    %cst_15 = arith.constant dense<0.000000e+00> : vector<256x128xf32>
    %50 = tpu.matmul %47, %49, %cst_15 {dimension_numbers = #tpu.dot_dimension_numbers<[1], [0], [0], [1], [0, 0, 1, 1], [], []>} : vector<256x4xf32>, vector<4x128xf32>, vector<256x128xf32> -> vector<256x128xf32>
    %51 = arith.addf %45, %50 : vector<256x128xf32>
    %52 = vector.extract_strided_slice %1 {offsets = [2, 1, 0], sizes = [16, 16, 4], strides = [1, 1, 1]} : vector<18x18x4xf32> to vector<16x16x4xf32>
    %53 = vector.shape_cast %52 : vector<16x16x4xf32> to vector<256x4xf32>
    %54 = vector.extract_strided_slice %6 {offsets = [7, 0, 0], sizes = [1, 4, 128], strides = [1, 1, 1]} : vector<9x4x128xf32> to vector<1x4x128xf32>
    %55 = vector.shape_cast %54 : vector<1x4x128xf32> to vector<4x128xf32>
    %cst_16 = arith.constant dense<0.000000e+00> : vector<256x128xf32>
    %56 = tpu.matmul %53, %55, %cst_16 {dimension_numbers = #tpu.dot_dimension_numbers<[1], [0], [0], [1], [0, 0, 1, 1], [], []>} : vector<256x4xf32>, vector<4x128xf32>, vector<256x128xf32> -> vector<256x128xf32>
    %57 = arith.addf %51, %56 : vector<256x128xf32>
    %58 = vector.extract_strided_slice %1 {offsets = [2, 2, 0], sizes = [16, 16, 4], strides = [1, 1, 1]} : vector<18x18x4xf32> to vector<16x16x4xf32>
    %59 = vector.shape_cast %58 : vector<16x16x4xf32> to vector<256x4xf32>
    %60 = vector.extract_strided_slice %6 {offsets = [8, 0, 0], sizes = [1, 4, 128], strides = [1, 1, 1]} : vector<9x4x128xf32> to vector<1x4x128xf32>
    %61 = vector.shape_cast %60 : vector<1x4x128xf32> to vector<4x128xf32>
    %cst_17 = arith.constant dense<0.000000e+00> : vector<256x128xf32>
    %62 = tpu.matmul %59, %61, %cst_17 {dimension_numbers = #tpu.dot_dimension_numbers<[1], [0], [0], [1], [0, 0, 1, 1], [], []>} : vector<256x4xf32>, vector<4x128xf32>, vector<256x128xf32> -> vector<256x128xf32>
    %63 = arith.addf %57, %62 : vector<256x128xf32>
    %64 = vector.shape_cast %63 : vector<256x128xf32> to vector<1x16x16x128xf32>
    %c0_18 = arith.constant 0 : index
    %c0_19 = arith.constant 0 : index
    %c0_20 = arith.constant 0 : index
    %c0_21 = arith.constant 0 : index
    %65 = vector.load %arg5[%c0_18, %c0_19, %c0_20, %c0_21] : memref<1x16x16x128xf32, #tpu.memory_space<vmem>>, vector<1x16x16x128xf32>
    tpu.vector_store %arg5[%c0_18, %c0_19, %c0_20, %c0_21], %64 {strides = array<i32>} : memref<1x16x16x128xf32, #tpu.memory_space<vmem>>, vector<1x16x16x128xf32>,
    return
  }
  func.func @transform_0(%arg0: i32) -> (i32, i32, i32, i32) {
    %c0_i32 = arith.constant 0 : i32
    %c0_i32_0 = arith.constant 0 : i32
    %c0_i32_1 = arith.constant 0 : i32
    %c0_i32_2 = arith.constant 0 : i32
    return %arg0, %c0_i32, %c0_i32_0, %c0_i32_1 : i32, i32, i32, i32
  }
  func.func @transform_1(%arg0: i32) -> (i32, i32, i32) {
    %c0_i32 = arith.constant 0 : i32
    %c0_i32_0 = arith.constant 0 : i32
    %c0_i32_1 = arith.constant 0 : i32
    %c0_i32_2 = arith.constant 0 : i32
    return %c0_i32, %c0_i32_0, %c0_i32_1 : i32, i32, i32
  }
  func.func @transform_2(%arg0: i32) -> (i32, i32) {
    %c0_i32 = arith.constant 0 : i32
    %c0_i32_0 = arith.constant 0 : i32
    %c0_i32_1 = arith.constant 0 : i32
    return %c0_i32, %c0_i32_0 : i32, i32
  }
  func.func @transform_3(%arg0: i32) -> (i32, i32) {
    %c0_i32 = arith.constant 0 : i32
    %c0_i32_0 = arith.constant 0 : i32
    %c0_i32_1 = arith.constant 0 : i32
    return %c0_i32, %c0_i32_0 : i32, i32
  }
  func.func @transform_4(%arg0: i32) -> (i32, i32, i32, i32) {
    %c0_i32 = arith.constant 0 : i32
    %c0_i32_0 = arith.constant 0 : i32
    %c0_i32_1 = arith.constant 0 : i32
    %c0_i32_2 = arith.constant 0 : i32
    return %arg0, %c0_i32, %c0_i32_0, %c0_i32_1 : i32, i32, i32, i32
  }
}

</mosaic_0001>

<llo_original>
// kernel: masked_conv2d.1
$region0: #{masked_conv2d.1}
  #allocation0 [shape = 'u32[]', space=smem, size = 0x4, offset = 0x4, fixed_abs, tag = 'smem constant byte address 0x4 - core index']
  #allocation1 [shape = 'u32[144,128]{1,0:T(1,128)}', space=vmem, size = 0x12000, scoped, tag = 'internal scratch']
  %s0 = inlined_call_operand.vmem [shape: f32[2,18,18,4], index: 0, kind: input, shape index: {}]
  %s1 = inlined_call_operand.vmem [shape: f32[9,4,128], index: 1, kind: input, shape index: {}]
  %s2 = inlined_call_operand.vmem [shape: f32[4,128], index: 2, kind: input, shape index: {}]
  %s3 = inlined_call_operand.vmem [shape: f32[1,128], index: 3, kind: input, shape index: {}]
  %s4 = inlined_call_operand.vmem [shape: f32[2,16,16,128], index: 4, kind: output, shape index: {}]
  %s5 = sld [smem:[#allocation0]]
  $region49: #{masked_conv2d.1} parent=0
    _
  %s7 = ssub.s32 1, %s5
  %s8 = scalar_select 0, %s7, %s5
  loop: start=0, step=1, limit=4
  $region2: #{masked_conv2d.1} parent=0 // loop_pre_header
    _
  $region3: #{masked_conv2d.1} parent=0 // loop_header
    %s10 = sphi 0, %s14
    %p11 = scmp.ge.s32.totalorder %s10, 4
    %s20 = sphi 0, %s22
    %s23 = sphi 0, %s20
    %s24 = sphi 0, %s23
    %s40 = sphi 0, %s24
    %s44 = sphi 0, %s44
    %s46 = sphi 0, %s44
    %s47 = sphi 0, %s46
    %s61 = sphi 0, %s47
    %s65 = sphi 0, %s65
    %s67 = sphi 0, %s65
    %s68 = sphi 0, %s67
    %s82 = sphi 0, %s68
    %s86 = sphi 0, %s86
    %s88 = sphi 0, %s86
    %s89 = sphi 0, %s88
    %s103 = sphi 0, %s89
    %s109 = sphi 0, %s111
    %s112 = sphi 0, %s109
    %s113 = sphi 0, %s112
    %s129 = sphi 0, %s113
  $region4: #{masked_conv2d.1} parent=0 // loop_header_branch
    %13 = sbr.rel (%p11) target = $region8
  $region5: #{masked_conv2d.1} parent=0 // loop_body
    %s15 = ssub.s32 %s10, 1
    %s16 = ssub.s32 %s10, 2
    %s17 = sadd.s32 %s10, 1
    %s18 = ssub.s32 %s10, %s17
    %p19 = scmp.eq.s32.totalorder %s18, 0
    %s21 = sadd.s32 %s20, 1
    %s22 = scalar_select %p19, %s20, %s21
    %p25 = pneg %p19
    %p26 = scmp.eq.s32.totalorder %s10, 1
    %p27 = por %p25, %p26
    %p28 = scmp.ne.s32.totalorder %s20, %s23
    %p29 = scmp.eq.s32.totalorder %s10, 0
    %p30 = por %p28, %p29
    %p31 = scmp.ne.s32.totalorder %s20, %s23
    %p32 = scmp.eq.s32.totalorder %s15, 1
    %p33 = por %p31, %p32
    %p34 = scmp.ne.s32.totalorder %s23, %s24
    %p35 = scmp.eq.s32.totalorder %s15, 0
    %p36 = por %p34, %p35
    %p37 = scmp.ne.s32.totalorder %s23, %s24
    %p38 = scmp.eq.s32.totalorder %s16, 1
    %p39 = por %p37, %p38
    %p41 = scmp.ne.s32.totalorder %s24, %s40
    %p42 = scmp.eq.s32.totalorder %s16, 0
    %p43 = por %p41, %p42
    %s45 = sadd.s32 %s44, 1
    %p48 = scmp.eq.s32.totalorder %s10, 1
    %p49 = scmp.ne.s32.totalorder %s44, %s46
    %p50 = scmp.eq.s32.totalorder %s10, 0
    %p51 = por %p49, %p50
    %p52 = scmp.ne.s32.totalorder %s44, %s46
    %p53 = scmp.eq.s32.totalorder %s15, 1
    %p54 = por %p52, %p53
    %p55 = scmp.ne.s32.totalorder %s46, %s47
    %p56 = scmp.eq.s32.totalorder %s15, 0
    %p57 = por %p55, %p56
    %p58 = scmp.ne.s32.totalorder %s46, %s47
    %p59 = scmp.eq.s32.totalorder %s16, 1
    %p60 = por %p58, %p59
    %p62 = scmp.ne.s32.totalorder %s47, %s61
    %p63 = scmp.eq.s32.totalorder %s16, 0
    %p64 = por %p62, %p63
    %s66 = sadd.s32 %s65, 1
    %p69 = scmp.eq.s32.totalorder %s10, 1
    %p70 = scmp.ne.s32.totalorder %s65, %s67
    %p71 = scmp.eq.s32.totalorder %s10, 0
    %p72 = por %p70, %p71
    %p73 = scmp.ne.s32.totalorder %s65, %s67
    %p74 = scmp.eq.s32.totalorder %s15, 1
    %p75 = por %p73, %p74
    %p76 = scmp.ne.s32.totalorder %s67, %s68
    %p77 = scmp.eq.s32.totalorder %s15, 0
    %p78 = por %p76, %p77
    %p79 = scmp.ne.s32.totalorder %s67, %s68
    %p80 = scmp.eq.s32.totalorder %s16, 1
    %p81 = por %p79, %p80
    %p83 = scmp.ne.s32.totalorder %s68, %s82
    %p84 = scmp.eq.s32.totalorder %s16, 0
    %p85 = por %p83, %p84
    %s87 = sadd.s32 %s86, 1
    %p90 = scmp.eq.s32.totalorder %s10, 1
    %p91 = scmp.ne.s32.totalorder %s86, %s88
    %p92 = scmp.eq.s32.totalorder %s10, 0
    %p93 = por %p91, %p92
    %p94 = scmp.ne.s32.totalorder %s86, %s88
    %p95 = scmp.eq.s32.totalorder %s15, 1
    %p96 = por %p94, %p95
    %p97 = scmp.ne.s32.totalorder %s88, %s89
    %p98 = scmp.eq.s32.totalorder %s15, 0
    %p99 = por %p97, %p98
    %p100 = scmp.ne.s32.totalorder %s88, %s89
    %p101 = scmp.eq.s32.totalorder %s16, 1
    %p102 = por %p100, %p101
    %p104 = scmp.ne.s32.totalorder %s89, %s103
    %p105 = scmp.eq.s32.totalorder %s16, 0
    %p106 = por %p104, %p105
    %s107 = ssub.s32 %s10, %s17
    %p108 = scmp.eq.s32.totalorder %s107, 0
    %s110 = sadd.s32 %s109, 1
    %s111 = scalar_select %p108, %s109, %s110
    %p114 = pneg %p108
    %p115 = scmp.eq.s32.totalorder %s10, 1
    %p116 = por %p114, %p115
    %p117 = scmp.ne.s32.totalorder %s109, %s112
    %p118 = scmp.eq.s32.totalorder %s10, 0
    %p119 = por %p117, %p118
    %p120 = scmp.ne.s32.totalorder %s109, %s112
    %p121 = scmp.eq.s32.totalorder %s15, 1
    %p122 = por %p120, %p121
    %p123 = scmp.ne.s32.totalorder %s112, %s113
    %p124 = scmp.eq.s32.totalorder %s15, 0
    %p125 = por %p123, %p124
    %p126 = scmp.ne.s32.totalorder %s112, %s113
    %p127 = scmp.eq.s32.totalorder %s16, 1
    %p128 = por %p126, %p127
    %p130 = scmp.ne.s32.totalorder %s113, %s129
    %p131 = scmp.eq.s32.totalorder %s16, 0
    %p132 = por %p130, %p131
    %p133 = scmp.le.s32.totalorder 1, %s10
    %p134 = scmp.lt.s32.totalorder %s10, 3
    %p135 = pnand %p133, %p134
    %p136 = pneg %p135
    // Predicated region
    $region9: #{masked_conv2d.1} parent=5 // pred_check
      _
    $region10: #{masked_conv2d.1} parent=5 // pred_check_branch
      %138 = sbr.rel (%p135) target = $region12
    $region11: #{masked_conv2d.1} parent=5 // pred_region
      %s139 = ssub.s32 %s10, 1
      // Predicated region
      $region13: #{masked_conv2d.1} parent=11 // pred_check
        %p140 = pneg %p57
      $region14: #{masked_conv2d.1} parent=11 // pred_check_branch
        %142 = sbr.rel (%p140) target = $region16
      $region15: #{masked_conv2d.1} parent=11 // pred_region
        _
      $region16: #{masked_conv2d.1} parent=11 // pred_fallthru
        _
      // Predicated region
      $region17: #{masked_conv2d.1} parent=11 // pred_check
        %p143 = pneg %p78
      $region18: #{masked_conv2d.1} parent=11 // pred_check_branch
        %145 = sbr.rel (%p143) target = $region20
      $region19: #{masked_conv2d.1} parent=11 // pred_region
        _
      $region20: #{masked_conv2d.1} parent=11 // pred_fallthru
        _
      // Predicated region
      $region21: #{masked_conv2d.1} parent=11 // pred_check
        %p146 = pneg %p99
      $region22: #{masked_conv2d.1} parent=11 // pred_check_branch
        %148 = sbr.rel (%p146) target = $region24
      $region23: #{masked_conv2d.1} parent=11 // pred_region
        _
      $region24: #{masked_conv2d.1} parent=11 // pred_fallthru
        _
    $region12: #{masked_conv2d.1} parent=5 // pred_fallthru
      _
    %p149 = scmp.lt.s32.totalorder %s10, 2
    // Predicated region
    $region25: #{masked_conv2d.1} parent=5 // pred_check
      %p150 = pneg %p149
    $region26: #{masked_conv2d.1} parent=5 // pred_check_branch
      %152 = sbr.rel (%p150) target = $region28
    $region27: #{masked_conv2d.1} parent=5 // pred_region
      // Predicated region
      $region29: #{masked_conv2d.1} parent=27 // pred_check
        %p153 = pneg %p30
      $region30: #{masked_conv2d.1} parent=27 // pred_check_branch
        %155 = sbr.rel (%p153) target = $region32
      $region31: #{masked_conv2d.1} parent=27 // pred_region
        %p156 = scmp.lt.s32.totalorder %s10, 1
        %s157 = scalar_select %p156, %s10, 1
        %s158 = smul.addr %s157, 54
        %s159 = smul.addr %s158, 8
        %s160 = scalar_lea.vmem %s0, %s159
      $region32: #{masked_conv2d.1} parent=27 // pred_fallthru
        _
    $region28: #{masked_conv2d.1} parent=5 // pred_fallthru
      _
    %p161 = scmp.le.s32.totalorder 1, %s10
    %p162 = scmp.lt.s32.totalorder %s10, 3
    %p163 = pnand %p161, %p162
    %p164 = pneg %p163
    // Predicated region
    $region33: #{masked_conv2d.1} parent=5 // pred_check
      _
    $region34: #{masked_conv2d.1} parent=5 // pred_check_branch
      %166 = sbr.rel (%p163) target = $region36
    $region35: #{masked_conv2d.1} parent=5 // pred_region
      %s167 = ssub.s32 %s10, 1
      %p168 = scmp.lt.s32.totalorder %s15, 1
      %s169 = scalar_select %p168, %s15, 1
      %s170 = smul.addr %s169, 54
      %s171 = smul.addr %s170, 8
      %s172 = scalar_lea.vmem %s0, %s171
      %p173 = pneg %p36
      %p174 = pneg %p33
      %p175 = pneg %p57
      %p176 = pneg %p54
      %p177 = pneg %p78
      %p178 = pneg %p75
      %p179 = pneg %p99
      %p180 = pneg %p96
      %p181 = pneg %p125
      %p182 = pneg %p122
      %p183 = scmp.lt.s32.totalorder %s15, 1
      %s184 = scalar_select %p183, %s15, 1
      %s185 = smul.addr %s184, 32
      %s186 = smul.addr %s185, 8
      %s187 = scalar_lea.vmem %s4, %s186
      %p188 = scmp.lt.s32.totalorder %s15, 1
      %s189 = scalar_select %p188, %s15, 1
      %s190 = smul.addr %s189, 54
      %s191 = smul.addr %s190, 8
      %s192 = scalar_lea.vmem %s0, %s191
      %p193 = scmp.lt.s32.totalorder %s15, 1
      %s194 = scalar_select %p193, %s15, 1
      %s195 = smul.addr %s194, 32
      %s196 = smul.addr %s195, 8
      %s197 = scalar_lea.vmem %s4, %s196
      %v198 = vld [vmem:[%s192] sm:$0xff]
      %v199 = vld [vmem:[%s192 + $0x8] sm:$0xff]
      %v200 = vld [vmem:[%s192 + $0x10] sm:$0x3]
      %v201 = vld [vmem:[%s192 + $0x18] sm:$0xff]
      %v202 = vld [vmem:[%s192 + $0x20] sm:$0xff]
      %v203 = vld [vmem:[%s192 + $0x28] sm:$0x3]
      %v204 = vld [vmem:[%s192 + $0x30] sm:$0xff]
      %v205 = vld [vmem:[%s192 + $0x38] sm:$0xff]
      %v206 = vld [vmem:[%s192 + $0x40] sm:$0x3]
      %v207 = vld [vmem:[%s192 + $0x48] sm:$0xff]
      %v208 = vld [vmem:[%s192 + $0x50] sm:$0xff]
      %v209 = vld [vmem:[%s192 + $0x58] sm:$0x3]
      %v210 = vld [vmem:[%s192 + $0x60] sm:$0xff]
      %v211 = vld [vmem:[%s192 + $0x68] sm:$0xff]
      %v212 = vld [vmem:[%s192 + $0x70] sm:$0x3]
      %v213 = vld [vmem:[%s192 + $0x78] sm:$0xff]
      %v214 = vld [vmem:[%s192 + $0x80] sm:$0xff]
      %v215 = vld [vmem:[%s192 + $0x88] sm:$0x3]
      %v216 = vld [vmem:[%s192 + $0x90] sm:$0xff]
      %v217 = vld [vmem:[%s192 + $0x98] sm:$0xff]
      %v218 = vld [vmem:[%s192 + $0xa0] sm:$0x3]
      %v219 = vld [vmem:[%s192 + $0xa8] sm:$0xff]
      %v220 = vld [vmem:[%s192 + $0xb0] sm:$0xff]
      %v221 = vld [vmem:[%s192 + $0xb8] sm:$0x3]
      %v222 = vld [vmem:[%s192 + $0xc0] sm:$0xff]
      %v223 = vld [vmem:[%s192 + $0xc8] sm:$0xff]
      %v224 = vld [vmem:[%s192 + $0xd0] sm:$0x3]
      %v225 = vld [vmem:[%s192 + $0xd8] sm:$0xff]
      %v226 = vld [vmem:[%s192 + $0xe0] sm:$0xff]
      %v227 = vld [vmem:[%s192 + $0xe8] sm:$0x3]
      %v228 = vld [vmem:[%s192 + $0xf0] sm:$0xff]
      %v229 = vld [vmem:[%s192 + $0xf8] sm:$0xff]
      %v230 = vld [vmem:[%s192 + $0x100] sm:$0x3]
      %v231 = vld [vmem:[%s192 + $0x108] sm:$0xff]
      %v232 = vld [vmem:[%s192 + $0x110] sm:$0xff]
      %v233 = vld [vmem:[%s192 + $0x118] sm:$0x3]
      %v234 = vld [vmem:[%s192 + $0x120] sm:$0xff]
      %v235 = vld [vmem:[%s192 + $0x128] sm:$0xff]
      %v236 = vld [vmem:[%s192 + $0x130] sm:$0x3]
      %v237 = vld [vmem:[%s192 + $0x138] sm:$0xff]
      %v238 = vld [vmem:[%s192 + $0x140] sm:$0xff]
      %v239 = vld [vmem:[%s192 + $0x148] sm:$0x3]
      %v240 = vld [vmem:[%s192 + $0x150] sm:$0xff]
      %v241 = vld [vmem:[%s192 + $0x158] sm:$0xff]
      %v242 = vld [vmem:[%s192 + $0x160] sm:$0x3]
      %v243 = vld [vmem:[%s192 + $0x168] sm:$0xff]
      %v244 = vld [vmem:[%s192 + $0x170] sm:$0xff]
      %v245 = vld [vmem:[%s192 + $0x178] sm:$0x3]
      %v246 = vld [vmem:[%s192 + $0x180] sm:$0xff]
      %v247 = vld [vmem:[%s192 + $0x188] sm:$0xff]
      %v248 = vld [vmem:[%s192 + $0x190] sm:$0x3]
      %v249 = vld [vmem:[%s192 + $0x198] sm:$0xff]
      %v250 = vld [vmem:[%s192 + $0x1a0] sm:$0xff]
      %v251 = vld [vmem:[%s192 + $0x1a8] sm:$0x3]
      %v252 = vld [vmem:[%s1] sm:$0xf]
      %v253 = vld [vmem:[%s1 + $0x4] sm:$0xf]
      %v254 = vld [vmem:[%s1 + $0x8] sm:$0xf]
      %v255 = vld [vmem:[%s1 + $0xc] sm:$0xf]
      %v256 = vld [vmem:[%s1 + $0x10] sm:$0xf]
      %v257 = vld [vmem:[%s1 + $0x14] sm:$0xf]
      %v258 = vld [vmem:[%s1 + $0x18] sm:$0xf]
      %v259 = vld [vmem:[%s1 + $0x1c] sm:$0xf]
      %v260 = vld [vmem:[%s1 + $0x20] sm:$0xf]
      %v261 = vld [vmem:[%s2] sm:$0xf]
      %v262 = vmul.f32 %v252, %v261
      %v263 = vmul.f32 %v253, %v261
      %v264 = vmul.f32 %v254, %v261
      %v265 = vmul.f32 %v255, %v261
      %v266 = vmul.f32 %v256, %v261
      %v267 = vmul.f32 %v257, %v261
      %v268 = vmul.f32 %v258, %v261
      %v269 = vmul.f32 %v259, %v261
      %v270 = vmul.f32 %v260, %v261
      %v271 = vld [vmem:[%s3] sm:$0x1]
      %v273 = vlaneseq
      %v274 = vshrl.u32 %v273, 7
      %v275 = vsub.s32 0, %v274
      %v276 = vrot.slane %v271, %v275
      %vm278 = vcmask 31744
      %v280 = vsel %vm278, %v198, 0
      %v283 = vsel %vm278, %v199, 0
      %v286 = vsel %vm278, %v201, 0
      %v289 = vsel %vm278, %v202, 0
      %v292 = vsel %vm278, %v204, 0
      %v295 = vsel %vm278, %v205, 0
      %v298 = vsel %vm278, %v207, 0
      %v301 = vsel %vm278, %v208, 0
      %v304 = vsel %vm278, %v210, 0
      %v307 = vsel %vm278, %v211, 0
      %v310 = vsel %vm278, %v213, 0
      %v313 = vsel %vm278, %v214, 0
      %v316 = vsel %vm278, %v216, 0
      %v319 = vsel %vm278, %v217, 0
      %v322 = vsel %vm278, %v219, 0
      %v325 = vsel %vm278, %v220, 0
      %v328 = vsel %vm278, %v222, 0
      %v331 = vsel %vm278, %v223, 0
      %v334 = vsel %vm278, %v225, 0
      %v337 = vsel %vm278, %v226, 0
      %v340 = vsel %vm278, %v228, 0
      %v343 = vsel %vm278, %v229, 0
      %v346 = vsel %vm278, %v231, 0
      %v349 = vsel %vm278, %v232, 0
      %v352 = vsel %vm278, %v234, 0
      %v355 = vsel %vm278, %v235, 0
      %v358 = vsel %vm278, %v237, 0
      %v361 = vsel %vm278, %v238, 0
      %v364 = vsel %vm278, %v240, 0
      %v367 = vsel %vm278, %v241, 0
      %v370 = vsel %vm278, %v243, 0
      %v373 = vsel %vm278, %v244, 0
      %vm375 = vcmask 1043456
      %v377 = vsel %vm375, %v262, 0
      %379 = vmatprep.subr.mxu0 0.0
      %380 = vmatpush1.msra.mxu0 %v377
      %381 = vmatprep.subr.mxu0 0.0
      %382 = vmatpush1.msra.mxu0 0.0
      %383 = vmatprep.subr.mxu0 0.0
      %384 = vmatpush1.msra.mxu0 0.0
      %385 = vmatprep.subr.mxu0 0.0
      %386 = vmatpush1.msra.mxu0 0.0
      %387 = vmatprep.subr.mxu0 0.0
      %388 = vmatpush1.msra.mxu0 0.0
      %389 = vmatprep.subr.mxu0 0.0
      %390 = vmatpush1.msra.mxu0 0.0
      %391 = vmatprep.subr.mxu0 0.0
      %392 = vmatpush1.msra.mxu0 0.0
      %393 = vmatprep.subr.mxu0 0.0
      %394 = vmatpush1.msra.mxu0 0.0
      %395 = vmatprep.subr.mxu0 0.0
      %396 = vmatpush1.msra.mxu0 0.0
      %397 = vmatprep.subr.mxu0 0.0
      %398 = vmatpush1.msra.mxu0 0.0
      %399 = vmatprep.subr.mxu0 0.0
      %400 = vmatpush1.msra.mxu0 0.0
      %401 = vmatprep.subr.mxu0 0.0
      %402 = vmatpush1.msra.mxu0 0.0
      %403 = vmatprep.subr.mxu0 0.0
      %404 = vmatpush1.msra.mxu0 0.0
      %405 = vmatprep.subr.mxu0 0.0
      %406 = vmatpush1.msra.mxu0 0.0
      %407 = vmatprep.subr.mxu0 0.0
      %408 = vmatpush1.msra.mxu0 0.0
      %409 = vmatprep.subr.mxu0 0.0
      %410 = vmatpush1.msra.mxu0 0.0
      %411 = vmatprep.subr.mxu0 0.0
      %412 = vmatpush1.msra.mxu0 0.0
      %413 = vmatprep.subr.mxu0 0.0
      %414 = vmatpush1.msra.mxu0 0.0
      %415 = vmatprep.subr.mxu0 0.0
      %416 = vmatpush1.msra.mxu0 0.0
      %417 = vmatprep.subr.mxu0 0.0
      %418 = vmatpush1.msra.mxu0 0.0
      %419 = vmatprep.subr.mxu0 0.0
      %420 = vmatpush1.msra.mxu0 0.0
      %421 = vmatprep.subr.mxu0 0.0
      %422 = vmatpush1.msra.mxu0 0.0
      %423 = vmatprep.subr.mxu0 0.0
      %424 = vmatpush1.msra.mxu0 0.0
      %425 = vmatprep.subr.mxu0 0.0
      %426 = vmatpush1.msra.mxu0 0.0
      %427 = vmatprep.subr.mxu0 0.0
      %428 = vmatpush1.msra.mxu0 0.0
      %429 = vmatprep.subr.mxu0 0.0
      %430 = vmatpush1.msra.mxu0 0.0
      %431 = vmatprep.subr.mxu0 0.0
      %432 = vmatpush1.msra.mxu0 0.0
      %433 = vmatprep.subr.mxu0 0.0
      %434 = vmatpush1.msra.mxu0 0.0
      %435 = vmatprep.subr.mxu0 0.0
      %436 = vmatpush1.msra.mxu0 0.0
      %437 = vmatprep.subr.mxu0 0.0
      %438 = vmatpush1.msra.mxu0 0.0
      %439 = vmatprep.subr.mxu0 0.0
      %440 = vmatpush1.msra.mxu0 0.0
      %441 = vmatprep.subr.mxu0 0.0
      %442 = vmatpush1.msra.mxu0 0.0
      %443 = vmatprep.mubr.f32.mxu0 0.0
      %444 = vmatmul.mubr.f32.gmra.mrb[0].mxu0 %v280
      %v445 = vpop.f32.mrb[0].mxu0
      %v446 = vadd.f32 0.0, %v445
      %v447 = vpop.f32.mrb[0].mxu0
      %448 = vmatprep.mubr.f32.mxu0 0.0
      %449 = vmatmul.mubr.f32.gmra.mrb[0].mxu0 %v283
      %v450 = vpop.f32.mrb[0].mxu0
      %v451 = vadd.f32 0.0, %v450
      %v452 = vpop.f32.mrb[0].mxu0
      %453 = vmatprep.mubr.f32.mxu0 0.0
      %454 = vmatmul.mubr.f32.gmra.mrb[0].mxu0 %v286
      %v455 = vpop.f32.mrb[0].mxu0
      %v456 = vadd.f32 0.0, %v455
      %v457 = vpop.f32.mrb[0].mxu0
      %458 = vmatprep.mubr.f32.mxu0 0.0
      %459 = vmatmul.mubr.f32.gmra.mrb[0].mxu0 %v289
      %v460 = vpop.f32.mrb[0].mxu0
      %v461 = vadd.f32 0.0, %v460
      %v462 = vpop.f32.mrb[0].mxu0
      %463 = vmatprep.mubr.f32.mxu0 0.0
      %464 = vmatmul.mubr.f32.gmra.mrb[0].mxu0 %v292
      %v465 = vpop.f32.mrb[0].mxu0
      %v466 = vadd.f32 0.0, %v465
      %v467 = vpop.f32.mrb[0].mxu0
      %468 = vmatprep.mubr.f32.mxu0 0.0
      %469 = vmatmul.mubr.f32.gmra.mrb[0].mxu0 %v295
      %v470 = vpop.f32.mrb[0].mxu0
      %v471 = vadd.f32 0.0, %v470
      %v472 = vpop.f32.mrb[0].mxu0
      %473 = vmatprep.mubr.f32.mxu0 0.0
      %474 = vmatmul.mubr.f32.gmra.mrb[0].mxu0 %v298
      %v475 = vpop.f32.mrb[0].mxu0
      %v476 = vadd.f32 0.0, %v475
      %v477 = vpop.f32.mrb[0].mxu0
      %478 = vmatprep.mubr.f32.mxu0 0.0
      %479 = vmatmul.mubr.f32.gmra.mrb[0].mxu0 %v301
      %v480 = vpop.f32.mrb[0].mxu0
      %v481 = vadd.f32 0.0, %v480
      %v482 = vpop.f32.mrb[0].mxu0
      %483 = vmatprep.mubr.f32.mxu0 0.0
      %484 = vmatmul.mubr.f32.gmra.mrb[0].mxu0 %v304
      %v485 = vpop.f32.mrb[0].mxu0
      %v486 = vadd.f32 0.0, %v485
      %v487 = vpop.f32.mrb[0].mxu0
      %488 = vmatprep.mubr.f32.mxu0 0.0
      %489 = vmatmul.mubr.f32.gmra.mrb[0].mxu0 %v307
      %v490 = vpop.f32.mrb[0].mxu0
      %v491 = vadd.f32 0.0, %v490
      %v492 = vpop.f32.mrb[0].mxu0
      %493 = vmatprep.mubr.f32.mxu0 0.0
      %494 = vmatmul.mubr.f32.gmra.mrb[0].mxu0 %v310
      %v495 = vpop.f32.mrb[0].mxu0
      %v496 = vadd.f32 0.0, %v495
      %v497 = vpop.f32.mrb[0].mxu0
      %498 = vmatprep.mubr.f32.mxu0 0.0
      %499 = vmatmul.mubr.f32.gmra.mrb[0].mxu0 %v313
      %v500 = vpop.f32.mrb[0].mxu0
      %v501 = vadd.f32 0.0, %v500
      %v502 = vpop.f32.mrb[0].mxu0
      %503 = vmatprep.mubr.f32.mxu0 0.0
      %504 = vmatmul.mubr.f32.gmra.mrb[0].mxu0 %v316
      %v505 = vpop.f32.mrb[0].mxu0
      %v506 = vadd.f32 0.0, %v505
      %v507 = vpop.f32.mrb[0].mxu0
      %508 = vmatprep.mubr.f32.mxu0 0.0
      %509 = vmatmul.mubr.f32.gmra.mrb[0].mxu0 %v319
      %v510 = vpop.f32.mrb[0].mxu0
      %v511 = vadd.f32 0.0, %v510
      %v512 = vpop.f32.mrb[0].mxu0
      %513 = vmatprep.mubr.f32.mxu0 0.0
      %514 = vmatmul.mubr.f32.gmra.mrb[0].mxu0 %v322
      %v515 = vpop.f32.mrb[0].mxu0
      %v516 = vadd.f32 0.0, %v515
      %v517 = vpop.f32.mrb[0].mxu0
      %518 = vmatprep.mubr.f32.mxu0 0.0
      %519 = vmatmul.mubr.f32.gmra.mrb[0].mxu0 %v325
      %v520 = vpop.f32.mrb[0].mxu0
      %v521 = vadd.f32 0.0, %v520
      %v522 = vpop.f32.mrb[0].mxu0
      %523 = vmatprep.mubr.f32.mxu0 0.0
      %524 = vmatmul.mubr.f32.gmra.mrb[0].mxu0 %v328
      %v525 = vpop.f32.mrb[0].mxu0
      %v526 = vadd.f32 0.0, %v525
      %v527 = vpop.f32.mrb[0].mxu0
      %528 = vmatprep.mubr.f32.mxu0 0.0
      %529 = vmatmul.mubr.f32.gmra.mrb[0].mxu0 %v331
      %v530 = vpop.f32.mrb[0].mxu0
      %v531 = vadd.f32 0.0, %v530
      %v532 = vpop.f32.mrb[0].mxu0
      %533 = vmatprep.mubr.f32.mxu0 0.0
      %534 = vmatmul.mubr.f32.gmra.mrb[0].mxu0 %v334
      %v535 = vpop.f32.mrb[0].mxu0
      %v536 = vadd.f32 0.0, %v535
      %v537 = vpop.f32.mrb[0].mxu0
      %538 = vmatprep.mubr.f32.mxu0 0.0
      %539 = vmatmul.mubr.f32.gmra.mrb[0].mxu0 %v337
      %v540 = vpop.f32.mrb[0].mxu0
      %v541 = vadd.f32 0.0, %v540
      %v542 = vpop.f32.mrb[0].mxu0
      %543 = vmatprep.mubr.f32.mxu0 0.0
      %544 = vmatmul.mubr.f32.gmra.mrb[0].mxu0 %v340
      %v545 = vpop.f32.mrb[0].mxu0
      %v546 = vadd.f32 0.0, %v545
      %v547 = vpop.f32.mrb[0].mxu0
      %548 = vmatprep.mubr.f32.mxu0 0.0
      %549 = vmatmul.mubr.f32.gmra.mrb[0].mxu0 %v343
      %v550 = vpop.f32.mrb[0].mxu0
      %v551 = vadd.f32 0.0, %v550
      %v552 = vpop.f32.mrb[0].mxu0
      %553 = vmatprep.mubr.f32.mxu0 0.0
      %554 = vmatmul.mubr.f32.gmra.mrb[0].mxu0 %v346
      %v555 = vpop.f32.mrb[0].mxu0
      %v556 = vadd.f32 0.0, %v555
      %v557 = vpop.f32.mrb[0].mxu0
      %558 = vmatprep.mubr.f32.mxu0 0.0
      %559 = vmatmul.mubr.f32.gmra.mrb[0].mxu0 %v349
      %v560 = vpop.f32.mrb[0].mxu0
      %v561 = vadd.f32 0.0, %v560
      %v562 = vpop.f32.mrb[0].mxu0
      %563 = vmatprep.mubr.f32.mxu0 0.0
      %564 = vmatmul.mubr.f32.gmra.mrb[0].mxu0 %v352
      %v565 = vpop.f32.mrb[0].mxu0
      %v566 = vadd.f32 0.0, %v565
      %v567 = vpop.f32.mrb[0].mxu0
      %568 = vmatprep.mubr.f32.mxu0 0.0
      %569 = vmatmul.mubr.f32.gmra.mrb[0].mxu0 %v355
      %v570 = vpop.f32.mrb[0].mxu0
      %v571 = vadd.f32 0.0, %v570
      %v572 = vpop.f32.mrb[0].mxu0
      %573 = vmatprep.mubr.f32.mxu0 0.0
      %574 = vmatmul.mubr.f32.gmra.mrb[0].mxu0 %v358
      %v575 = vpop.f32.mrb[0].mxu0
      %v576 = vadd.f32 0.0, %v575
      %v577 = vpop.f32.mrb[0].mxu0
      %578 = vmatprep.mubr.f32.mxu0 0.0
      %579 = vmatmul.mubr.f32.gmra.mrb[0].mxu0 %v361
      %v580 = vpop.f32.mrb[0].mxu0
      %v581 = vadd.f32 0.0, %v580
      %v582 = vpop.f32.mrb[0].mxu0
      %583 = vmatprep.mubr.f32.mxu0 0.0
      %584 = vmatmul.mubr.f32.gmra.mrb[0].mxu0 %v364
      %v585 = vpop.f32.mrb[0].mxu0
      %v586 = vadd.f32 0.0, %v585
      %v587 = vpop.f32.mrb[0].mxu0
      %588 = vmatprep.mubr.f32.mxu0 0.0
      %589 = vmatmul.mubr.f32.gmra.mrb[0].mxu0 %v367
      %v590 = vpop.f32.mrb[0].mxu0
      %v591 = vadd.f32 0.0, %v590
      %v592 = vpop.f32.mrb[0].mxu0
      %593 = vmatprep.mubr.f32.mxu0 0.0
      %594 = vmatmul.mubr.f32.gmra.mrb[0].mxu0 %v370
      %v595 = vpop.f32.mrb[0].mxu0
      %v596 = vadd.f32 0.0, %v595
      %v597 = vpop.f32.mrb[0].mxu0
      %598 = vmatprep.mubr.f32.mxu0 0.0
      %599 = vmatmul.mubr.f32.gmra.mrb[0].mxu0 %v373
      %v600 = vpop.f32.mrb[0].mxu0
      %v601 = vadd.f32 0.0, %v600
      %v602 = vpop.f32.mrb[0].mxu0
      %603 = vdwg.mxu0
      %v604 = vadd.f32 %v276, %v446
      %v605 = vadd.f32 %v276, %v451
      %v606 = vadd.f32 %v276, %v456
      %v607 = vadd.f32 %v276, %v461
      %v608 = vadd.f32 %v276, %v466
      %v609 = vadd.f32 %v276, %v471
      %v610 = vadd.f32 %v276, %v476
      %v611 = vadd.f32 %v276, %v481
      %v612 = vadd.f32 %v276, %v486
      %v613 = vadd.f32 %v276, %v491
      %v614 = vadd.f32 %v276, %v496
      %v615 = vadd.f32 %v276, %v501
      %v616 = vadd.f32 %v276, %v506
      %v617 = vadd.f32 %v276, %v511
      %v618 = vadd.f32 %v276, %v516
      %v619 = vadd.f32 %v276, %v521
      %v620 = vadd.f32 %v276, %v526
      %v621 = vadd.f32 %v276, %v531
      %v622 = vadd.f32 %v276, %v536
      %v623 = vadd.f32 %v276, %v541
      %v624 = vadd.f32 %v276, %v546
      %v625 = vadd.f32 %v276, %v551
      %v626 = vadd.f32 %v276, %v556
      %v627 = vadd.f32 %v276, %v561
      %v628 = vadd.f32 %v276, %v566
      %v629 = vadd.f32 %v276, %v571
      %v630 = vadd.f32 %v276, %v576
      %v631 = vadd.f32 %v276, %v581
      %v632 = vadd.f32 %v276, %v586
      %v633 = vadd.f32 %v276, %v591
      %v634 = vadd.f32 %v276, %v596
      %v635 = vadd.f32 %v276, %v601
      %vm652 = vcmask 1046528
      %v653 = vrot.slane %v198, 1
      %v654 = vrot.slane %v199, 1
      %v655 = vsel %vm652, %v653, %v654
      %v656 = vrot.slane %v200, 1
      %v657 = vsel %vm652, %v654, %v656
      %v658 = vrot.slane %v201, 1
      %v659 = vrot.slane %v202, 1
      %v660 = vsel %vm652, %v658, %v659
      %v661 = vrot.slane %v203, 1
      %v662 = vsel %vm652, %v659, %v661
      %v663 = vrot.slane %v204, 1
      %v664 = vrot.slane %v205, 1
      %v665 = vsel %vm652, %v663, %v664
      %v666 = vrot.slane %v206, 1
      %v667 = vsel %vm652, %v664, %v666
      %v668 = vrot.slane %v207, 1
      %v669 = vrot.slane %v208, 1
      %v670 = vsel %vm652, %v668, %v669
      %v671 = vrot.slane %v209, 1
      %v672 = vsel %vm652, %v669, %v671
      %v673 = vrot.slane %v210, 1
      %v674 = vrot.slane %v211, 1
      %v675 = vsel %vm652, %v673, %v674
      %v676 = vrot.slane %v212, 1
      %v677 = vsel %vm652, %v674, %v676
      %v678 = vrot.slane %v213, 1
      %v679 = vrot.slane %v214, 1
      %v680 = vsel %vm652, %v678, %v679
      %v681 = vrot.slane %v215, 1
      %v682 = vsel %vm652, %v679, %v681
      %v683 = vrot.slane %v216, 1
      %v684 = vrot.slane %v217, 1
      %v685 = vsel %vm652, %v683, %v684
      %v686 = vrot.slane %v218, 1
      %v687 = vsel %vm652, %v684, %v686
      %v688 = vrot.slane %v219, 1
      %v689 = vrot.slane %v220, 1
      %v690 = vsel %vm652, %v688, %v689
      %v691 = vrot.slane %v221, 1
      %v692 = vsel %vm652, %v689, %v691
      %v693 = vrot.slane %v222, 1
      %v694 = vrot.slane %v223, 1
      %v695 = vsel %vm652, %v693, %v694
      %v696 = vrot.slane %v224, 1
      %v697 = vsel %vm652, %v694, %v696
      %v698 = vrot.slane %v225, 1
      %v699 = vrot.slane %v226, 1
      %v700 = vsel %vm652, %v698, %v699
      %v701 = vrot.slane %v227, 1
      %v702 = vsel %vm652, %v699, %v701
      %v703 = vrot.slane %v228, 1
      %v704 = vrot.slane %v229, 1
      %v705 = vsel %vm652, %v703, %v704
      %v706 = vrot.slane %v230, 1
      %v707 = vsel %vm652, %v704, %v706
      %v708 = vrot.slane %v231, 1
      %v709 = vrot.slane %v232, 1
      %v710 = vsel %vm652, %v708, %v709
      %v711 = vrot.slane %v233, 1
      %v712 = vsel %vm652, %v709, %v711
      %v713 = vrot.slane %v234, 1
      %v714 = vrot.slane %v235, 1
      %v715 = vsel %vm652, %v713, %v714
      %v716 = vrot.slane %v236, 1
      %v717 = vsel %vm652, %v714, %v716
      %v718 = vrot.slane %v237, 1
      %v719 = vrot.slane %v238, 1
      %v720 = vsel %vm652, %v718, %v719
      %v721 = vrot.slane %v239, 1
      %v722 = vsel %vm652, %v719, %v721
      %v723 = vrot.slane %v240, 1
      %v724 = vrot.slane %v241, 1
      %v725 = vsel %vm652, %v723, %v724
      %v726 = vrot.slane %v242, 1
      %v727 = vsel %vm652, %v724, %v726
      %v728 = vrot.slane %v243, 1
      %v729 = vrot.slane %v244, 1
      %v730 = vsel %vm652, %v728, %v729
      %v731 = vrot.slane %v245, 1
      %v732 = vsel %vm652, %v729, %v731
      %v733 = vsel %vm278, %v655, 0
      %v735 = vsel %vm278, %v657, 0
      %v737 = vsel %vm278, %v660, 0
      %v739 = vsel %vm278, %v662, 0
      %v741 = vsel %vm278, %v665, 0
      %v743 = vsel %vm278, %v667, 0
      %v745 = vsel %vm278, %v670, 0
      %v747 = vsel %vm278, %v672, 0
      %v749 = vsel %vm278, %v675, 0
      %v751 = vsel %vm278, %v677, 0
      %v753 = vsel %vm278, %v680, 0
      %v755 = vsel %vm278, %v682, 0
      %v757 = vsel %vm278, %v685, 0
      %v759 = vsel %vm278, %v687, 0
      %v761 = vsel %vm278, %v690, 0
      %v763 = vsel %vm278, %v692, 0
      %v765 = vsel %vm278, %v695, 0
      %v767 = vsel %vm278, %v697, 0
      %v769 = vsel %vm278, %v700, 0
      %v771 = vsel %vm278, %v702, 0
      %v773 = vsel %vm278, %v705, 0
      %v775 = vsel %vm278, %v707, 0
      %v777 = vsel %vm278, %v710, 0
      %v779 = vsel %vm278, %v712, 0
      %v781 = vsel %vm278, %v715, 0
      %v783 = vsel %vm278, %v717, 0
      %v785 = vsel %vm278, %v720, 0
      %v787 = vsel %vm278, %v722, 0
      %v789 = vsel %vm278, %v725, 0
      %v791 = vsel %vm278, %v727, 0
      %v793 = vsel %vm278, %v730, 0
      %v795 = vsel %vm278, %v732, 0
      %v798 = vsel %vm375, %v263, 0
      %800 = vmatprep.subr.mxu0 0.0
      %801 = vmatpush1.msra.mxu0 %v798
      %802 = vmatprep.subr.mxu0 0.0
      %803 = vmatpush1.msra.mxu0 0.0
      %804 = vmatprep.subr.mxu0 0.0
      %805 = vmatpush1.msra.mxu0 0.0
      %806 = vmatprep.subr.mxu0 0.0
      %807 = vmatpush1.msra.mxu0 0.0
      %808 = vmatprep.subr.mxu0 0.0
      %809 = vmatpush1.msra.mxu0 0.0
      %810 = vmatprep.subr.mxu0 0.0
      %811 = vmatpush1.msra.mxu0 0.0
      %812 = vmatprep.subr.mxu0 0.0
      %813 = vmatpush1.msra.mxu0 0.0
      %814 = vmatprep.subr.mxu0 0.0
      %815 = vmatpush1.msra.mxu0 0.0
      %816 = vmatprep.subr.mxu0 0.0
      %817 = vmatpush1.msra.mxu0 0.0
      %818 = vmatprep.subr.mxu0 0.0
      %819 = vmatpush1.msra.mxu0 0.0
      %820 = vmatprep.subr.mxu0 0.0
      %821 = vmatpush1.msra.mxu0 0.0
      %822 = vmatprep.subr.mxu0 0.0
      %823 = vmatpush1.msra.mxu0 0.0
      %824 = vmatprep.subr.mxu0 0.0
      %825 = vmatpush1.msra.mxu0 0.0
      %826 = vmatprep.subr.mxu0 0.0
      %827 = vmatpush1.msra.mxu0 0.0
      %828 = vmatprep.subr.mxu0 0.0
      %829 = vmatpush1.msra.mxu0 0.0
      %830 = vmatprep.subr.mxu0 0.0
      %831 = vmatpush1.msra.mxu0 0.0
      %832 = vmatprep.subr.mxu0 0.0
      %833 = vmatpush1.msra.mxu0 0.0
      %834 = vmatprep.subr.mxu0 0.0
      %835 = vmatpush1.msra.mxu0 0.0
      %836 = vmatprep.subr.mxu0 0.0
      %837 = vmatpush1.msra.mxu0 0.0
      %838 = vmatprep.subr.mxu0 0.0
      %839 = vmatpush1.msra.mxu0 0.0
      %840 = vmatprep.subr.mxu0 0.0
      %841 = vmatpush1.msra.mxu0 0.0
      %842 = vmatprep.subr.mxu0 0.0
      %843 = vmatpush1.msra.mxu0 0.0
      %844 = vmatprep.subr.mxu0 0.0
      %845 = vmatpush1.msra.mxu0 0.0
      %846 = vmatprep.subr.mxu0 0.0
      %847 = vmatpush1.msra.mxu0 0.0
      %848 = vmatprep.subr.mxu0 0.0
      %849 = vmatpush1.msra.mxu0 0.0
      %850 = vmatprep.subr.mxu0 0.0
      %851 = vmatpush1.msra.mxu0 0.0
      %852 = vmatprep.subr.mxu0 0.0
      %853 = vmatpush1.msra.mxu0 0.0
      %854 = vmatprep.subr.mxu0 0.0
      %855 = vmatpush1.msra.mxu0 0.0
      %856 = vmatprep.subr.mxu0 0.0
      %857 = vmatpush1.msra.mxu0 0.0
      %858 = vmatprep.subr.mxu0 0.0
      %859 = vmatpush1.msra.mxu0 0.0
      %860 = vmatprep.subr.mxu0 0.0
      %861 = vmatpush1.msra.mxu0 0.0
      %862 = vmatprep.subr.mxu0 0.0
      %863 = vmatpush1.msra.mxu0 0.0
      %864 = vmatprep.mubr.f32.mxu0 0.0
      %865 = vmatmul.mubr.f32.gmra.mrb[0].mxu0 %v733
      %v866 = vpop.f32.mrb[0].mxu0
      %v867 = vadd.f32 0.0, %v866
      %v868 = vpop.f32.mrb[0].mxu0
      %869 = vmatprep.mubr.f32.mxu0 0.0
      %870 = vmatmul.mubr.f32.gmra.mrb[0].mxu0 %v735
      %v871 = vpop.f32.mrb[0].mxu0
      %v872 = vadd.f32 0.0, %v871
      %v873 = vpop.f32.mrb[0].mxu0
      %874 = vmatprep.mubr.f32.mxu0 0.0
      %875 = vmatmul.mubr.f32.gmra.mrb[0].mxu0 %v737
      %v876 = vpop.f32.mrb[0].mxu0
      %v877 = vadd.f32 0.0, %v876
      %v878 = vpop.f32.mrb[0].mxu0
      %879 = vmatprep.mubr.f32.mxu0 0.0
      %880 = vmatmul.mubr.f32.gmra.mrb[0].mxu0 %v739
      %v881 = vpop.f32.mrb[0].mxu0
      %v882 = vadd.f32 0.0, %v881
      %v883 = vpop.f32.mrb[0].mxu0
      %884 = vmatprep.mubr.f32.mxu0 0.0
      %885 = vmatmul.mubr.f32.gmra.mrb[0].mxu0 %v741
      %v886 = vpop.f32.mrb[0].mxu0
      %v887 = vadd.f32 0.0, %v886
      %v888 = vpop.f32.mrb[0].mxu0
      %889 = vmatprep.mubr.f32.mxu0 0.0
      %890 = vmatmul.mubr.f32.gmra.mrb[0].mxu0 %v743
      %v891 = vpop.f32.mrb[0].mxu0
      %v892 = vadd.f32 0.0, %v891
      %v893 = vpop.f32.mrb[0].mxu0
      %894 = vmatprep.mubr.f32.mxu0 0.0
      %895 = vmatmul.mubr.f32.gmra.mrb[0].mxu0 %v745
      %v896 = vpop.f32.mrb[0].mxu0
      %v897 = vadd.f32 0.0, %v896
      %v898 = vpop.f32.mrb[0].mxu0
      %899 = vmatprep.mubr.f32.mxu0 0.0
      %900 = vmatmul.mubr.f32.gmra.mrb[0].mxu0 %v747
      %v901 = vpop.f32.mrb[0].mxu0
      %v902 = vadd.f32 0.0, %v901
      %v903 = vpop.f32.mrb[0].mxu0
      %904 = vmatprep.mubr.f32.mxu0 0.0
      %905 = vmatmul.mubr.f32.gmra.mrb[0].mxu0 %v749
      %v906 = vpop.f32.mrb[0].mxu0
      %v907 = vadd.f32 0.0, %v906
      %v908 = vpop.f32.mrb[0].mxu0
      %909 = vmatprep.mubr.f32.mxu0 0.0
      %910 = vmatmul.mubr.f32.gmra.mrb[0].mxu0 %v751
      %v911 = vpop.f32.mrb[0].mxu0
      %v912 = vadd.f32 0.0, %v911
      %v913 = vpop.f32.mrb[0].mxu0
      %914 = vmatprep.mubr.f32.mxu0 0.0
      %915 = vmatmul.mubr.f32.gmra.mrb[0].mxu0 %v753
      %v916 = vpop.f32.mrb[0].mxu0
      %v917 = vadd.f32 0.0, %v916
      %v918 = vpop.f32.mrb[0].mxu0
      %919 = vmatprep.mubr.f32.mxu0 0.0
      %920 = vmatmul.mubr.f32.gmra.mrb[0].mxu0 %v755
      %v921 = vpop.f32.mrb[0].mxu0
      %v922 = vadd.f32 0.0, %v921
      %v923 = vpop.f32.mrb[0].mxu0
      %924 = vmatprep.mubr.f32.mxu0 0.0
      %925 = vmatmul.mubr.f32.gmra.mrb[0].mxu0 %v757
      %v926 = vpop.f32.mrb[0].mxu0
      %v927 = vadd.f32 0.0, %v926
      %v928 = vpop.f32.mrb[0].mxu0
      %929 = vmatprep.mubr.f32.mxu0 0.0
      %930 = vmatmul.mubr.f32.gmra.mrb[0].mxu0 %v759
      %v931 = vpop.f32.mrb[0].mxu0
      %v932 = vadd.f32 0.0, %v931
      %v933 = vpop.f32.mrb[0].mxu0
      %934 = vmatprep.mubr.f32.mxu0 0.0
      %935 = vmatmul.mubr.f32.gmra.mrb[0].mxu0 %v761
      %v936 = vpop.f32.mrb[0].mxu0
      %v937 = vadd.f32 0.0, %v936
      %v938 = vpop.f32.mrb[0].mxu0
      %939 = vmatprep.mubr.f32.mxu0 0.0
      %940 = vmatmul.mubr.f32.gmra.mrb[0].mxu0 %v763
      %v941 = vpop.f32.mrb[0].mxu0
      %v942 = vadd.f32 0.0, %v941
      %v943 = vpop.f32.mrb[0].mxu0
      %944 = vmatprep.mubr.f32.mxu0 0.0
      %945 = vmatmul.mubr.f32.gmra.mrb[0].mxu0 %v765
      %v946 = vpop.f32.mrb[0].mxu0
      %v947 = vadd.f32 0.0, %v946
      %v948 = vpop.f32.mrb[0].mxu0
      %949 = vmatprep.mubr.f32.mxu0 0.0
      %950 = vmatmul.mubr.f32.gmra.mrb[0].mxu0 %v767
      %v951 = vpop.f32.mrb[0].mxu0
      %v952 = vadd.f32 0.0, %v951
      %v953 = vpop.f32.mrb[0].mxu0
      %954 = vmatprep.mubr.f32.mxu0 0.0
      %955 = vmatmul.mubr.f32.gmra.mrb[0].mxu0 %v769
      %v956 = vpop.f32.mrb[0].mxu0
      %v957 = vadd.f32 0.0, %v956
      %v958 = vpop.f32.mrb[0].mxu0
      %959 = vmatprep.mubr.f32.mxu0 0.0
      %960 = vmatmul.mubr.f32.gmra.mrb[0].mxu0 %v771
      %v961 = vpop.f32.mrb[0].mxu0
      %v962 = vadd.f32 0.0, %v961
      %v963 = vpop.f32.mrb[0].mxu0
      %964 = vmatprep.mubr.f32.mxu0 0.0
      %965 = vmatmul.mubr.f32.gmra.mrb[0].mxu0 %v773
      %v966 = vpop.f32.mrb[0].mxu0
      %v967 = vadd.f32 0.0, %v966
      %v968 = vpop.f32.mrb[0].mxu0
      %969 = vmatprep.mubr.f32.mxu0 0.0
      %970 = vmatmul.mubr.f32.gmra.mrb[0].mxu0 %v775
      %v971 = vpop.f32.mrb[0].mxu0
      %v972 = vadd.f32 0.0, %v971
      %v973 = vpop.f32.mrb[0].mxu0
      %974 = vmatprep.mubr.f32.mxu0 0.0
      %975 = vmatmul.mubr.f32.gmra.mrb[0].mxu0 %v777
      %v976 = vpop.f32.mrb[0].mxu0
      %v977 = vadd.f32 0.0, %v976
      %v978 = vpop.f32.mrb[0].mxu0
      %979 = vmatprep.mubr.f32.mxu0 0.0
      %980 = vmatmul.mubr.f32.gmra.mrb[0].mxu0 %v779
      %v981 = vpop.f32.mrb[0].mxu0
      %v982 = vadd.f32 0.0, %v981
      %v983 = vpop.f32.mrb[0].mxu0
      %984 = vmatprep.mubr.f32.mxu0 0.0
      %985 = vmatmul.mubr.f32.gmra.mrb[0].mxu0 %v781
      %v986 = vpop.f32.mrb[0].mxu0
      %v987 = vadd.f32 0.0, %v986
      %v988 = vpop.f32.mrb[0].mxu0
      %989 = vmatprep.mubr.f32.mxu0 0.0
      %990 = vmatmul.mubr.f32.gmra.mrb[0].mxu0 %v783
      %v991 = vpop.f32.mrb[0].mxu0
      %v992 = vadd.f32 0.0, %v991
      %v993 = vpop.f32.mrb[0].mxu0
      %994 = vmatprep.mubr.f32.mxu0 0.0
      %995 = vmatmul.mubr.f32.gmra.mrb[0].mxu0 %v785
      %v996 = vpop.f32.mrb[0].mxu0
      %v997 = vadd.f32 0.0, %v996
      %v998 = vpop.f32.mrb[0].mxu0
      %999 = vmatprep.mubr.f32.mxu0 0.0
      %1000 = vmatmul.mubr.f32.gmra.mrb[0].mxu0 %v787
      %v1001 = vpop.f32.mrb[0].mxu0
      %v1002 = vadd.f32 0.0, %v1001
      %v1003 = vpop.f32.mrb[0].mxu0
      %1004 = vmatprep.mubr.f32.mxu0 0.0
      %1005 = vmatmul.mubr.f32.gmra.mrb[0].mxu0 %v789
      %v1006 = vpop.f32.mrb[0].mxu0
      %v1007 = vadd.f32 0.0, %v1006
      %v1008 = vpop.f32.mrb[0].mxu0
      %1009 = vmatprep.mubr.f32.mxu0 0.0
      %1010 = vmatmul.mubr.f32.gmra.mrb[0].mxu0 %v791
      %v1011 = vpop.f32.mrb[0].mxu0
      %v1012 = vadd.f32 0.0, %v1011
      %v1013 = vpop.f32.mrb[0].mxu0
      %1014 = vmatprep.mubr.f32.mxu0 0.0
      %1015 = vmatmul.mubr.f32.gmra.mrb[0].mxu0 %v793
      %v1016 = vpop.f32.mrb[0].mxu0
      %v1017 = vadd.f32 0.0, %v1016
      %v1018 = vpop.f32.mrb[0].mxu0
      %1019 = vmatprep.mubr.f32.mxu0 0.0
      %1020 = vmatmul.mubr.f32.gmra.mrb[0].mxu0 %v795
      %v1021 = vpop.f32.mrb[0].mxu0
      %v1022 = vadd.f32 0.0, %v1021
      %v1023 = vpop.f32.mrb[0].mxu0
      %1024 = vdwg.mxu0
      %v1025 = vadd.f32 %v604, %v867
      %v1026 = vadd.f32 %v605, %v872
      %v1027 = vadd.f32 %v606, %v877
      %v1028 = vadd.f32 %v607, %v882
      %v1029 = vadd.f32 %v608, %v887
      %v1030 = vadd.f32 %v609, %v892
      %v1031 = vadd.f32 %v610, %v897
      %v1032 = vadd.f32 %v611, %v902
      %v1033 = vadd.f32 %v612, %v907
      %v1034 = vadd.f32 %v613, %v912
      %v1035 = vadd.f32 %v614, %v917
      %v1036 = vadd.f32 %v615, %v922
      %v1037 = vadd.f32 %v616, %v927
      %v1038 = vadd.f32 %v617, %v932
      %v1039 = vadd.f32 %v618, %v937
      %v1040 = vadd.f32 %v619, %v942
      %v1041 = vadd.f32 %v620, %v947
      %v1042 = vadd.f32 %v621, %v952
      %v1043 = vadd.f32 %v622, %v957
      %v1044 = vadd.f32 %v623, %v962
      %v1045 = vadd.f32 %v624, %v967
      %v1046 = vadd.f32 %v625, %v972
      %v1047 = vadd.f32 %v626, %v977
      %v1048 = vadd.f32 %v627, %v982
      %v1049 = vadd.f32 %v628, %v987
      %v1050 = vadd.f32 %v629, %v992
      %v1051 = vadd.f32 %v630, %v997
      %v1052 = vadd.f32 %v631, %v1002
      %v1053 = vadd.f32 %v632, %v1007
      %v1054 = vadd.f32 %v633, %v1012
      %v1055 = vadd.f32 %v634, %v1017
      %v1056 = vadd.f32 %v635, %v1022
      %vm1057 = vcmask 1045504
      %v1058 = vrot.slane %v198, 2
      %v1059 = vrot.slane %v199, 2
      %v1060 = vsel %vm1057, %v1058, %v1059
      %v1061 = vrot.slane %v200, 2
      %v1062 = vsel %vm1057, %v1059, %v1061
      %v1063 = vrot.slane %v201, 2
      %v1064 = vrot.slane %v202, 2
      %v1065 = vsel %vm1057, %v1063, %v1064
      %v1066 = vrot.slane %v203, 2
      %v1067 = vsel %vm1057, %v1064, %v1066
      %v1068 = vrot.slane %v204, 2
      %v1069 = vrot.slane %v205, 2
      %v1070 = vsel %vm1057, %v1068, %v1069
      %v1071 = vrot.slane %v206, 2
      %v1072 = vsel %vm1057, %v1069, %v1071
      %v1073 = vrot.slane %v207, 2
      %v1074 = vrot.slane %v208, 2
      %v1075 = vsel %vm1057, %v1073, %v1074
      %v1076 = vrot.slane %v209, 2
      %v1077 = vsel %vm1057, %v1074, %v1076
      %v1078 = vrot.slane %v210, 2
      %v1079 = vrot.slane %v211, 2
      %v1080 = vsel %vm1057, %v1078, %v1079
      %v1081 = vrot.slane %v212, 2
      %v1082 = vsel %vm1057, %v1079, %v1081
      %v1083 = vrot.slane %v213, 2
      %v1084 = vrot.slane %v214, 2
      %v1085 = vsel %vm1057, %v1083, %v1084
      %v1086 = vrot.slane %v215, 2
      %v1087 = vsel %vm1057, %v1084, %v1086
      %v1088 = vrot.slane %v216, 2
      %v1089 = vrot.slane %v217, 2
      %v1090 = vsel %vm1057, %v1088, %v1089
      %v1091 = vrot.slane %v218, 2
      %v1092 = vsel %vm1057, %v1089, %v1091
      %v1093 = vrot.slane %v219, 2
      %v1094 = vrot.slane %v220, 2
      %v1095 = vsel %vm1057, %v1093, %v1094
      %v1096 = vrot.slane %v221, 2
      %v1097 = vsel %vm1057, %v1094, %v1096
      %v1098 = vrot.slane %v222, 2
      %v1099 = vrot.slane %v223, 2
      %v1100 = vsel %vm1057, %v1098, %v1099
      %v1101 = vrot.slane %v224, 2
      %v1102 = vsel %vm1057, %v1099, %v1101
      %v1103 = vrot.slane %v225, 2
      %v1104 = vrot.slane %v226, 2
      %v1105 = vsel %vm1057, %v1103, %v1104
      %v1106 = vrot.slane %v227, 2
      %v1107 = vsel %vm1057, %v1104, %v1106
      %v1108 = vrot.slane %v228, 2
      %v1109 = vrot.slane %v229, 2
      %v1110 = vsel %vm1057, %v1108, %v1109
      %v1111 = vrot.slane %v230, 2
      %v1112 = vsel %vm1057, %v1109, %v1111
      %v1113 = vrot.slane %v231, 2
      %v1114 = vrot.slane %v232, 2
      %v1115 = vsel %vm1057, %v1113, %v1114
      %v1116 = vrot.slane %v233, 2
      %v1117 = vsel %vm1057, %v1114, %v1116
      %v1118 = vrot.slane %v234, 2
      %v1119 = vrot.slane %v235, 2
      %v1120 = vsel %vm1057, %v1118, %v1119
      %v1121 = vrot.slane %v236, 2
      %v1122 = vsel %vm1057, %v1119, %v1121
      %v1123 = vrot.slane %v237, 2
      %v1124 = vrot.slane %v238, 2
      %v1125 = vsel %vm1057, %v1123, %v1124
      %v1126 = vrot.slane %v239, 2
      %v1127 = vsel %vm1057, %v1124, %v1126
      %v1128 = vrot.slane %v240, 2
      %v1129 = vrot.slane %v241, 2
      %v1130 = vsel %vm1057, %v1128, %v1129
      %v1131 = vrot.slane %v242, 2
      %v1132 = vsel %vm1057, %v1129, %v1131
      %v1133 = vrot.slane %v243, 2
      %v1134 = vrot.slane %v244, 2
      %v1135 = vsel %vm1057, %v1133, %v1134
      %v1136 = vrot.slane %v245, 2
      %v1137 = vsel %vm1057, %v1134, %v1136
      %v1138 = vsel %vm278, %v1060, 0
      %v1140 = vsel %vm278, %v1062, 0
      %v1142 = vsel %vm278, %v1065, 0
      %v1144 = vsel %vm278, %v1067, 0
      %v1146 = vsel %vm278, %v1070, 0
      %v1148 = vsel %vm278, %v1072, 0
      %v1150 = vsel %vm278, %v1075, 0
      %v1152 = vsel %vm278, %v1077, 0
      %v1154 = vsel %vm278, %v1080, 0
      %v1156 = vsel %vm278, %v1082, 0
      %v1158 = vsel %vm278, %v1085, 0
      %v1160 = vsel %vm278, %v1087, 0
      %v1162 = vsel %vm278, %v1090, 0
      %v1164 = vsel %vm278, %v1092, 0
      %v1166 = vsel %vm278, %v1095, 0
      %v1168 = vsel %vm278, %v1097, 0
      %v1170 = vsel %vm278, %v1100, 0
      %v1172 = vsel %vm278, %v1102, 0
      %v1174 = vsel %vm278, %v1105, 0
      %v1176 = vsel %vm278, %v1107, 0
      %v1178 = vsel %vm278, %v1110, 0
      %v1180 = vsel %vm278, %v1112, 0
      %v1182 = vsel %vm278, %v1115, 0
      %v1184 = vsel %vm278, %v1117, 0
      %v1186 = vsel %vm278, %v1120, 0
      %v1188 = vsel %vm278, %v1122, 0
      %v1190 = vsel %vm278, %v1125, 0
      %v1192 = vsel %vm278, %v1127, 0
      %v1194 = vsel %vm278, %v1130, 0
      %v1196 = vsel %vm278, %v1132, 0
      %v1198 = vsel %vm278, %v1135, 0
      %v1200 = vsel %vm278, %v1137, 0
      %v1203 = vsel %vm375, %v264, 0
      %1205 = vmatprep.subr.mxu0 0.0
      %1206 = vmatpush1.msra.mxu0 %v1203
      %1207 = vmatprep.subr.mxu0 0.0
      %1208 = vmatpush1.msra.mxu0 0.0
      %1209 = vmatprep.subr.mxu0 0.0
      %1210 = vmatpush1.msra.mxu0 0.0
      %1211 = vmatprep.subr.mxu0 0.0
      %1212 = vmatpush1.msra.mxu0 0.0
      %1213 = vmatprep.subr.mxu0 0.0
      %1214 = vmatpush1.msra.mxu0 0.0
      %1215 = vmatprep.subr.mxu0 0.0
      %1216 = vmatpush1.msra.mxu0 0.0
      %1217 = vmatprep.subr.mxu0 0.0
      %1218 = vmatpush1.msra.mxu0 0.0
      %1219 = vmatprep.subr.mxu0 0.0
      %1220 = vmatpush1.msra.mxu0 0.0
      %1221 = vmatprep.subr.mxu0 0.0
      %1222 = vmatpush1.msra.mxu0 0.0
      %1223 = vmatprep.subr.mxu0 0.0
      %1224 = vmatpush1.msra.mxu0 0.0
      %1225 = vmatprep.subr.mxu0 0.0
      %1226 = vmatpush1.msra.mxu0 0.0
      %1227 = vmatprep.subr.mxu0 0.0
      %1228 = vmatpush1.msra.mxu0 0.0
      %1229 = vmatprep.subr.mxu0 0.0
      %1230 = vmatpush1.msra.mxu0 0.0
      %1231 = vmatprep.subr.mxu0 0.0
      %1232 = vmatpush1.msra.mxu0 0.0
      %1233 = vmatprep.subr.mxu0 0.0
      %1234 = vmatpush1.msra.mxu0 0.0
      %1235 = vmatprep.subr.mxu0 0.0
      %1236 = vmatpush1.msra.mxu0 0.0
      %1237 = vmatprep.subr.mxu0 0.0
      %1238 = vmatpush1.msra.mxu0 0.0
      %1239 = vmatprep.subr.mxu0 0.0
      %1240 = vmatpush1.msra.mxu0 0.0
      %1241 = vmatprep.subr.mxu0 0.0
      %1242 = vmatpush1.msra.mxu0 0.0
      %1243 = vmatprep.subr.mxu0 0.0
      %1244 = vmatpush1.msra.mxu0 0.0
      %1245 = vmatprep.subr.mxu0 0.0
      %1246 = vmatpush1.msra.mxu0 0.0
      %1247 = vmatprep.subr.mxu0 0.0
      %1248 = vmatpush1.msra.mxu0 0.0
      %1249 = vmatprep.subr.mxu0 0.0
      %1250 = vmatpush1.msra.mxu0 0.0
      %1251 = vmatprep.subr.mxu0 0.0
      %1252 = vmatpush1.msra.mxu0 0.0
      %1253 = vmatprep.subr.mxu0 0.0
      %1254 = vmatpush1.msra.mxu0 0.0
      %1255 = vmatprep.subr.mxu0 0.0
      %1256 = vmatpush1.msra.mxu0 0.0
      %1257 = vmatprep.subr.mxu0 0.0
      %1258 = vmatpush1.msra.mxu0 0.0
      %1259 = vmatprep.subr.mxu0 0.0
      %1260 = vmatpush1.msra.mxu0 0.0
      %1261 = vmatprep.subr.mxu0 0.0
      %1262 = vmatpush1.msra.mxu0 0.0
      %1263 = vmatprep.subr.mxu0 0.0
      %1264 = vmatpush1.msra.mxu0 0.0
      %1265 = vmatprep.subr.mxu0 0.0
      %1266 = vmatpush1.msra.mxu0 0.0
      %1267 = vmatprep.subr.mxu0 0.0
      %1268 = vmatpush1.msra.mxu0 0.0
      %1269 = vmatprep.mubr.f32.mxu0 0.0
      %1270 = vmatmul.mubr.f32.gmra.mrb[0].mxu0 %v1138
      %v1271 = vpop.f32.mrb[0].mxu0
      %v1272 = vadd.f32 0.0, %v1271
      %v1273 = vpop.f32.mrb[0].mxu0
      %1274 = vmatprep.mubr.f32.mxu0 0.0
      %1275 = vmatmul.mubr.f32.gmra.mrb[0].mxu0 %v1140
      %v1276 = vpop.f32.mrb[0].mxu0
      %v1277 = vadd.f32 0.0, %v1276
      %v1278 = vpop.f32.mrb[0].mxu0
      %1279 = vmatprep.mubr.f32.mxu0 0.0
      %1280 = vmatmul.mubr.f32.gmra.mrb[0].mxu0 %v1142
      %v1281 = vpop.f32.mrb[0].mxu0
      %v1282 = vadd.f32 0.0, %v1281
      %v1283 = vpop.f32.mrb[0].mxu0
      %1284 = vmatprep.mubr.f32.mxu0 0.0
      %1285 = vmatmul.mubr.f32.gmra.mrb[0].mxu0 %v1144
      %v1286 = vpop.f32.mrb[0].mxu0
      %v1287 = vadd.f32 0.0, %v1286
      %v1288 = vpop.f32.mrb[0].mxu0
      %1289 = vmatprep.mubr.f32.mxu0 0.0
      %1290 = vmatmul.mubr.f32.gmra.mrb[0].mxu0 %v1146
      %v1291 = vpop.f32.mrb[0].mxu0
      %v1292 = vadd.f32 0.0, %v1291
      %v1293 = vpop.f32.mrb[0].mxu0
      %1294 = vmatprep.mubr.f32.mxu0 0.0
      %1295 = vmatmul.mubr.f32.gmra.mrb[0].mxu0 %v1148
      %v1296 = vpop.f32.mrb[0].mxu0
      %v1297 = vadd.f32 0.0, %v1296
      %v1298 = vpop.f32.mrb[0].mxu0
      %1299 = vmatprep.mubr.f32.mxu0 0.0
      %1300 = vmatmul.mubr.f32.gmra.mrb[0].mxu0 %v1150
      %v1301 = vpop.f32.mrb[0].mxu0
      %v1302 = vadd.f32 0.0, %v1301
      %v1303 = vpop.f32.mrb[0].mxu0
      %1304 = vmatprep.mubr.f32.mxu0 0.0
      %1305 = vmatmul.mubr.f32.gmra.mrb[0].mxu0 %v1152
      %v1306 = vpop.f32.mrb[0].mxu0
      %v1307 = vadd.f32 0.0, %v1306
      %v1308 = vpop.f32.mrb[0].mxu0
      %1309 = vmatprep.mubr.f32.mxu0 0.0
      %1310 = vmatmul.mubr.f32.gmra.mrb[0].mxu0 %v1154
      %v1311 = vpop.f32.mrb[0].mxu0
      %v1312 = vadd.f32 0.0, %v1311
      %v1313 = vpop.f32.mrb[0].mxu0
      %1314 = vmatprep.mubr.f32.mxu0 0.0
      %1315 = vmatmul.mubr.f32.gmra.mrb[0].mxu0 %v1156
      %v1316 = vpop.f32.mrb[0].mxu0
      %v1317 = vadd.f32 0.0, %v1316
      %v1318 = vpop.f32.mrb[0].mxu0
      %1319 = vmatprep.mubr.f32.mxu0 0.0
      %1320 = vmatmul.mubr.f32.gmra.mrb[0].mxu0 %v1158
      %v1321 = vpop.f32.mrb[0].mxu0
      %v1322 = vadd.f32 0.0, %v1321
      %v1323 = vpop.f32.mrb[0].mxu0
      %1324 = vmatprep.mubr.f32.mxu0 0.0
      %1325 = vmatmul.mubr.f32.gmra.mrb[0].mxu0 %v1160
      %v1326 = vpop.f32.mrb[0].mxu0
      %v1327 = vadd.f32 0.0, %v1326
      %v1328 = vpop.f32.mrb[0].mxu0
      %1329 = vmatprep.mubr.f32.mxu0 0.0
      %1330 = vmatmul.mubr.f32.gmra.mrb[0].mxu0 %v1162
      %v1331 = vpop.f32.mrb[0].mxu0
      %v1332 = vadd.f32 0.0, %v1331
      %v1333 = vpop.f32.mrb[0].mxu0
      %1334 = vmatprep.mubr.f32.mxu0 0.0
      %1335 = vmatmul.mubr.f32.gmra.mrb[0].mxu0 %v1164
      %v1336 = vpop.f32.mrb[0].mxu0
      %v1337 = vadd.f32 0.0, %v1336
      %v1338 = vpop.f32.mrb[0].mxu0
      %1339 = vmatprep.mubr.f32.mxu0 0.0
      %1340 = vmatmul.mubr.f32.gmra.mrb[0].mxu0 %v1166
      %v1341 = vpop.f32.mrb[0].mxu0
      %v1342 = vadd.f32 0.0, %v1341
      %v1343 = vpop.f32.mrb[0].mxu0
      %1344 = vmatprep.mubr.f32.mxu0 0.0
      %1345 = vmatmul.mubr.f32.gmra.mrb[0].mxu0 %v1168
      %v1346 = vpop.f32.mrb[0].mxu0
      %v1347 = vadd.f32 0.0, %v1346
      %v1348 = vpop.f32.mrb[0].mxu0
      %1349 = vmatprep.mubr.f32.mxu0 0.0
      %1350 = vmatmul.mubr.f32.gmra.mrb[0].mxu0 %v1170
      %v1351 = vpop.f32.mrb[0].mxu0
      %v1352 = vadd.f32 0.0, %v1351
      %v1353 = vpop.f32.mrb[0].mxu0
      %1354 = vmatprep.mubr.f32.mxu0 0.0
      %1355 = vmatmul.mubr.f32.gmra.mrb[0].mxu0 %v1172
      %v1356 = vpop.f32.mrb[0].mxu0
      %v1357 = vadd.f32 0.0, %v1356
      %v1358 = vpop.f32.mrb[0].mxu0
      %1359 = vmatprep.mubr.f32.mxu0 0.0
      %1360 = vmatmul.mubr.f32.gmra.mrb[0].mxu0 %v1174
      %v1361 = vpop.f32.mrb[0].mxu0
      %v1362 = vadd.f32 0.0, %v1361
      %v1363 = vpop.f32.mrb[0].mxu0
      %1364 = vmatprep.mubr.f32.mxu0 0.0
      %1365 = vmatmul.mubr.f32.gmra.mrb[0].mxu0 %v1176
      %v1366 = vpop.f32.mrb[0].mxu0
      %v1367 = vadd.f32 0.0, %v1366
      %v1368 = vpop.f32.mrb[0].mxu0
      %1369 = vmatprep.mubr.f32.mxu0 0.0
      %1370 = vmatmul.mubr.f32.gmra.mrb[0].mxu0 %v1178
      %v1371 = vpop.f32.mrb[0].mxu0
      %v1372 = vadd.f32 0.0, %v1371
      %v1373 = vpop.f32.mrb[0].mxu0
      %1374 = vmatprep.mubr.f32.mxu0 0.0
      %1375 = vmatmul.mubr.f32.gmra.mrb[0].mxu0 %v1180
      %v1376 = vpop.f32.mrb[0].mxu0
      %v1377 = vadd.f32 0.0, %v1376
      %v1378 = vpop.f32.mrb[0].mxu0
      %1379 = vmatprep.mubr.f32.mxu0 0.0
      %1380 = vmatmul.mubr.f32.gmra.mrb[0].mxu0 %v1182
      %v1381 = vpop.f32.mrb[0].mxu0
      %v1382 = vadd.f32 0.0, %v1381
      %v1383 = vpop.f32.mrb[0].mxu0
      %1384 = vmatprep.mubr.f32.mxu0 0.0
      %1385 = vmatmul.mubr.f32.gmra.mrb[0].mxu0 %v1184
      %v1386 = vpop.f32.mrb[0].mxu0
      %v1387 = vadd.f32 0.0, %v1386
      %v1388 = vpop.f32.mrb[0].mxu0
      %1389 = vmatprep.mubr.f32.mxu0 0.0
      %1390 = vmatmul.mubr.f32.gmra.mrb[0].mxu0 %v1186
      %v1391 = vpop.f32.mrb[0].mxu0
      %v1392 = vadd.f32 0.0, %v1391
      %v1393 = vpop.f32.mrb[0].mxu0
      %1394 = vmatprep.mubr.f32.mxu0 0.0
      %1395 = vmatmul.mubr.f32.gmra.mrb[0].mxu0 %v1188
      %v1396 = vpop.f32.mrb[0].mxu0
      %v1397 = vadd.f32 0.0, %v1396
      %v1398 = vpop.f32.mrb[0].mxu0
      %1399 = vmatprep.mubr.f32.mxu0 0.0
      %1400 = vmatmul.mubr.f32.gmra.mrb[0].mxu0 %v1190
      %v1401 = vpop.f32.mrb[0].mxu0
      %v1402 = vadd.f32 0.0, %v1401
      %v1403 = vpop.f32.mrb[0].mxu0
      %1404 = vmatprep.mubr.f32.mxu0 0.0
      %1405 = vmatmul.mubr.f32.gmra.mrb[0].mxu0 %v1192
      %v1406 = vpop.f32.mrb[0].mxu0
      %v1407 = vadd.f32 0.0, %v1406
      %v1408 = vpop.f32.mrb[0].mxu0
      %1409 = vmatprep.mubr.f32.mxu0 0.0
      %1410 = vmatmul.mubr.f32.gmra.mrb[0].mxu0 %v1194
      %v1411 = vpop.f32.mrb[0].mxu0
      %v1412 = vadd.f32 0.0, %v1411
      %v1413 = vpop.f32.mrb[0].mxu0
      %1414 = vmatprep.mubr.f32.mxu0 0.0
      %1415 = vmatmul.mubr.f32.gmra.mrb[0].mxu0 %v1196
      %v1416 = vpop.f32.mrb[0].mxu0
      %v1417 = vadd.f32 0.0, %v1416
      %v1418 = vpop.f32.mrb[0].mxu0
      %1419 = vmatprep.mubr.f32.mxu0 0.0
      %1420 = vmatmul.mubr.f32.gmra.mrb[0].mxu0 %v1198
      %v1421 = vpop.f32.mrb[0].mxu0
      %v1422 = vadd.f32 0.0, %v1421
      %v1423 = vpop.f32.mrb[0].mxu0
      %1424 = vmatprep.mubr.f32.mxu0 0.0
      %1425 = vmatmul.mubr.f32.gmra.mrb[0].mxu0 %v1200
      %v1426 = vpop.f32.mrb[0].mxu0
      %v1427 = vadd.f32 0.0, %v1426
      %v1428 = vpop.f32.mrb[0].mxu0
      %1429 = vdwg.mxu0
      %v1430 = vadd.f32 %v1025, %v1272
      %v1431 = vadd.f32 %v1026, %v1277
      %v1432 = vadd.f32 %v1027, %v1282
      %v1433 = vadd.f32 %v1028, %v1287
      %v1434 = vadd.f32 %v1029, %v1292
      %v1435 = vadd.f32 %v1030, %v1297
      %v1436 = vadd.f32 %v1031, %v1302
      %v1437 = vadd.f32 %v1032, %v1307
      %v1438 = vadd.f32 %v1033, %v1312
      %v1439 = vadd.f32 %v1034, %v1317
      %v1440 = vadd.f32 %v1035, %v1322
      %v1441 = vadd.f32 %v1036, %v1327
      %v1442 = vadd.f32 %v1037, %v1332
      %v1443 = vadd.f32 %v1038, %v1337
      %v1444 = vadd.f32 %v1039, %v1342
      %v1445 = vadd.f32 %v1040, %v1347
      %v1446 = vadd.f32 %v1041, %v1352
      %v1447 = vadd.f32 %v1042, %v1357
      %v1448 = vadd.f32 %v1043, %v1362
      %v1449 = vadd.f32 %v1044, %v1367
      %v1450 = vadd.f32 %v1045, %v1372
      %v1451 = vadd.f32 %v1046, %v1377
      %v1452 = vadd.f32 %v1047, %v1382
      %v1453 = vadd.f32 %v1048, %v1387
      %v1454 = vadd.f32 %v1049, %v1392
      %v1455 = vadd.f32 %v1050, %v1397
      %v1456 = vadd.f32 %v1051, %v1402
      %v1457 = vadd.f32 %v1052, %v1407
      %v1458 = vadd.f32 %v1053, %v1412
      %v1459 = vadd.f32 %v1054, %v1417
      %v1460 = vadd.f32 %v1055, %v1422
      %v1461 = vadd.f32 %v1056, %v1427
      %v1463 = vsel %vm278, %v246, 0
      %v1466 = vsel %vm278, %v247, 0
      %v1469 = vsel %vm375, %v265, 0
      %1471 = vmatprep.subr.mxu0 0.0
      %1472 = vmatpush1.msra.mxu0 %v1469
      %1473 = vmatprep.subr.mxu0 0.0
      %1474 = vmatpush1.msra.mxu0 0.0
      %1475 = vmatprep.subr.mxu0 0.0
      %1476 = vmatpush1.msra.mxu0 0.0
      %1477 = vmatprep.subr.mxu0 0.0
      %1478 = vmatpush1.msra.mxu0 0.0
      %1479 = vmatprep.subr.mxu0 0.0
      %1480 = vmatpush1.msra.mxu0 0.0
      %1481 = vmatprep.subr.mxu0 0.0
      %1482 = vmatpush1.msra.mxu0 0.0
      %1483 = vmatprep.subr.mxu0 0.0
      %1484 = vmatpush1.msra.mxu0 0.0
      %1485 = vmatprep.subr.mxu0 0.0
      %1486 = vmatpush1.msra.mxu0 0.0
      %1487 = vmatprep.subr.mxu0 0.0
      %1488 = vmatpush1.msra.mxu0 0.0
      %1489 = vmatprep.subr.mxu0 0.0
      %1490 = vmatpush1.msra.mxu0 0.0
      %1491 = vmatprep.subr.mxu0 0.0
      %1492 = vmatpush1.msra.mxu0 0.0
      %1493 = vmatprep.subr.mxu0 0.0
      %1494 = vmatpush1.msra.mxu0 0.0
      %1495 = vmatprep.subr.mxu0 0.0
      %1496 = vmatpush1.msra.mxu0 0.0
      %1497 = vmatprep.subr.mxu0 0.0
      %1498 = vmatpush1.msra.mxu0 0.0
      %1499 = vmatprep.subr.mxu0 0.0
      %1500 = vmatpush1.msra.mxu0 0.0
      %1501 = vmatprep.subr.mxu0 0.0
      %1502 = vmatpush1.msra.mxu0 0.0
      %1503 = vmatprep.subr.mxu0 0.0
      %1504 = vmatpush1.msra.mxu0 0.0
      %1505 = vmatprep.subr.mxu0 0.0
      %1506 = vmatpush1.msra.mxu0 0.0
      %1507 = vmatprep.subr.mxu0 0.0
      %1508 = vmatpush1.msra.mxu0 0.0
      %1509 = vmatprep.subr.mxu0 0.0
      %1510 = vmatpush1.msra.mxu0 0.0
      %1511 = vmatprep.subr.mxu0 0.0
      %1512 = vmatpush1.msra.mxu0 0.0
      %1513 = vmatprep.subr.mxu0 0.0
      %1514 = vmatpush1.msra.mxu0 0.0
      %1515 = vmatprep.subr.mxu0 0.0
      %1516 = vmatpush1.msra.mxu0 0.0
      %1517 = vmatprep.subr.mxu0 0.0
      %1518 = vmatpush1.msra.mxu0 0.0
      %1519 = vmatprep.subr.mxu0 0.0
      %1520 = vmatpush1.msra.mxu0 0.0
      %1521 = vmatprep.subr.mxu0 0.0
      %1522 = vmatpush1.msra.mxu0 0.0
      %1523 = vmatprep.subr.mxu0 0.0
      %1524 = vmatpush1.msra.mxu0 0.0
      %1525 = vmatprep.subr.mxu0 0.0
      %1526 = vmatpush1.msra.mxu0 0.0
      %1527 = vmatprep.subr.mxu0 0.0
      %1528 = vmatpush1.msra.mxu0 0.0
      %1529 = vmatprep.subr.mxu0 0.0
      %1530 = vmatpush1.msra.mxu0 0.0
      %1531 = vmatprep.subr.mxu0 0.0
      %1532 = vmatpush1.msra.mxu0 0.0
      %1533 = vmatprep.subr.mxu0 0.0
      %1534 = vmatpush1.msra.mxu0 0.0
      %1535 = vmatprep.mubr.f32.mxu0 0.0
      %1536 = vmatmul.mubr.f32.gmra.mrb[0].mxu0 %v286
      %v1537 = vpop.f32.mrb[0].mxu0
      %v1538 = vadd.f32 0.0, %v1537
      %v1539 = vpop.f32.mrb[0].mxu0
      %1540 = vmatprep.mubr.f32.mxu0 0.0
      %1541 = vmatmul.mubr.f32.gmra.mrb[0].mxu0 %v289
      %v1542 = vpop.f32.mrb[0].mxu0
      %v1543 = vadd.f32 0.0, %v1542
      %v1544 = vpop.f32.mrb[0].mxu0
      %1545 = vmatprep.mubr.f32.mxu0 0.0
      %1546 = vmatmul.mubr.f32.gmra.mrb[0].mxu0 %v292
      %v1547 = vpop.f32.mrb[0].mxu0
      %v1548 = vadd.f32 0.0, %v1547
      %v1549 = vpop.f32.mrb[0].mxu0
      %1550 = vmatprep.mubr.f32.mxu0 0.0
      %1551 = vmatmul.mubr.f32.gmra.mrb[0].mxu0 %v295
      %v1552 = vpop.f32.mrb[0].mxu0
      %v1553 = vadd.f32 0.0, %v1552
      %v1554 = vpop.f32.mrb[0].mxu0
      %1555 = vmatprep.mubr.f32.mxu0 0.0
      %1556 = vmatmul.mubr.f32.gmra.mrb[0].mxu0 %v298
      %v1557 = vpop.f32.mrb[0].mxu0
      %v1558 = vadd.f32 0.0, %v1557
      %v1559 = vpop.f32.mrb[0].mxu0
      %1560 = vmatprep.mubr.f32.mxu0 0.0
      %1561 = vmatmul.mubr.f32.gmra.mrb[0].mxu0 %v301
      %v1562 = vpop.f32.mrb[0].mxu0
      %v1563 = vadd.f32 0.0, %v1562
      %v1564 = vpop.f32.mrb[0].mxu0
      %1565 = vmatprep.mubr.f32.mxu0 0.0
      %1566 = vmatmul.mubr.f32.gmra.mrb[0].mxu0 %v304
      %v1567 = vpop.f32.mrb[0].mxu0
      %v1568 = vadd.f32 0.0, %v1567
      %v1569 = vpop.f32.mrb[0].mxu0
      %1570 = vmatprep.mubr.f32.mxu0 0.0
      %1571 = vmatmul.mubr.f32.gmra.mrb[0].mxu0 %v307
      %v1572 = vpop.f32.mrb[0].mxu0
      %v1573 = vadd.f32 0.0, %v1572
      %v1574 = vpop.f32.mrb[0].mxu0
      %1575 = vmatprep.mubr.f32.mxu0 0.0
      %1576 = vmatmul.mubr.f32.gmra.mrb[0].mxu0 %v310
      %v1577 = vpop.f32.mrb[0].mxu0
      %v1578 = vadd.f32 0.0, %v1577
      %v1579 = vpop.f32.mrb[0].mxu0
      %1580 = vmatprep.mubr.f32.mxu0 0.0
      %1581 = vmatmul.mubr.f32.gmra.mrb[0].mxu0 %v313
      %v1582 = vpop.f32.mrb[0].mxu0
      %v1583 = vadd.f32 0.0, %v1582
      %v1584 = vpop.f32.mrb[0].mxu0
      %1585 = vmatprep.mubr.f32.mxu0 0.0
      %1586 = vmatmul.mubr.f32.gmra.mrb[0].mxu0 %v316
      %v1587 = vpop.f32.mrb[0].mxu0
      %v1588 = vadd.f32 0.0, %v1587
      %v1589 = vpop.f32.mrb[0].mxu0
      %1590 = vmatprep.mubr.f32.mxu0 0.0
      %1591 = vmatmul.mubr.f32.gmra.mrb[0].mxu0 %v319
      %v1592 = vpop.f32.mrb[0].mxu0
      %v1593 = vadd.f32 0.0, %v1592
      %v1594 = vpop.f32.mrb[0].mxu0
      %1595 = vmatprep.mubr.f32.mxu0 0.0
      %1596 = vmatmul.mubr.f32.gmra.mrb[0].mxu0 %v322
      %v1597 = vpop.f32.mrb[0].mxu0
      %v1598 = vadd.f32 0.0, %v1597
      %v1599 = vpop.f32.mrb[0].mxu0
      %1600 = vmatprep.mubr.f32.mxu0 0.0
      %1601 = vmatmul.mubr.f32.gmra.mrb[0].mxu0 %v325
      %v1602 = vpop.f32.mrb[0].mxu0
      %v1603 = vadd.f32 0.0, %v1602
      %v1604 = vpop.f32.mrb[0].mxu0
      %1605 = vmatprep.mubr.f32.mxu0 0.0
      %1606 = vmatmul.mubr.f32.gmra.mrb[0].mxu0 %v328
      %v1607 = vpop.f32.mrb[0].mxu0
      %v1608 = vadd.f32 0.0, %v1607
      %v1609 = vpop.f32.mrb[0].mxu0
      %1610 = vmatprep.mubr.f32.mxu0 0.0
      %1611 = vmatmul.mubr.f32.gmra.mrb[0].mxu0 %v331
      %v1612 = vpop.f32.mrb[0].mxu0
      %v1613 = vadd.f32 0.0, %v1612
      %v1614 = vpop.f32.mrb[0].mxu0
      %1615 = vmatprep.mubr.f32.mxu0 0.0
      %1616 = vmatmul.mubr.f32.gmra.mrb[0].mxu0 %v334
      %v1617 = vpop.f32.mrb[0].mxu0
      %v1618 = vadd.f32 0.0, %v1617
      %v1619 = vpop.f32.mrb[0].mxu0
      %1620 = vmatprep.mubr.f32.mxu0 0.0
      %1621 = vmatmul.mubr.f32.gmra.mrb[0].mxu0 %v337
      %v1622 = vpop.f32.mrb[0].mxu0
      %v1623 = vadd.f32 0.0, %v1622
      %v1624 = vpop.f32.mrb[0].mxu0
      %1625 = vmatprep.mubr.f32.mxu0 0.0
      %1626 = vmatmul.mubr.f32.gmra.mrb[0].mxu0 %v340
      %v1627 = vpop.f32.mrb[0].mxu0
      %v1628 = vadd.f32 0.0, %v1627
      %v1629 = vpop.f32.mrb[0].mxu0
      %1630 = vmatprep.mubr.f32.mxu0 0.0
      %1631 = vmatmul.mubr.f32.gmra.mrb[0].mxu0 %v343
      %v1632 = vpop.f32.mrb[0].mxu0
      %v1633 = vadd.f32 0.0, %v1632
      %v1634 = vpop.f32.mrb[0].mxu0
      %1635 = vmatprep.mubr.f32.mxu0 0.0
      %1636 = vmatmul.mubr.f32.gmra.mrb[0].mxu0 %v346
      %v1637 = vpop.f32.mrb[0].mxu0
      %v1638 = vadd.f32 0.0, %v1637
      %v1639 = vpop.f32.mrb[0].mxu0
      %1640 = vmatprep.mubr.f32.mxu0 0.0
      %1641 = vmatmul.mubr.f32.gmra.mrb[0].mxu0 %v349
      %v1642 = vpop.f32.mrb[0].mxu0
      %v1643 = vadd.f32 0.0, %v1642
      %v1644 = vpop.f32.mrb[0].mxu0
      %1645 = vmatprep.mubr.f32.mxu0 0.0
      %1646 = vmatmul.mubr.f32.gmra.mrb[0].mxu0 %v352
      %v1647 = vpop.f32.mrb[0].mxu0
      %v1648 = vadd.f32 0.0, %v1647
      %v1649 = vpop.f32.mrb[0].mxu0
      %1650 = vmatprep.mubr.f32.mxu0 0.0
      %1651 = vmatmul.mubr.f32.gmra.mrb[0].mxu0 %v355
      %v1652 = vpop.f32.mrb[0].mxu0
      %v1653 = vadd.f32 0.0, %v1652
      %v1654 = vpop.f32.mrb[0].mxu0
      %1655 = vmatprep.mubr.f32.mxu0 0.0
      %1656 = vmatmul.mubr.f32.gmra.mrb[0].mxu0 %v358
      %v1657 = vpop.f32.mrb[0].mxu0
      %v1658 = vadd.f32 0.0, %v1657
      %v1659 = vpop.f32.mrb[0].mxu0
      %1660 = vmatprep.mubr.f32.mxu0 0.0
      %1661 = vmatmul.mubr.f32.gmra.mrb[0].mxu0 %v361
      %v1662 = vpop.f32.mrb[0].mxu0
      %v1663 = vadd.f32 0.0, %v1662
      %v1664 = vpop.f32.mrb[0].mxu0
      %1665 = vmatprep.mubr.f32.mxu0 0.0
      %1666 = vmatmul.mubr.f32.gmra.mrb[0].mxu0 %v364
      %v1667 = vpop.f32.mrb[0].mxu0
      %v1668 = vadd.f32 0.0, %v1667
      %v1669 = vpop.f32.mrb[0].mxu0
      %1670 = vmatprep.mubr.f32.mxu0 0.0
      %1671 = vmatmul.mubr.f32.gmra.mrb[0].mxu0 %v367
      %v1672 = vpop.f32.mrb[0].mxu0
      %v1673 = vadd.f32 0.0, %v1672
      %v1674 = vpop.f32.mrb[0].mxu0
      %1675 = vmatprep.mubr.f32.mxu0 0.0
      %1676 = vmatmul.mubr.f32.gmra.mrb[0].mxu0 %v370
      %v1677 = vpop.f32.mrb[0].mxu0
      %v1678 = vadd.f32 0.0, %v1677
      %v1679 = vpop.f32.mrb[0].mxu0
      %1680 = vmatprep.mubr.f32.mxu0 0.0
      %1681 = vmatmul.mubr.f32.gmra.mrb[0].mxu0 %v373
      %v1682 = vpop.f32.mrb[0].mxu0
      %v1683 = vadd.f32 0.0, %v1682
      %v1684 = vpop.f32.mrb[0].mxu0
      %1685 = vmatprep.mubr.f32.mxu0 0.0
      %1686 = vmatmul.mubr.f32.gmra.mrb[0].mxu0 %v1463
      %v1687 = vpop.f32.mrb[0].mxu0
      %v1688 = vadd.f32 0.0, %v1687
      %v1689 = vpop.f32.mrb[0].mxu0
      %1690 = vmatprep.mubr.f32.mxu0 0.0
      %1691 = vmatmul.mubr.f32.gmra.mrb[0].mxu0 %v1466
      %v1692 = vpop.f32.mrb[0].mxu0
      %v1693 = vadd.f32 0.0, %v1692
      %v1694 = vpop.f32.mrb[0].mxu0
      %1695 = vdwg.mxu0
      %v1696 = vadd.f32 %v1430, %v1538
      %v1697 = vadd.f32 %v1431, %v1543
      %v1698 = vadd.f32 %v1432, %v1548
      %v1699 = vadd.f32 %v1433, %v1553
      %v1700 = vadd.f32 %v1434, %v1558
      %v1701 = vadd.f32 %v1435, %v1563
      %v1702 = vadd.f32 %v1436, %v1568
      %v1703 = vadd.f32 %v1437, %v1573
      %v1704 = vadd.f32 %v1438, %v1578
      %v1705 = vadd.f32 %v1439, %v1583
      %v1706 = vadd.f32 %v1440, %v1588
      %v1707 = vadd.f32 %v1441, %v1593
      %v1708 = vadd.f32 %v1442, %v1598
      %v1709 = vadd.f32 %v1443, %v1603
      %v1710 = vadd.f32 %v1444, %v1608
      %v1711 = vadd.f32 %v1445, %v1613
      %v1712 = vadd.f32 %v1446, %v1618
      %v1713 = vadd.f32 %v1447, %v1623
      %v1714 = vadd.f32 %v1448, %v1628
      %v1715 = vadd.f32 %v1449, %v1633
      %v1716 = vadd.f32 %v1450, %v1638
      %v1717 = vadd.f32 %v1451, %v1643
      %v1718 = vadd.f32 %v1452, %v1648
      %v1719 = vadd.f32 %v1453, %v1653
      %v1720 = vadd.f32 %v1454, %v1658
      %v1721 = vadd.f32 %v1455, %v1663
      %v1722 = vadd.f32 %v1456, %v1668
      %v1723 = vadd.f32 %v1457, %v1673
      %v1724 = vadd.f32 %v1458, %v1678
      %v1725 = vadd.f32 %v1459, %v1683
      %v1726 = vadd.f32 %v1460, %v1688
      %v1727 = vadd.f32 %v1461, %v1693
      %v1729 = vrot.slane %v246, 1
      %v1730 = vrot.slane %v247, 1
      %v1731 = vsel %vm652, %v1729, %v1730
      %v1732 = vrot.slane %v248, 1
      %v1733 = vsel %vm652, %v1730, %v1732
      %v1734 = vsel %vm278, %v1731, 0
      %v1736 = vsel %vm278, %v1733, 0
      %v1739 = vsel %vm375, %v266, 0
      %1741 = vmatprep.subr.mxu0 0.0
      %1742 = vmatpush1.msra.mxu0 %v1739
      %1743 = vmatprep.subr.mxu0 0.0
      %1744 = vmatpush1.msra.mxu0 0.0
      %1745 = vmatprep.subr.mxu0 0.0
      %1746 = vmatpush1.msra.mxu0 0.0
      %1747 = vmatprep.subr.mxu0 0.0
      %1748 = vmatpush1.msra.mxu0 0.0
      %1749 = vmatprep.subr.mxu0 0.0
      %1750 = vmatpush1.msra.mxu0 0.0
      %1751 = vmatprep.subr.mxu0 0.0
      %1752 = vmatpush1.msra.mxu0 0.0
      %1753 = vmatprep.subr.mxu0 0.0
      %1754 = vmatpush1.msra.mxu0 0.0
      %1755 = vmatprep.subr.mxu0 0.0
      %1756 = vmatpush1.msra.mxu0 0.0
      %1757 = vmatprep.subr.mxu0 0.0
      %1758 = vmatpush1.msra.mxu0 0.0
      %1759 = vmatprep.subr.mxu0 0.0
      %1760 = vmatpush1.msra.mxu0 0.0
      %1761 = vmatprep.subr.mxu0 0.0
      %1762 = vmatpush1.msra.mxu0 0.0
      %1763 = vmatprep.subr.mxu0 0.0
      %1764 = vmatpush1.msra.mxu0 0.0
      %1765 = vmatprep.subr.mxu0 0.0
      %1766 = vmatpush1.msra.mxu0 0.0
      %1767 = vmatprep.subr.mxu0 0.0
      %1768 = vmatpush1.msra.mxu0 0.0
      %1769 = vmatprep.subr.mxu0 0.0
      %1770 = vmatpush1.msra.mxu0 0.0
      %1771 = vmatprep.subr.mxu0 0.0
      %1772 = vmatpush1.msra.mxu0 0.0
      %1773 = vmatprep.subr.mxu0 0.0
      %1774 = vmatpush1.msra.mxu0 0.0
      %1775 = vmatprep.subr.mxu0 0.0
      %1776 = vmatpush1.msra.mxu0 0.0
      %1777 = vmatprep.subr.mxu0 0.0
      %1778 = vmatpush1.msra.mxu0 0.0
      %1779 = vmatprep.subr.mxu0 0.0
      %1780 = vmatpush1.msra.mxu0 0.0
      %1781 = vmatprep.subr.mxu0 0.0
      %1782 = vmatpush1.msra.mxu0 0.0
      %1783 = vmatprep.subr.mxu0 0.0
      %1784 = vmatpush1.msra.mxu0 0.0
      %1785 = vmatprep.subr.mxu0 0.0
      %1786 = vmatpush1.msra.mxu0 0.0
      %1787 = vmatprep.subr.mxu0 0.0
      %1788 = vmatpush1.msra.mxu0 0.0
      %1789 = vmatprep.subr.mxu0 0.0
      %1790 = vmatpush1.msra.mxu0 0.0
      %1791 = vmatprep.subr.mxu0 0.0
      %1792 = vmatpush1.msra.mxu0 0.0
      %1793 = vmatprep.subr.mxu0 0.0
      %1794 = vmatpush1.msra.mxu0 0.0
      %1795 = vmatprep.subr.mxu0 0.0
      %1796 = vmatpush1.msra.mxu0 0.0
      %1797 = vmatprep.subr.mxu0 0.0
      %1798 = vmatpush1.msra.mxu0 0.0
      %1799 = vmatprep.subr.mxu0 0.0
      %1800 = vmatpush1.msra.mxu0 0.0
      %1801 = vmatprep.subr.mxu0 0.0
      %1802 = vmatpush1.msra.mxu0 0.0
      %1803 = vmatprep.subr.mxu0 0.0
      %1804 = vmatpush1.msra.mxu0 0.0
      %1805 = vmatprep.mubr.f32.mxu0 0.0
      %1806 = vmatmul.mubr.f32.gmra.mrb[0].mxu0 %v737
      %v1807 = vpop.f32.mrb[0].mxu0
      %v1808 = vadd.f32 0.0, %v1807
      %v1809 = vpop.f32.mrb[0].mxu0
      %1810 = vmatprep.mubr.f32.mxu0 0.0
      %1811 = vmatmul.mubr.f32.gmra.mrb[0].mxu0 %v739
      %v1812 = vpop.f32.mrb[0].mxu0
      %v1813 = vadd.f32 0.0, %v1812
      %v1814 = vpop.f32.mrb[0].mxu0
      %1815 = vmatprep.mubr.f32.mxu0 0.0
      %1816 = vmatmul.mubr.f32.gmra.mrb[0].mxu0 %v741
      %v1817 = vpop.f32.mrb[0].mxu0
      %v1818 = vadd.f32 0.0, %v1817
      %v1819 = vpop.f32.mrb[0].mxu0
      %1820 = vmatprep.mubr.f32.mxu0 0.0
      %1821 = vmatmul.mubr.f32.gmra.mrb[0].mxu0 %v743
      %v1822 = vpop.f32.mrb[0].mxu0
      %v1823 = vadd.f32 0.0, %v1822
      %v1824 = vpop.f32.mrb[0].mxu0
      %1825 = vmatprep.mubr.f32.mxu0 0.0
      %1826 = vmatmul.mubr.f32.gmra.mrb[0].mxu0 %v745
      %v1827 = vpop.f32.mrb[0].mxu0
      %v1828 = vadd.f32 0.0, %v1827
      %v1829 = vpop.f32.mrb[0].mxu0
      %1830 = vmatprep.mubr.f32.mxu0 0.0
      %1831 = vmatmul.mubr.f32.gmra.mrb[0].mxu0 %v747
      %v1832 = vpop.f32.mrb[0].mxu0
      %v1833 = vadd.f32 0.0, %v1832
      %v1834 = vpop.f32.mrb[0].mxu0
      %1835 = vmatprep.mubr.f32.mxu0 0.0
      %1836 = vmatmul.mubr.f32.gmra.mrb[0].mxu0 %v749
      %v1837 = vpop.f32.mrb[0].mxu0
      %v1838 = vadd.f32 0.0, %v1837
      %v1839 = vpop.f32.mrb[0].mxu0
      %1840 = vmatprep.mubr.f32.mxu0 0.0
      %1841 = vmatmul.mubr.f32.gmra.mrb[0].mxu0 %v751
      %v1842 = vpop.f32.mrb[0].mxu0
      %v1843 = vadd.f32 0.0, %v1842
      %v1844 = vpop.f32.mrb[0].mxu0
      %1845 = vmatprep.mubr.f32.mxu0 0.0
      %1846 = vmatmul.mubr.f32.gmra.mrb[0].mxu0 %v753
      %v1847 = vpop.f32.mrb[0].mxu0
      %v1848 = vadd.f32 0.0, %v1847
      %v1849 = vpop.f32.mrb[0].mxu0
      %1850 = vmatprep.mubr.f32.mxu0 0.0
      %1851 = vmatmul.mubr.f32.gmra.mrb[0].mxu0 %v755
      %v1852 = vpop.f32.mrb[0].mxu0
      %v1853 = vadd.f32 0.0, %v1852
      %v1854 = vpop.f32.mrb[0].mxu0
      %1855 = vmatprep.mubr.f32.mxu0 0.0
      %1856 = vmatmul.mubr.f32.gmra.mrb[0].mxu0 %v757
      %v1857 = vpop.f32.mrb[0].mxu0
      %v1858 = vadd.f32 0.0, %v1857
      %v1859 = vpop.f32.mrb[0].mxu0
      %1860 = vmatprep.mubr.f32.mxu0 0.0
      %1861 = vmatmul.mubr.f32.gmra.mrb[0].mxu0 %v759
      %v1862 = vpop.f32.mrb[0].mxu0
      %v1863 = vadd.f32 0.0, %v1862
      %v1864 = vpop.f32.mrb[0].mxu0
      %1865 = vmatprep.mubr.f32.mxu0 0.0
      %1866 = vmatmul.mubr.f32.gmra.mrb[0].mxu0 %v761
      %v1867 = vpop.f32.mrb[0].mxu0
      %v1868 = vadd.f32 0.0, %v1867
      %v1869 = vpop.f32.mrb[0].mxu0
      %1870 = vmatprep.mubr.f32.mxu0 0.0
      %1871 = vmatmul.mubr.f32.gmra.mrb[0].mxu0 %v763
      %v1872 = vpop.f32.mrb[0].mxu0
      %v1873 = vadd.f32 0.0, %v1872
      %v1874 = vpop.f32.mrb[0].mxu0
      %1875 = vmatprep.mubr.f32.mxu0 0.0
      %1876 = vmatmul.mubr.f32.gmra.mrb[0].mxu0 %v765
      %v1877 = vpop.f32.mrb[0].mxu0
      %v1878 = vadd.f32 0.0, %v1877
      %v1879 = vpop.f32.mrb[0].mxu0
      %1880 = vmatprep.mubr.f32.mxu0 0.0
      %1881 = vmatmul.mubr.f32.gmra.mrb[0].mxu0 %v767
      %v1882 = vpop.f32.mrb[0].mxu0
      %v1883 = vadd.f32 0.0, %v1882
      %v1884 = vpop.f32.mrb[0].mxu0
      %1885 = vmatprep.mubr.f32.mxu0 0.0
      %1886 = vmatmul.mubr.f32.gmra.mrb[0].mxu0 %v769
      %v1887 = vpop.f32.mrb[0].mxu0
      %v1888 = vadd.f32 0.0, %v1887
      %v1889 = vpop.f32.mrb[0].mxu0
      %1890 = vmatprep.mubr.f32.mxu0 0.0
      %1891 = vmatmul.mubr.f32.gmra.mrb[0].mxu0 %v771
      %v1892 = vpop.f32.mrb[0].mxu0
      %v1893 = vadd.f32 0.0, %v1892
      %v1894 = vpop.f32.mrb[0].mxu0
      %1895 = vmatprep.mubr.f32.mxu0 0.0
      %1896 = vmatmul.mubr.f32.gmra.mrb[0].mxu0 %v773
      %v1897 = vpop.f32.mrb[0].mxu0
      %v1898 = vadd.f32 0.0, %v1897
      %v1899 = vpop.f32.mrb[0].mxu0
      %1900 = vmatprep.mubr.f32.mxu0 0.0
      %1901 = vmatmul.mubr.f32.gmra.mrb[0].mxu0 %v775
      %v1902 = vpop.f32.mrb[0].mxu0
      %v1903 = vadd.f32 0.0, %v1902
      %v1904 = vpop.f32.mrb[0].mxu0
      %1905 = vmatprep.mubr.f32.mxu0 0.0
      %1906 = vmatmul.mubr.f32.gmra.mrb[0].mxu0 %v777
      %v1907 = vpop.f32.mrb[0].mxu0
      %v1908 = vadd.f32 0.0, %v1907
      %v1909 = vpop.f32.mrb[0].mxu0
      %1910 = vmatprep.mubr.f32.mxu0 0.0
      %1911 = vmatmul.mubr.f32.gmra.mrb[0].mxu0 %v779
      %v1912 = vpop.f32.mrb[0].mxu0
      %v1913 = vadd.f32 0.0, %v1912
      %v1914 = vpop.f32.mrb[0].mxu0
      %1915 = vmatprep.mubr.f32.mxu0 0.0
      %1916 = vmatmul.mubr.f32.gmra.mrb[0].mxu0 %v781
      %v1917 = vpop.f32.mrb[0].mxu0
      %v1918 = vadd.f32 0.0, %v1917
      %v1919 = vpop.f32.mrb[0].mxu0
      %1920 = vmatprep.mubr.f32.mxu0 0.0
      %1921 = vmatmul.mubr.f32.gmra.mrb[0].mxu0 %v783
      %v1922 = vpop.f32.mrb[0].mxu0
      %v1923 = vadd.f32 0.0, %v1922
      %v1924 = vpop.f32.mrb[0].mxu0
      %1925 = vmatprep.mubr.f32.mxu0 0.0
      %1926 = vmatmul.mubr.f32.gmra.mrb[0].mxu0 %v785
      %v1927 = vpop.f32.mrb[0].mxu0
      %v1928 = vadd.f32 0.0, %v1927
      %v1929 = vpop.f32.mrb[0].mxu0
      %1930 = vmatprep.mubr.f32.mxu0 0.0
      %1931 = vmatmul.mubr.f32.gmra.mrb[0].mxu0 %v787
      %v1932 = vpop.f32.mrb[0].mxu0
      %v1933 = vadd.f32 0.0, %v1932
      %v1934 = vpop.f32.mrb[0].mxu0
      %1935 = vmatprep.mubr.f32.mxu0 0.0
      %1936 = vmatmul.mubr.f32.gmra.mrb[0].mxu0 %v789
      %v1937 = vpop.f32.mrb[0].mxu0
      %v1938 = vadd.f32 0.0, %v1937
      %v1939 = vpop.f32.mrb[0].mxu0
      %1940 = vmatprep.mubr.f32.mxu0 0.0
      %1941 = vmatmul.mubr.f32.gmra.mrb[0].mxu0 %v791
      %v1942 = vpop.f32.mrb[0].mxu0
      %v1943 = vadd.f32 0.0, %v1942
      %v1944 = vpop.f32.mrb[0].mxu0
      %1945 = vmatprep.mubr.f32.mxu0 0.0
      %1946 = vmatmul.mubr.f32.gmra.mrb[0].mxu0 %v793
      %v1947 = vpop.f32.mrb[0].mxu0
      %v1948 = vadd.f32 0.0, %v1947
      %v1949 = vpop.f32.mrb[0].mxu0
      %1950 = vmatprep.mubr.f32.mxu0 0.0
      %1951 = vmatmul.mubr.f32.gmra.mrb[0].mxu0 %v795
      %v1952 = vpop.f32.mrb[0].mxu0
      %v1953 = vadd.f32 0.0, %v1952
      %v1954 = vpop.f32.mrb[0].mxu0
      %1955 = vmatprep.mubr.f32.mxu0 0.0
      %1956 = vmatmul.mubr.f32.gmra.mrb[0].mxu0 %v1734
      %v1957 = vpop.f32.mrb[0].mxu0
      %v1958 = vadd.f32 0.0, %v1957
      %v1959 = vpop.f32.mrb[0].mxu0
      %1960 = vmatprep.mubr.f32.mxu0 0.0
      %1961 = vmatmul.mubr.f32.gmra.mrb[0].mxu0 %v1736
      %v1962 = vpop.f32.mrb[0].mxu0
      %v1963 = vadd.f32 0.0, %v1962
      %v1964 = vpop.f32.mrb[0].mxu0
      %1965 = vdwg.mxu0
      %v1966 = vadd.f32 %v1696, %v1808
      %v1967 = vadd.f32 %v1697, %v1813
      %v1968 = vadd.f32 %v1698, %v1818
      %v1969 = vadd.f32 %v1699, %v1823
      %v1970 = vadd.f32 %v1700, %v1828
      %v1971 = vadd.f32 %v1701, %v1833
      %v1972 = vadd.f32 %v1702, %v1838
      %v1973 = vadd.f32 %v1703, %v1843
      %v1974 = vadd.f32 %v1704, %v1848
      %v1975 = vadd.f32 %v1705, %v1853
      %v1976 = vadd.f32 %v1706, %v1858
      %v1977 = vadd.f32 %v1707, %v1863
      %v1978 = vadd.f32 %v1708, %v1868
      %v1979 = vadd.f32 %v1709, %v1873
      %v1980 = vadd.f32 %v1710, %v1878
      %v1981 = vadd.f32 %v1711, %v1883
      %v1982 = vadd.f32 %v1712, %v1888
      %v1983 = vadd.f32 %v1713, %v1893
      %v1984 = vadd.f32 %v1714, %v1898
      %v1985 = vadd.f32 %v1715, %v1903
      %v1986 = vadd.f32 %v1716, %v1908
      %v1987 = vadd.f32 %v1717, %v1913
      %v1988 = vadd.f32 %v1718, %v1918
      %v1989 = vadd.f32 %v1719, %v1923
      %v1990 = vadd.f32 %v1720, %v1928
      %v1991 = vadd.f32 %v1721, %v1933
      %v1992 = vadd.f32 %v1722, %v1938
      %v1993 = vadd.f32 %v1723, %v1943
      %v1994 = vadd.f32 %v1724, %v1948
      %v1995 = vadd.f32 %v1725, %v1953
      %v1996 = vadd.f32 %v1726, %v1958
      %v1997 = vadd.f32 %v1727, %v1963
      %v1998 = vrot.slane %v246, 2
      %v1999 = vrot.slane %v247, 2
      %v2000 = vsel %vm1057, %v1998, %v1999
      %v2001 = vrot.slane %v248, 2
      %v2002 = vsel %vm1057, %v1999, %v2001
      %v2003 = vsel %vm278, %v2000, 0
      %v2005 = vsel %vm278, %v2002, 0
      %v2008 = vsel %vm375, %v267, 0
      %2010 = vmatprep.subr.mxu0 0.0
      %2011 = vmatpush1.msra.mxu0 %v2008
      %2012 = vmatprep.subr.mxu0 0.0
      %2013 = vmatpush1.msra.mxu0 0.0
      %2014 = vmatprep.subr.mxu0 0.0
      %2015 = vmatpush1.msra.mxu0 0.0
      %2016 = vmatprep.subr.mxu0 0.0
      %2017 = vmatpush1.msra.mxu0 0.0
      %2018 = vmatprep.subr.mxu0 0.0
      %2019 = vmatpush1.msra.mxu0 0.0
      %2020 = vmatprep.subr.mxu0 0.0
      %2021 = vmatpush1.msra.mxu0 0.0
      %2022 = vmatprep.subr.mxu0 0.0
      %2023 = vmatpush1.msra.mxu0 0.0
      %2024 = vmatprep.subr.mxu0 0.0
      %2025 = vmatpush1.msra.mxu0 0.0
      %2026 = vmatprep.subr.mxu0 0.0
      %2027 = vmatpush1.msra.mxu0 0.0
      %2028 = vmatprep.subr.mxu0 0.0
      %2029 = vmatpush1.msra.mxu0 0.0
      %2030 = vmatprep.subr.mxu0 0.0
      %2031 = vmatpush1.msra.mxu0 0.0
      %2032 = vmatprep.subr.mxu0 0.0
      %2033 = vmatpush1.msra.mxu0 0.0
      %2034 = vmatprep.subr.mxu0 0.0
      %2035 = vmatpush1.msra.mxu0 0.0
      %2036 = vmatprep.subr.mxu0 0.0
      %2037 = vmatpush1.msra.mxu0 0.0
      %2038 = vmatprep.subr.mxu0 0.0
      %2039 = vmatpush1.msra.mxu0 0.0
      %2040 = vmatprep.subr.mxu0 0.0
      %2041 = vmatpush1.msra.mxu0 0.0
      %2042 = vmatprep.subr.mxu0 0.0
      %2043 = vmatpush1.msra.mxu0 0.0
      %2044 = vmatprep.subr.mxu0 0.0
      %2045 = vmatpush1.msra.mxu0 0.0
      %2046 = vmatprep.subr.mxu0 0.0
      %2047 = vmatpush1.msra.mxu0 0.0
      %2048 = vmatprep.subr.mxu0 0.0
      %2049 = vmatpush1.msra.mxu0 0.0
      %2050 = vmatprep.subr.mxu0 0.0
      %2051 = vmatpush1.msra.mxu0 0.0
      %2052 = vmatprep.subr.mxu0 0.0
      %2053 = vmatpush1.msra.mxu0 0.0
      %2054 = vmatprep.subr.mxu0 0.0
      %2055 = vmatpush1.msra.mxu0 0.0
      %2056 = vmatprep.subr.mxu0 0.0
      %2057 = vmatpush1.msra.mxu0 0.0
      %2058 = vmatprep.subr.mxu0 0.0
      %2059 = vmatpush1.msra.mxu0 0.0
      %2060 = vmatprep.subr.mxu0 0.0
      %2061 = vmatpush1.msra.mxu0 0.0
      %2062 = vmatprep.subr.mxu0 0.0
      %2063 = vmatpush1.msra.mxu0 0.0
      %2064 = vmatprep.subr.mxu0 0.0
      %2065 = vmatpush1.msra.mxu0 0.0
      %2066 = vmatprep.subr.mxu0 0.0
      %2067 = vmatpush1.msra.mxu0 0.0
      %2068 = vmatprep.subr.mxu0 0.0
      %2069 = vmatpush1.msra.mxu0 0.0
      %2070 = vmatprep.subr.mxu0 0.0
      %2071 = vmatpush1.msra.mxu0 0.0
      %2072 = vmatprep.subr.mxu0 0.0
      %2073 = vmatpush1.msra.mxu0 0.0
      %2074 = vmatprep.mubr.f32.mxu0 0.0
      %2075 = vmatmul.mubr.f32.gmra.mrb[0].mxu0 %v1142
      %v2076 = vpop.f32.mrb[0].mxu0
      %v2077 = vadd.f32 0.0, %v2076
      %v2078 = vpop.f32.mrb[0].mxu0
      %2079 = vmatprep.mubr.f32.mxu0 0.0
      %2080 = vmatmul.mubr.f32.gmra.mrb[0].mxu0 %v1144
      %v2081 = vpop.f32.mrb[0].mxu0
      %v2082 = vadd.f32 0.0, %v2081
      %v2083 = vpop.f32.mrb[0].mxu0
      %2084 = vmatprep.mubr.f32.mxu0 0.0
      %2085 = vmatmul.mubr.f32.gmra.mrb[0].mxu0 %v1146
      %v2086 = vpop.f32.mrb[0].mxu0
      %v2087 = vadd.f32 0.0, %v2086
      %v2088 = vpop.f32.mrb[0].mxu0
      %2089 = vmatprep.mubr.f32.mxu0 0.0
      %2090 = vmatmul.mubr.f32.gmra.mrb[0].mxu0 %v1148
      %v2091 = vpop.f32.mrb[0].mxu0
      %v2092 = vadd.f32 0.0, %v2091
      %v2093 = vpop.f32.mrb[0].mxu0
      %2094 = vmatprep.mubr.f32.mxu0 0.0
      %2095 = vmatmul.mubr.f32.gmra.mrb[0].mxu0 %v1150
      %v2096 = vpop.f32.mrb[0].mxu0
      %v2097 = vadd.f32 0.0, %v2096
      %v2098 = vpop.f32.mrb[0].mxu0
      %2099 = vmatprep.mubr.f32.mxu0 0.0
      %2100 = vmatmul.mubr.f32.gmra.mrb[0].mxu0 %v1152
      %v2101 = vpop.f32.mrb[0].mxu0
      %v2102 = vadd.f32 0.0, %v2101
      %v2103 = vpop.f32.mrb[0].mxu0
      %2104 = vmatprep.mubr.f32.mxu0 0.0
      %2105 = vmatmul.mubr.f32.gmra.mrb[0].mxu0 %v1154
      %v2106 = vpop.f32.mrb[0].mxu0
      %v2107 = vadd.f32 0.0, %v2106
      %v2108 = vpop.f32.mrb[0].mxu0
      %2109 = vmatprep.mubr.f32.mxu0 0.0
      %2110 = vmatmul.mubr.f32.gmra.mrb[0].mxu0 %v1156
      %v2111 = vpop.f32.mrb[0].mxu0
      %v2112 = vadd.f32 0.0, %v2111
      %v2113 = vpop.f32.mrb[0].mxu0
      %2114 = vmatprep.mubr.f32.mxu0 0.0
      %2115 = vmatmul.mubr.f32.gmra.mrb[0].mxu0 %v1158
      %v2116 = vpop.f32.mrb[0].mxu0
      %v2117 = vadd.f32 0.0, %v2116
      %v2118 = vpop.f32.mrb[0].mxu0
      %2119 = vmatprep.mubr.f32.mxu0 0.0
      %2120 = vmatmul.mubr.f32.gmra.mrb[0].mxu0 %v1160
      %v2121 = vpop.f32.mrb[0].mxu0
      %v2122 = vadd.f32 0.0, %v2121
      %v2123 = vpop.f32.mrb[0].mxu0
      %2124 = vmatprep.mubr.f32.mxu0 0.0
      %2125 = vmatmul.mubr.f32.gmra.mrb[0].mxu0 %v1162
      %v2126 = vpop.f32.mrb[0].mxu0
      %v2127 = vadd.f32 0.0, %v2126
      %v2128 = vpop.f32.mrb[0].mxu0
      %2129 = vmatprep.mubr.f32.mxu0 0.0
      %2130 = vmatmul.mubr.f32.gmra.mrb[0].mxu0 %v1164
      %v2131 = vpop.f32.mrb[0].mxu0
      %v2132 = vadd.f32 0.0, %v2131
      %v2133 = vpop.f32.mrb[0].mxu0
      %2134 = vmatprep.mubr.f32.mxu0 0.0
      %2135 = vmatmul.mubr.f32.gmra.mrb[0].mxu0 %v1166
      %v2136 = vpop.f32.mrb[0].mxu0
      %v2137 = vadd.f32 0.0, %v2136
      %v2138 = vpop.f32.mrb[0].mxu0
      %2139 = vmatprep.mubr.f32.mxu0 0.0
      %2140 = vmatmul.mubr.f32.gmra.mrb[0].mxu0 %v1168
      %v2141 = vpop.f32.mrb[0].mxu0
      %v2142 = vadd.f32 0.0, %v2141
      %v2143 = vpop.f32.mrb[0].mxu0
      %2144 = vmatprep.mubr.f32.mxu0 0.0
      %2145 = vmatmul.mubr.f32.gmra.mrb[0].mxu0 %v1170
      %v2146 = vpop.f32.mrb[0].mxu0
      %v2147 = vadd.f32 0.0, %v2146
      %v2148 = vpop.f32.mrb[0].mxu0
      %2149 = vmatprep.mubr.f32.mxu0 0.0
      %2150 = vmatmul.mubr.f32.gmra.mrb[0].mxu0 %v1172
      %v2151 = vpop.f32.mrb[0].mxu0
      %v2152 = vadd.f32 0.0, %v2151
      %v2153 = vpop.f32.mrb[0].mxu0
      %2154 = vmatprep.mubr.f32.mxu0 0.0
      %2155 = vmatmul.mubr.f32.gmra.mrb[0].mxu0 %v1174
      %v2156 = vpop.f32.mrb[0].mxu0
      %v2157 = vadd.f32 0.0, %v2156
      %v2158 = vpop.f32.mrb[0].mxu0
      %2159 = vmatprep.mubr.f32.mxu0 0.0
      %2160 = vmatmul.mubr.f32.gmra.mrb[0].mxu0 %v1176
      %v2161 = vpop.f32.mrb[0].mxu0
      %v2162 = vadd.f32 0.0, %v2161
      %v2163 = vpop.f32.mrb[0].mxu0
      %2164 = vmatprep.mubr.f32.mxu0 0.0
      %2165 = vmatmul.mubr.f32.gmra.mrb[0].mxu0 %v1178
      %v2166 = vpop.f32.mrb[0].mxu0
      %v2167 = vadd.f32 0.0, %v2166
      %v2168 = vpop.f32.mrb[0].mxu0
      %2169 = vmatprep.mubr.f32.mxu0 0.0
      %2170 = vmatmul.mubr.f32.gmra.mrb[0].mxu0 %v1180
      %v2171 = vpop.f32.mrb[0].mxu0
      %v2172 = vadd.f32 0.0, %v2171
      %v2173 = vpop.f32.mrb[0].mxu0
      %2174 = vmatprep.mubr.f32.mxu0 0.0
      %2175 = vmatmul.mubr.f32.gmra.mrb[0].mxu0 %v1182
      %v2176 = vpop.f32.mrb[0].mxu0
      %v2177 = vadd.f32 0.0, %v2176
      %v2178 = vpop.f32.mrb[0].mxu0
      %2179 = vmatprep.mubr.f32.mxu0 0.0
      %2180 = vmatmul.mubr.f32.gmra.mrb[0].mxu0 %v1184
      %v2181 = vpop.f32.mrb[0].mxu0
      %v2182 = vadd.f32 0.0, %v2181
      %v2183 = vpop.f32.mrb[0].mxu0
      %2184 = vmatprep.mubr.f32.mxu0 0.0
      %2185 = vmatmul.mubr.f32.gmra.mrb[0].mxu0 %v1186
      %v2186 = vpop.f32.mrb[0].mxu0
      %v2187 = vadd.f32 0.0, %v2186
      %v2188 = vpop.f32.mrb[0].mxu0
      %2189 = vmatprep.mubr.f32.mxu0 0.0
      %2190 = vmatmul.mubr.f32.gmra.mrb[0].mxu0 %v1188
      %v2191 = vpop.f32.mrb[0].mxu0
      %v2192 = vadd.f32 0.0, %v2191
      %v2193 = vpop.f32.mrb[0].mxu0
      %2194 = vmatprep.mubr.f32.mxu0 0.0
      %2195 = vmatmul.mubr.f32.gmra.mrb[0].mxu0 %v1190
      %v2196 = vpop.f32.mrb[0].mxu0
      %v2197 = vadd.f32 0.0, %v2196
      %v2198 = vpop.f32.mrb[0].mxu0
      %2199 = vmatprep.mubr.f32.mxu0 0.0
      %2200 = vmatmul.mubr.f32.gmra.mrb[0].mxu0 %v1192
      %v2201 = vpop.f32.mrb[0].mxu0
      %v2202 = vadd.f32 0.0, %v2201
      %v2203 = vpop.f32.mrb[0].mxu0
      %2204 = vmatprep.mubr.f32.mxu0 0.0
      %2205 = vmatmul.mubr.f32.gmra.mrb[0].mxu0 %v1194
      %v2206 = vpop.f32.mrb[0].mxu0
      %v2207 = vadd.f32 0.0, %v2206
      %v2208 = vpop.f32.mrb[0].mxu0
      %2209 = vmatprep.mubr.f32.mxu0 0.0
      %2210 = vmatmul.mubr.f32.gmra.mrb[0].mxu0 %v1196
      %v2211 = vpop.f32.mrb[0].mxu0
      %v2212 = vadd.f32 0.0, %v2211
      %v2213 = vpop.f32.mrb[0].mxu0
      %2214 = vmatprep.mubr.f32.mxu0 0.0
      %2215 = vmatmul.mubr.f32.gmra.mrb[0].mxu0 %v1198
      %v2216 = vpop.f32.mrb[0].mxu0
      %v2217 = vadd.f32 0.0, %v2216
      %v2218 = vpop.f32.mrb[0].mxu0
      %2219 = vmatprep.mubr.f32.mxu0 0.0
      %2220 = vmatmul.mubr.f32.gmra.mrb[0].mxu0 %v1200
      %v2221 = vpop.f32.mrb[0].mxu0
      %v2222 = vadd.f32 0.0, %v2221
      %v2223 = vpop.f32.mrb[0].mxu0
      %2224 = vmatprep.mubr.f32.mxu0 0.0
      %2225 = vmatmul.mubr.f32.gmra.mrb[0].mxu0 %v2003
      %v2226 = vpop.f32.mrb[0].mxu0
      %v2227 = vadd.f32 0.0, %v2226
      %v2228 = vpop.f32.mrb[0].mxu0
      %2229 = vmatprep.mubr.f32.mxu0 0.0
      %2230 = vmatmul.mubr.f32.gmra.mrb[0].mxu0 %v2005
      %v2231 = vpop.f32.mrb[0].mxu0
      %v2232 = vadd.f32 0.0, %v2231
      %v2233 = vpop.f32.mrb[0].mxu0
      %2234 = vdwg.mxu0
      %v2235 = vadd.f32 %v1966, %v2077
      %v2236 = vadd.f32 %v1967, %v2082
      %v2237 = vadd.f32 %v1968, %v2087
      %v2238 = vadd.f32 %v1969, %v2092
      %v2239 = vadd.f32 %v1970, %v2097
      %v2240 = vadd.f32 %v1971, %v2102
      %v2241 = vadd.f32 %v1972, %v2107
      %v2242 = vadd.f32 %v1973, %v2112
      %v2243 = vadd.f32 %v1974, %v2117
      %v2244 = vadd.f32 %v1975, %v2122
      %v2245 = vadd.f32 %v1976, %v2127
      %v2246 = vadd.f32 %v1977, %v2132
      %v2247 = vadd.f32 %v1978, %v2137
      %v2248 = vadd.f32 %v1979, %v2142
      %v2249 = vadd.f32 %v1980, %v2147
      %v2250 = vadd.f32 %v1981, %v2152
      %v2251 = vadd.f32 %v1982, %v2157
      %v2252 = vadd.f32 %v1983, %v2162
      %v2253 = vadd.f32 %v1984, %v2167
      %v2254 = vadd.f32 %v1985, %v2172
      %v2255 = vadd.f32 %v1986, %v2177
      %v2256 = vadd.f32 %v1987, %v2182
      %v2257 = vadd.f32 %v1988, %v2187
      %v2258 = vadd.f32 %v1989, %v2192
      %v2259 = vadd.f32 %v1990, %v2197
      %v2260 = vadd.f32 %v1991, %v2202
      %v2261 = vadd.f32 %v1992, %v2207
      %v2262 = vadd.f32 %v1993, %v2212
      %v2263 = vadd.f32 %v1994, %v2217
      %v2264 = vadd.f32 %v1995, %v2222
      %v2265 = vadd.f32 %v1996, %v2227
      %v2266 = vadd.f32 %v1997, %v2232
      %v2268 = vsel %vm278, %v249, 0
      %v2271 = vsel %vm278, %v250, 0
      %v2274 = vsel %vm375, %v268, 0
      %2276 = vmatprep.subr.mxu0 0.0
      %2277 = vmatpush1.msra.mxu0 %v2274
      %2278 = vmatprep.subr.mxu0 0.0
      %2279 = vmatpush1.msra.mxu0 0.0
      %2280 = vmatprep.subr.mxu0 0.0
      %2281 = vmatpush1.msra.mxu0 0.0
      %2282 = vmatprep.subr.mxu0 0.0
      %2283 = vmatpush1.msra.mxu0 0.0
      %2284 = vmatprep.subr.mxu0 0.0
      %2285 = vmatpush1.msra.mxu0 0.0
      %2286 = vmatprep.subr.mxu0 0.0
      %2287 = vmatpush1.msra.mxu0 0.0
      %2288 = vmatprep.subr.mxu0 0.0
      %2289 = vmatpush1.msra.mxu0 0.0
      %2290 = vmatprep.subr.mxu0 0.0
      %2291 = vmatpush1.msra.mxu0 0.0
      %2292 = vmatprep.subr.mxu0 0.0
      %2293 = vmatpush1.msra.mxu0 0.0
      %2294 = vmatprep.subr.mxu0 0.0
      %2295 = vmatpush1.msra.mxu0 0.0
      %2296 = vmatprep.subr.mxu0 0.0
      %2297 = vmatpush1.msra.mxu0 0.0
      %2298 = vmatprep.subr.mxu0 0.0
      %2299 = vmatpush1.msra.mxu0 0.0
      %2300 = vmatprep.subr.mxu0 0.0
      %2301 = vmatpush1.msra.mxu0 0.0
      %2302 = vmatprep.subr.mxu0 0.0
      %2303 = vmatpush1.msra.mxu0 0.0
      %2304 = vmatprep.subr.mxu0 0.0
      %2305 = vmatpush1.msra.mxu0 0.0
      %2306 = vmatprep.subr.mxu0 0.0
      %2307 = vmatpush1.msra.mxu0 0.0
      %2308 = vmatprep.subr.mxu0 0.0
      %2309 = vmatpush1.msra.mxu0 0.0
      %2310 = vmatprep.subr.mxu0 0.0
      %2311 = vmatpush1.msra.mxu0 0.0
      %2312 = vmatprep.subr.mxu0 0.0
      %2313 = vmatpush1.msra.mxu0 0.0
      %2314 = vmatprep.subr.mxu0 0.0
      %2315 = vmatpush1.msra.mxu0 0.0
      %2316 = vmatprep.subr.mxu0 0.0
      %2317 = vmatpush1.msra.mxu0 0.0
      %2318 = vmatprep.subr.mxu0 0.0
      %2319 = vmatpush1.msra.mxu0 0.0
      %2320 = vmatprep.subr.mxu0 0.0
      %2321 = vmatpush1.msra.mxu0 0.0
      %2322 = vmatprep.subr.mxu0 0.0
      %2323 = vmatpush1.msra.mxu0 0.0
      %2324 = vmatprep.subr.mxu0 0.0
      %2325 = vmatpush1.msra.mxu0 0.0
      %2326 = vmatprep.subr.mxu0 0.0
      %2327 = vmatpush1.msra.mxu0 0.0
      %2328 = vmatprep.subr.mxu0 0.0
      %2329 = vmatpush1.msra.mxu0 0.0
      %2330 = vmatprep.subr.mxu0 0.0
      %2331 = vmatpush1.msra.mxu0 0.0
      %2332 = vmatprep.subr.mxu0 0.0
      %2333 = vmatpush1.msra.mxu0 0.0
      %2334 = vmatprep.subr.mxu0 0.0
      %2335 = vmatpush1.msra.mxu0 0.0
      %2336 = vmatprep.subr.mxu0 0.0
      %2337 = vmatpush1.msra.mxu0 0.0
      %2338 = vmatprep.subr.mxu0 0.0
      %2339 = vmatpush1.msra.mxu0 0.0
      %2340 = vmatprep.mubr.f32.mxu0 0.0
      %2341 = vmatmul.mubr.f32.gmra.mrb[0].mxu0 %v292
      %v2342 = vpop.f32.mrb[0].mxu0
      %v2343 = vadd.f32 0.0, %v2342
      %v2344 = vpop.f32.mrb[0].mxu0
      %2345 = vmatprep.mubr.f32.mxu0 0.0
      %2346 = vmatmul.mubr.f32.gmra.mrb[0].mxu0 %v295
      %v2347 = vpop.f32.mrb[0].mxu0
      %v2348 = vadd.f32 0.0, %v2347
      %v2349 = vpop.f32.mrb[0].mxu0
      %2350 = vmatprep.mubr.f32.mxu0 0.0
      %2351 = vmatmul.mubr.f32.gmra.mrb[0].mxu0 %v298
      %v2352 = vpop.f32.mrb[0].mxu0
      %v2353 = vadd.f32 0.0, %v2352
      %v2354 = vpop.f32.mrb[0].mxu0
      %2355 = vmatprep.mubr.f32.mxu0 0.0
      %2356 = vmatmul.mubr.f32.gmra.mrb[0].mxu0 %v301
      %v2357 = vpop.f32.mrb[0].mxu0
      %v2358 = vadd.f32 0.0, %v2357
      %v2359 = vpop.f32.mrb[0].mxu0
      %2360 = vmatprep.mubr.f32.mxu0 0.0
      %2361 = vmatmul.mubr.f32.gmra.mrb[0].mxu0 %v304
      %v2362 = vpop.f32.mrb[0].mxu0
      %v2363 = vadd.f32 0.0, %v2362
      %v2364 = vpop.f32.mrb[0].mxu0
      %2365 = vmatprep.mubr.f32.mxu0 0.0
      %2366 = vmatmul.mubr.f32.gmra.mrb[0].mxu0 %v307
      %v2367 = vpop.f32.mrb[0].mxu0
      %v2368 = vadd.f32 0.0, %v2367
      %v2369 = vpop.f32.mrb[0].mxu0
      %2370 = vmatprep.mubr.f32.mxu0 0.0
      %2371 = vmatmul.mubr.f32.gmra.mrb[0].mxu0 %v310
      %v2372 = vpop.f32.mrb[0].mxu0
      %v2373 = vadd.f32 0.0, %v2372
      %v2374 = vpop.f32.mrb[0].mxu0
      %2375 = vmatprep.mubr.f32.mxu0 0.0
      %2376 = vmatmul.mubr.f32.gmra.mrb[0].mxu0 %v313
      %v2377 = vpop.f32.mrb[0].mxu0
      %v2378 = vadd.f32 0.0, %v2377
      %v2379 = vpop.f32.mrb[0].mxu0
      %2380 = vmatprep.mubr.f32.mxu0 0.0
      %2381 = vmatmul.mubr.f32.gmra.mrb[0].mxu0 %v316
      %v2382 = vpop.f32.mrb[0].mxu0
      %v2383 = vadd.f32 0.0, %v2382
      %v2384 = vpop.f32.mrb[0].mxu0
      %2385 = vmatprep.mubr.f32.mxu0 0.0
      %2386 = vmatmul.mubr.f32.gmra.mrb[0].mxu0 %v319
      %v2387 = vpop.f32.mrb[0].mxu0
      %v2388 = vadd.f32 0.0, %v2387
      %v2389 = vpop.f32.mrb[0].mxu0
      %2390 = vmatprep.mubr.f32.mxu0 0.0
      %2391 = vmatmul.mubr.f32.gmra.mrb[0].mxu0 %v322
      %v2392 = vpop.f32.mrb[0].mxu0
      %v2393 = vadd.f32 0.0, %v2392
      %v2394 = vpop.f32.mrb[0].mxu0
      %2395 = vmatprep.mubr.f32.mxu0 0.0
      %2396 = vmatmul.mubr.f32.gmra.mrb[0].mxu0 %v325
      %v2397 = vpop.f32.mrb[0].mxu0
      %v2398 = vadd.f32 0.0, %v2397
      %v2399 = vpop.f32.mrb[0].mxu0
      %2400 = vmatprep.mubr.f32.mxu0 0.0
      %2401 = vmatmul.mubr.f32.gmra.mrb[0].mxu0 %v328
      %v2402 = vpop.f32.mrb[0].mxu0
      %v2403 = vadd.f32 0.0, %v2402
      %v2404 = vpop.f32.mrb[0].mxu0
      %2405 = vmatprep.mubr.f32.mxu0 0.0
      %2406 = vmatmul.mubr.f32.gmra.mrb[0].mxu0 %v331
      %v2407 = vpop.f32.mrb[0].mxu0
      %v2408 = vadd.f32 0.0, %v2407
      %v2409 = vpop.f32.mrb[0].mxu0
      %2410 = vmatprep.mubr.f32.mxu0 0.0
      %2411 = vmatmul.mubr.f32.gmra.mrb[0].mxu0 %v334
      %v2412 = vpop.f32.mrb[0].mxu0
      %v2413 = vadd.f32 0.0, %v2412
      %v2414 = vpop.f32.mrb[0].mxu0
      %2415 = vmatprep.mubr.f32.mxu0 0.0
      %2416 = vmatmul.mubr.f32.gmra.mrb[0].mxu0 %v337
      %v2417 = vpop.f32.mrb[0].mxu0
      %v2418 = vadd.f32 0.0, %v2417
      %v2419 = vpop.f32.mrb[0].mxu0
      %2420 = vmatprep.mubr.f32.mxu0 0.0
      %2421 = vmatmul.mubr.f32.gmra.mrb[0].mxu0 %v340
      %v2422 = vpop.f32.mrb[0].mxu0
      %v2423 = vadd.f32 0.0, %v2422
      %v2424 = vpop.f32.mrb[0].mxu0
      %2425 = vmatprep.mubr.f32.mxu0 0.0
      %2426 = vmatmul.mubr.f32.gmra.mrb[0].mxu0 %v343
      %v2427 = vpop.f32.mrb[0].mxu0
      %v2428 = vadd.f32 0.0, %v2427
      %v2429 = vpop.f32.mrb[0].mxu0
      %2430 = vmatprep.mubr.f32.mxu0 0.0
      %2431 = vmatmul.mubr.f32.gmra.mrb[0].mxu0 %v346
      %v2432 = vpop.f32.mrb[0].mxu0
      %v2433 = vadd.f32 0.0, %v2432
      %v2434 = vpop.f32.mrb[0].mxu0
      %2435 = vmatprep.mubr.f32.mxu0 0.0
      %2436 = vmatmul.mubr.f32.gmra.mrb[0].mxu0 %v349
      %v2437 = vpop.f32.mrb[0].mxu0
      %v2438 = vadd.f32 0.0, %v2437
      %v2439 = vpop.f32.mrb[0].mxu0
      %2440 = vmatprep.mubr.f32.mxu0 0.0
      %2441 = vmatmul.mubr.f32.gmra.mrb[0].mxu0 %v352
      %v2442 = vpop.f32.mrb[0].mxu0
      %v2443 = vadd.f32 0.0, %v2442
      %v2444 = vpop.f32.mrb[0].mxu0
      %2445 = vmatprep.mubr.f32.mxu0 0.0
      %2446 = vmatmul.mubr.f32.gmra.mrb[0].mxu0 %v355
      %v2447 = vpop.f32.mrb[0].mxu0
      %v2448 = vadd.f32 0.0, %v2447
      %v2449 = vpop.f32.mrb[0].mxu0
      %2450 = vmatprep.mubr.f32.mxu0 0.0
      %2451 = vmatmul.mubr.f32.gmra.mrb[0].mxu0 %v358
      %v2452 = vpop.f32.mrb[0].mxu0
      %v2453 = vadd.f32 0.0, %v2452
      %v2454 = vpop.f32.mrb[0].mxu0
      %2455 = vmatprep.mubr.f32.mxu0 0.0
      %2456 = vmatmul.mubr.f32.gmra.mrb[0].mxu0 %v361
      %v2457 = vpop.f32.mrb[0].mxu0
      %v2458 = vadd.f32 0.0, %v2457
      %v2459 = vpop.f32.mrb[0].mxu0
      %2460 = vmatprep.mubr.f32.mxu0 0.0
      %2461 = vmatmul.mubr.f32.gmra.mrb[0].mxu0 %v364
      %v2462 = vpop.f32.mrb[0].mxu0
      %v2463 = vadd.f32 0.0, %v2462
      %v2464 = vpop.f32.mrb[0].mxu0
      %2465 = vmatprep.mubr.f32.mxu0 0.0
      %2466 = vmatmul.mubr.f32.gmra.mrb[0].mxu0 %v367
      %v2467 = vpop.f32.mrb[0].mxu0
      %v2468 = vadd.f32 0.0, %v2467
      %v2469 = vpop.f32.mrb[0].mxu0
      %2470 = vmatprep.mubr.f32.mxu0 0.0
      %2471 = vmatmul.mubr.f32.gmra.mrb[0].mxu0 %v370
      %v2472 = vpop.f32.mrb[0].mxu0
      %v2473 = vadd.f32 0.0, %v2472
      %v2474 = vpop.f32.mrb[0].mxu0
      %2475 = vmatprep.mubr.f32.mxu0 0.0
      %2476 = vmatmul.mubr.f32.gmra.mrb[0].mxu0 %v373
      %v2477 = vpop.f32.mrb[0].mxu0
      %v2478 = vadd.f32 0.0, %v2477
      %v2479 = vpop.f32.mrb[0].mxu0
      %2480 = vmatprep.mubr.f32.mxu0 0.0
      %2481 = vmatmul.mubr.f32.gmra.mrb[0].mxu0 %v1463
      %v2482 = vpop.f32.mrb[0].mxu0
      %v2483 = vadd.f32 0.0, %v2482
      %v2484 = vpop.f32.mrb[0].mxu0
      %2485 = vmatprep.mubr.f32.mxu0 0.0
      %2486 = vmatmul.mubr.f32.gmra.mrb[0].mxu0 %v1466
      %v2487 = vpop.f32.mrb[0].mxu0
      %v2488 = vadd.f32 0.0, %v2487
      %v2489 = vpop.f32.mrb[0].mxu0
      %2490 = vmatprep.mubr.f32.mxu0 0.0
      %2491 = vmatmul.mubr.f32.gmra.mrb[0].mxu0 %v2268
      %v2492 = vpop.f32.mrb[0].mxu0
      %v2493 = vadd.f32 0.0, %v2492
      %v2494 = vpop.f32.mrb[0].mxu0
      %2495 = vmatprep.mubr.f32.mxu0 0.0
      %2496 = vmatmul.mubr.f32.gmra.mrb[0].mxu0 %v2271
      %v2497 = vpop.f32.mrb[0].mxu0
      %v2498 = vadd.f32 0.0, %v2497
      %v2499 = vpop.f32.mrb[0].mxu0
      %2500 = vdwg.mxu0
      %v2501 = vadd.f32 %v2235, %v2343
      %v2502 = vadd.f32 %v2236, %v2348
      %v2503 = vadd.f32 %v2237, %v2353
      %v2504 = vadd.f32 %v2238, %v2358
      %v2505 = vadd.f32 %v2239, %v2363
      %v2506 = vadd.f32 %v2240, %v2368
      %v2507 = vadd.f32 %v2241, %v2373
      %v2508 = vadd.f32 %v2242, %v2378
      %v2509 = vadd.f32 %v2243, %v2383
      %v2510 = vadd.f32 %v2244, %v2388
      %v2511 = vadd.f32 %v2245, %v2393
      %v2512 = vadd.f32 %v2246, %v2398
      %v2513 = vadd.f32 %v2247, %v2403
      %v2514 = vadd.f32 %v2248, %v2408
      %v2515 = vadd.f32 %v2249, %v2413
      %v2516 = vadd.f32 %v2250, %v2418
      %v2517 = vadd.f32 %v2251, %v2423
      %v2518 = vadd.f32 %v2252, %v2428
      %v2519 = vadd.f32 %v2253, %v2433
      %v2520 = vadd.f32 %v2254, %v2438
      %v2521 = vadd.f32 %v2255, %v2443
      %v2522 = vadd.f32 %v2256, %v2448
      %v2523 = vadd.f32 %v2257, %v2453
      %v2524 = vadd.f32 %v2258, %v2458
      %v2525 = vadd.f32 %v2259, %v2463
      %v2526 = vadd.f32 %v2260, %v2468
      %v2527 = vadd.f32 %v2261, %v2473
      %v2528 = vadd.f32 %v2262, %v2478
      %v2529 = vadd.f32 %v2263, %v2483
      %v2530 = vadd.f32 %v2264, %v2488
      %v2531 = vadd.f32 %v2265, %v2493
      %v2532 = vadd.f32 %v2266, %v2498
      %v2534 = vrot.slane %v249, 1
      %v2535 = vrot.slane %v250, 1
      %v2536 = vsel %vm652, %v2534, %v2535
      %v2537 = vrot.slane %v251, 1
      %v2538 = vsel %vm652, %v2535, %v2537
      %v2539 = vsel %vm278, %v2536, 0
      %v2541 = vsel %vm278, %v2538, 0
      %v2544 = vsel %vm375, %v269, 0
      %2546 = vmatprep.subr.mxu0 0.0
      %2547 = vmatpush1.msra.mxu0 %v2544
      %2548 = vmatprep.subr.mxu0 0.0
      %2549 = vmatpush1.msra.mxu0 0.0
      %2550 = vmatprep.subr.mxu0 0.0
      %2551 = vmatpush1.msra.mxu0 0.0
      %2552 = vmatprep.subr.mxu0 0.0
      %2553 = vmatpush1.msra.mxu0 0.0
      %2554 = vmatprep.subr.mxu0 0.0
      %2555 = vmatpush1.msra.mxu0 0.0
      %2556 = vmatprep.subr.mxu0 0.0
      %2557 = vmatpush1.msra.mxu0 0.0
      %2558 = vmatprep.subr.mxu0 0.0
      %2559 = vmatpush1.msra.mxu0 0.0
      %2560 = vmatprep.subr.mxu0 0.0
      %2561 = vmatpush1.msra.mxu0 0.0
      %2562 = vmatprep.subr.mxu0 0.0
      %2563 = vmatpush1.msra.mxu0 0.0
      %2564 = vmatprep.subr.mxu0 0.0
      %2565 = vmatpush1.msra.mxu0 0.0
      %2566 = vmatprep.subr.mxu0 0.0
      %2567 = vmatpush1.msra.mxu0 0.0
      %2568 = vmatprep.subr.mxu0 0.0
      %2569 = vmatpush1.msra.mxu0 0.0
      %2570 = vmatprep.subr.mxu0 0.0
      %2571 = vmatpush1.msra.mxu0 0.0
      %2572 = vmatprep.subr.mxu0 0.0
      %2573 = vmatpush1.msra.mxu0 0.0
      %2574 = vmatprep.subr.mxu0 0.0
      %2575 = vmatpush1.msra.mxu0 0.0
      %2576 = vmatprep.subr.mxu0 0.0
      %2577 = vmatpush1.msra.mxu0 0.0
      %2578 = vmatprep.subr.mxu0 0.0
      %2579 = vmatpush1.msra.mxu0 0.0
      %2580 = vmatprep.subr.mxu0 0.0
      %2581 = vmatpush1.msra.mxu0 0.0
      %2582 = vmatprep.subr.mxu0 0.0
      %2583 = vmatpush1.msra.mxu0 0.0
      %2584 = vmatprep.subr.mxu0 0.0
      %2585 = vmatpush1.msra.mxu0 0.0
      %2586 = vmatprep.subr.mxu0 0.0
      %2587 = vmatpush1.msra.mxu0 0.0
      %2588 = vmatprep.subr.mxu0 0.0
      %2589 = vmatpush1.msra.mxu0 0.0
      %2590 = vmatprep.subr.mxu0 0.0
      %2591 = vmatpush1.msra.mxu0 0.0
      %2592 = vmatprep.subr.mxu0 0.0
      %2593 = vmatpush1.msra.mxu0 0.0
      %2594 = vmatprep.subr.mxu0 0.0
      %2595 = vmatpush1.msra.mxu0 0.0
      %2596 = vmatprep.subr.mxu0 0.0
      %2597 = vmatpush1.msra.mxu0 0.0
      %2598 = vmatprep.subr.mxu0 0.0
      %2599 = vmatpush1.msra.mxu0 0.0
      %2600 = vmatprep.subr.mxu0 0.0
      %2601 = vmatpush1.msra.mxu0 0.0
      %2602 = vmatprep.subr.mxu0 0.0
      %2603 = vmatpush1.msra.mxu0 0.0
      %2604 = vmatprep.subr.mxu0 0.0
      %2605 = vmatpush1.msra.mxu0 0.0
      %2606 = vmatprep.subr.mxu0 0.0
      %2607 = vmatpush1.msra.mxu0 0.0
      %2608 = vmatprep.subr.mxu0 0.0
      %2609 = vmatpush1.msra.mxu0 0.0
      %2610 = vmatprep.mubr.f32.mxu0 0.0
      %2611 = vmatmul.mubr.f32.gmra.mrb[0].mxu0 %v741
      %v2612 = vpop.f32.mrb[0].mxu0
      %v2613 = vadd.f32 0.0, %v2612
      %v2614 = vpop.f32.mrb[0].mxu0
      %2615 = vmatprep.mubr.f32.mxu0 0.0
      %2616 = vmatmul.mubr.f32.gmra.mrb[0].mxu0 %v743
      %v2617 = vpop.f32.mrb[0].mxu0
      %v2618 = vadd.f32 0.0, %v2617
      %v2619 = vpop.f32.mrb[0].mxu0
      %2620 = vmatprep.mubr.f32.mxu0 0.0
      %2621 = vmatmul.mubr.f32.gmra.mrb[0].mxu0 %v745
      %v2622 = vpop.f32.mrb[0].mxu0
      %v2623 = vadd.f32 0.0, %v2622
      %v2624 = vpop.f32.mrb[0].mxu0
      %2625 = vmatprep.mubr.f32.mxu0 0.0
      %2626 = vmatmul.mubr.f32.gmra.mrb[0].mxu0 %v747
      %v2627 = vpop.f32.mrb[0].mxu0
      %v2628 = vadd.f32 0.0, %v2627
      %v2629 = vpop.f32.mrb[0].mxu0
      %2630 = vmatprep.mubr.f32.mxu0 0.0
      %2631 = vmatmul.mubr.f32.gmra.mrb[0].mxu0 %v749
      %v2632 = vpop.f32.mrb[0].mxu0
      %v2633 = vadd.f32 0.0, %v2632
      %v2634 = vpop.f32.mrb[0].mxu0
      %2635 = vmatprep.mubr.f32.mxu0 0.0
      %2636 = vmatmul.mubr.f32.gmra.mrb[0].mxu0 %v751
      %v2637 = vpop.f32.mrb[0].mxu0
      %v2638 = vadd.f32 0.0, %v2637
      %v2639 = vpop.f32.mrb[0].mxu0
      %2640 = vmatprep.mubr.f32.mxu0 0.0
      %2641 = vmatmul.mubr.f32.gmra.mrb[0].mxu0 %v753
      %v2642 = vpop.f32.mrb[0].mxu0
      %v2643 = vadd.f32 0.0, %v2642
      %v2644 = vpop.f32.mrb[0].mxu0
      %2645 = vmatprep.mubr.f32.mxu0 0.0
      %2646 = vmatmul.mubr.f32.gmra.mrb[0].mxu0 %v755
      %v2647 = vpop.f32.mrb[0].mxu0
      %v2648 = vadd.f32 0.0, %v2647
      %v2649 = vpop.f32.mrb[0].mxu0
      %2650 = vmatprep.mubr.f32.mxu0 0.0
      %2651 = vmatmul.mubr.f32.gmra.mrb[0].mxu0 %v757
      %v2652 = vpop.f32.mrb[0].mxu0
      %v2653 = vadd.f32 0.0, %v2652
      %v2654 = vpop.f32.mrb[0].mxu0
      %2655 = vmatprep.mubr.f32.mxu0 0.0
      %2656 = vmatmul.mubr.f32.gmra.mrb[0].mxu0 %v759
      %v2657 = vpop.f32.mrb[0].mxu0
      %v2658 = vadd.f32 0.0, %v2657
      %v2659 = vpop.f32.mrb[0].mxu0
      %2660 = vmatprep.mubr.f32.mxu0 0.0
      %2661 = vmatmul.mubr.f32.gmra.mrb[0].mxu0 %v761
      %v2662 = vpop.f32.mrb[0].mxu0
      %v2663 = vadd.f32 0.0, %v2662
      %v2664 = vpop.f32.mrb[0].mxu0
      %2665 = vmatprep.mubr.f32.mxu0 0.0
      %2666 = vmatmul.mubr.f32.gmra.mrb[0].mxu0 %v763
      %v2667 = vpop.f32.mrb[0].mxu0
      %v2668 = vadd.f32 0.0, %v2667
      %v2669 = vpop.f32.mrb[0].mxu0
      %2670 = vmatprep.mubr.f32.mxu0 0.0
      %2671 = vmatmul.mubr.f32.gmra.mrb[0].mxu0 %v765
      %v2672 = vpop.f32.mrb[0].mxu0
      %v2673 = vadd.f32 0.0, %v2672
      %v2674 = vpop.f32.mrb[0].mxu0
      %2675 = vmatprep.mubr.f32.mxu0 0.0
      %2676 = vmatmul.mubr.f32.gmra.mrb[0].mxu0 %v767
      %v2677 = vpop.f32.mrb[0].mxu0
      %v2678 = vadd.f32 0.0, %v2677
      %v2679 = vpop.f32.mrb[0].mxu0
      %2680 = vmatprep.mubr.f32.mxu0 0.0
      %2681 = vmatmul.mubr.f32.gmra.mrb[0].mxu0 %v769
      %v2682 = vpop.f32.mrb[0].mxu0
      %v2683 = vadd.f32 0.0, %v2682
      %v2684 = vpop.f32.mrb[0].mxu0
      %2685 = vmatprep.mubr.f32.mxu0 0.0
      %2686 = vmatmul.mubr.f32.gmra.mrb[0].mxu0 %v771
      %v2687 = vpop.f32.mrb[0].mxu0
      %v2688 = vadd.f32 0.0, %v2687
      %v2689 = vpop.f32.mrb[0].mxu0
      %2690 = vmatprep.mubr.f32.mxu0 0.0
      %2691 = vmatmul.mubr.f32.gmra.mrb[0].mxu0 %v773
      %v2692 = vpop.f32.mrb[0].mxu0
      %v2693 = vadd.f32 0.0, %v2692
      %v2694 = vpop.f32.mrb[0].mxu0
      %2695 = vmatprep.mubr.f32.mxu0 0.0
      %2696 = vmatmul.mubr.f32.gmra.mrb[0].mxu0 %v775
      %v2697 = vpop.f32.mrb[0].mxu0
      %v2698 = vadd.f32 0.0, %v2697
      %v2699 = vpop.f32.mrb[0].mxu0
      %2700 = vmatprep.mubr.f32.mxu0 0.0
      %2701 = vmatmul.mubr.f32.gmra.mrb[0].mxu0 %v777
      %v2702 = vpop.f32.mrb[0].mxu0
      %v2703 = vadd.f32 0.0, %v2702
      %v2704 = vpop.f32.mrb[0].mxu0
      %2705 = vmatprep.mubr.f32.mxu0 0.0
      %2706 = vmatmul.mubr.f32.gmra.mrb[0].mxu0 %v779
      %v2707 = vpop.f32.mrb[0].mxu0
      %v2708 = vadd.f32 0.0, %v2707
      %v2709 = vpop.f32.mrb[0].mxu0
      %2710 = vmatprep.mubr.f32.mxu0 0.0
      %2711 = vmatmul.mubr.f32.gmra.mrb[0].mxu0 %v781
      %v2712 = vpop.f32.mrb[0].mxu0
      %v2713 = vadd.f32 0.0, %v2712
      %v2714 = vpop.f32.mrb[0].mxu0
      %2715 = vmatprep.mubr.f32.mxu0 0.0
      %2716 = vmatmul.mubr.f32.gmra.mrb[0].mxu0 %v783
      %v2717 = vpop.f32.mrb[0].mxu0
      %v2718 = vadd.f32 0.0, %v2717
      %v2719 = vpop.f32.mrb[0].mxu0
      %2720 = vmatprep.mubr.f32.mxu0 0.0
      %2721 = vmatmul.mubr.f32.gmra.mrb[0].mxu0 %v785
      %v2722 = vpop.f32.mrb[0].mxu0
      %v2723 = vadd.f32 0.0, %v2722
      %v2724 = vpop.f32.mrb[0].mxu0
      %2725 = vmatprep.mubr.f32.mxu0 0.0
      %2726 = vmatmul.mubr.f32.gmra.mrb[0].mxu0 %v787
      %v2727 = vpop.f32.mrb[0].mxu0
      %v2728 = vadd.f32 0.0, %v2727
      %v2729 = vpop.f32.mrb[0].mxu0
      %2730 = vmatprep.mubr.f32.mxu0 0.0
      %2731 = vmatmul.mubr.f32.gmra.mrb[0].mxu0 %v789
      %v2732 = vpop.f32.mrb[0].mxu0
      %v2733 = vadd.f32 0.0, %v2732
      %v2734 = vpop.f32.mrb[0].mxu0
      %2735 = vmatprep.mubr.f32.mxu0 0.0
      %2736 = vmatmul.mubr.f32.gmra.mrb[0].mxu0 %v791
      %v2737 = vpop.f32.mrb[0].mxu0
      %v2738 = vadd.f32 0.0, %v2737
      %v2739 = vpop.f32.mrb[0].mxu0
      %2740 = vmatprep.mubr.f32.mxu0 0.0
      %2741 = vmatmul.mubr.f32.gmra.mrb[0].mxu0 %v793
      %v2742 = vpop.f32.mrb[0].mxu0
      %v2743 = vadd.f32 0.0, %v2742
      %v2744 = vpop.f32.mrb[0].mxu0
      %2745 = vmatprep.mubr.f32.mxu0 0.0
      %2746 = vmatmul.mubr.f32.gmra.mrb[0].mxu0 %v795
      %v2747 = vpop.f32.mrb[0].mxu0
      %v2748 = vadd.f32 0.0, %v2747
      %v2749 = vpop.f32.mrb[0].mxu0
      %2750 = vmatprep.mubr.f32.mxu0 0.0
      %2751 = vmatmul.mubr.f32.gmra.mrb[0].mxu0 %v1734
      %v2752 = vpop.f32.mrb[0].mxu0
      %v2753 = vadd.f32 0.0, %v2752
      %v2754 = vpop.f32.mrb[0].mxu0
      %2755 = vmatprep.mubr.f32.mxu0 0.0
      %2756 = vmatmul.mubr.f32.gmra.mrb[0].mxu0 %v1736
      %v2757 = vpop.f32.mrb[0].mxu0
      %v2758 = vadd.f32 0.0, %v2757
      %v2759 = vpop.f32.mrb[0].mxu0
      %2760 = vmatprep.mubr.f32.mxu0 0.0
      %2761 = vmatmul.mubr.f32.gmra.mrb[0].mxu0 %v2539
      %v2762 = vpop.f32.mrb[0].mxu0
      %v2763 = vadd.f32 0.0, %v2762
      %v2764 = vpop.f32.mrb[0].mxu0
      %2765 = vmatprep.mubr.f32.mxu0 0.0
      %2766 = vmatmul.mubr.f32.gmra.mrb[0].mxu0 %v2541
      %v2767 = vpop.f32.mrb[0].mxu0
      %v2768 = vadd.f32 0.0, %v2767
      %v2769 = vpop.f32.mrb[0].mxu0
      %2770 = vdwg.mxu0
      %v2771 = vadd.f32 %v2501, %v2613
      %v2772 = vadd.f32 %v2502, %v2618
      %v2773 = vadd.f32 %v2503, %v2623
      %v2774 = vadd.f32 %v2504, %v2628
      %v2775 = vadd.f32 %v2505, %v2633
      %v2776 = vadd.f32 %v2506, %v2638
      %v2777 = vadd.f32 %v2507, %v2643
      %v2778 = vadd.f32 %v2508, %v2648
      %v2779 = vadd.f32 %v2509, %v2653
      %v2780 = vadd.f32 %v2510, %v2658
      %v2781 = vadd.f32 %v2511, %v2663
      %v2782 = vadd.f32 %v2512, %v2668
      %v2783 = vadd.f32 %v2513, %v2673
      %v2784 = vadd.f32 %v2514, %v2678
      %v2785 = vadd.f32 %v2515, %v2683
      %v2786 = vadd.f32 %v2516, %v2688
      %v2787 = vadd.f32 %v2517, %v2693
      %v2788 = vadd.f32 %v2518, %v2698
      %v2789 = vadd.f32 %v2519, %v2703
      %v2790 = vadd.f32 %v2520, %v2708
      %v2791 = vadd.f32 %v2521, %v2713
      %v2792 = vadd.f32 %v2522, %v2718
      %v2793 = vadd.f32 %v2523, %v2723
      %v2794 = vadd.f32 %v2524, %v2728
      %v2795 = vadd.f32 %v2525, %v2733
      %v2796 = vadd.f32 %v2526, %v2738
      %v2797 = vadd.f32 %v2527, %v2743
      %v2798 = vadd.f32 %v2528, %v2748
      %v2799 = vadd.f32 %v2529, %v2753
      %v2800 = vadd.f32 %v2530, %v2758
      %v2801 = vadd.f32 %v2531, %v2763
      %v2802 = vadd.f32 %v2532, %v2768
      %v2803 = vrot.slane %v249, 2
      %v2804 = vrot.slane %v250, 2
      %v2805 = vsel %vm1057, %v2803, %v2804
      %v2806 = vrot.slane %v251, 2
      %v2807 = vsel %vm1057, %v2804, %v2806
      %v2808 = vsel %vm278, %v2805, 0
      %v2810 = vsel %vm278, %v2807, 0
      %v2813 = vsel %vm375, %v270, 0
      %2815 = vmatprep.subr.mxu0 0.0
      %2816 = vmatpush1.msra.mxu0 %v2813
      %2817 = vmatprep.subr.mxu0 0.0
      %2818 = vmatpush1.msra.mxu0 0.0
      %2819 = vmatprep.subr.mxu0 0.0
      %2820 = vmatpush1.msra.mxu0 0.0
      %2821 = vmatprep.subr.mxu0 0.0
      %2822 = vmatpush1.msra.mxu0 0.0
      %2823 = vmatprep.subr.mxu0 0.0
      %2824 = vmatpush1.msra.mxu0 0.0
      %2825 = vmatprep.subr.mxu0 0.0
      %2826 = vmatpush1.msra.mxu0 0.0
      %2827 = vmatprep.subr.mxu0 0.0
      %2828 = vmatpush1.msra.mxu0 0.0
      %2829 = vmatprep.subr.mxu0 0.0
      %2830 = vmatpush1.msra.mxu0 0.0
      %2831 = vmatprep.subr.mxu0 0.0
      %2832 = vmatpush1.msra.mxu0 0.0
      %2833 = vmatprep.subr.mxu0 0.0
      %2834 = vmatpush1.msra.mxu0 0.0
      %2835 = vmatprep.subr.mxu0 0.0
      %2836 = vmatpush1.msra.mxu0 0.0
      %2837 = vmatprep.subr.mxu0 0.0
      %2838 = vmatpush1.msra.mxu0 0.0
      %2839 = vmatprep.subr.mxu0 0.0
      %2840 = vmatpush1.msra.mxu0 0.0
      %2841 = vmatprep.subr.mxu0 0.0
      %2842 = vmatpush1.msra.mxu0 0.0
      %2843 = vmatprep.subr.mxu0 0.0
      %2844 = vmatpush1.msra.mxu0 0.0
      %2845 = vmatprep.subr.mxu0 0.0
      %2846 = vmatpush1.msra.mxu0 0.0
      %2847 = vmatprep.subr.mxu0 0.0
      %2848 = vmatpush1.msra.mxu0 0.0
      %2849 = vmatprep.subr.mxu0 0.0
      %2850 = vmatpush1.msra.mxu0 0.0
      %2851 = vmatprep.subr.mxu0 0.0
      %2852 = vmatpush1.msra.mxu0 0.0
      %2853 = vmatprep.subr.mxu0 0.0
      %2854 = vmatpush1.msra.mxu0 0.0
      %2855 = vmatprep.subr.mxu0 0.0
      %2856 = vmatpush1.msra.mxu0 0.0
      %2857 = vmatprep.subr.mxu0 0.0
      %2858 = vmatpush1.msra.mxu0 0.0
      %2859 = vmatprep.subr.mxu0 0.0
      %2860 = vmatpush1.msra.mxu0 0.0
      %2861 = vmatprep.subr.mxu0 0.0
      %2862 = vmatpush1.msra.mxu0 0.0
      %2863 = vmatprep.subr.mxu0 0.0
      %2864 = vmatpush1.msra.mxu0 0.0
      %2865 = vmatprep.subr.mxu0 0.0
      %2866 = vmatpush1.msra.mxu0 0.0
      %2867 = vmatprep.subr.mxu0 0.0
      %2868 = vmatpush1.msra.mxu0 0.0
      %2869 = vmatprep.subr.mxu0 0.0
      %2870 = vmatpush1.msra.mxu0 0.0
      %2871 = vmatprep.subr.mxu0 0.0
      %2872 = vmatpush1.msra.mxu0 0.0
      %2873 = vmatprep.subr.mxu0 0.0
      %2874 = vmatpush1.msra.mxu0 0.0
      %2875 = vmatprep.subr.mxu0 0.0
      %2876 = vmatpush1.msra.mxu0 0.0
      %2877 = vmatprep.subr.mxu0 0.0
      %2878 = vmatpush1.msra.mxu0 0.0
      %2879 = vmatprep.mubr.f32.mxu0 0.0
      %2880 = vmatmul.mubr.f32.gmra.mrb[0].mxu0 %v1146
      %v2881 = vpop.f32.mrb[0].mxu0
      %v2882 = vadd.f32 0.0, %v2881
      %v2883 = vpop.f32.mrb[0].mxu0
      %2884 = vmatprep.mubr.f32.mxu0 0.0
      %2885 = vmatmul.mubr.f32.gmra.mrb[0].mxu0 %v1148
      %v2886 = vpop.f32.mrb[0].mxu0
      %v2887 = vadd.f32 0.0, %v2886
      %v2888 = vpop.f32.mrb[0].mxu0
      %2889 = vmatprep.mubr.f32.mxu0 0.0
      %2890 = vmatmul.mubr.f32.gmra.mrb[0].mxu0 %v1150
      %v2891 = vpop.f32.mrb[0].mxu0
      %v2892 = vadd.f32 0.0, %v2891
      %v2893 = vpop.f32.mrb[0].mxu0
      %2894 = vmatprep.mubr.f32.mxu0 0.0
      %2895 = vmatmul.mubr.f32.gmra.mrb[0].mxu0 %v1152
      %v2896 = vpop.f32.mrb[0].mxu0
      %v2897 = vadd.f32 0.0, %v2896
      %v2898 = vpop.f32.mrb[0].mxu0
      %2899 = vmatprep.mubr.f32.mxu0 0.0
      %2900 = vmatmul.mubr.f32.gmra.mrb[0].mxu0 %v1154
      %v2901 = vpop.f32.mrb[0].mxu0
      %v2902 = vadd.f32 0.0, %v2901
      %v2903 = vpop.f32.mrb[0].mxu0
      %2904 = vmatprep.mubr.f32.mxu0 0.0
      %2905 = vmatmul.mubr.f32.gmra.mrb[0].mxu0 %v1156
      %v2906 = vpop.f32.mrb[0].mxu0
      %v2907 = vadd.f32 0.0, %v2906
      %v2908 = vpop.f32.mrb[0].mxu0
      %2909 = vmatprep.mubr.f32.mxu0 0.0
      %2910 = vmatmul.mubr.f32.gmra.mrb[0].mxu0 %v1158
      %v2911 = vpop.f32.mrb[0].mxu0
      %v2912 = vadd.f32 0.0, %v2911
      %v2913 = vpop.f32.mrb[0].mxu0
      %2914 = vmatprep.mubr.f32.mxu0 0.0
      %2915 = vmatmul.mubr.f32.gmra.mrb[0].mxu0 %v1160
      %v2916 = vpop.f32.mrb[0].mxu0
      %v2917 = vadd.f32 0.0, %v2916
      %v2918 = vpop.f32.mrb[0].mxu0
      %2919 = vmatprep.mubr.f32.mxu0 0.0
      %2920 = vmatmul.mubr.f32.gmra.mrb[0].mxu0 %v1162
      %v2921 = vpop.f32.mrb[0].mxu0
      %v2922 = vadd.f32 0.0, %v2921
      %v2923 = vpop.f32.mrb[0].mxu0
      %2924 = vmatprep.mubr.f32.mxu0 0.0
      %2925 = vmatmul.mubr.f32.gmra.mrb[0].mxu0 %v1164
      %v2926 = vpop.f32.mrb[0].mxu0
      %v2927 = vadd.f32 0.0, %v2926
      %v2928 = vpop.f32.mrb[0].mxu0
      %2929 = vmatprep.mubr.f32.mxu0 0.0
      %2930 = vmatmul.mubr.f32.gmra.mrb[0].mxu0 %v1166
      %v2931 = vpop.f32.mrb[0].mxu0
      %v2932 = vadd.f32 0.0, %v2931
      %v2933 = vpop.f32.mrb[0].mxu0
      %2934 = vmatprep.mubr.f32.mxu0 0.0
      %2935 = vmatmul.mubr.f32.gmra.mrb[0].mxu0 %v1168
      %v2936 = vpop.f32.mrb[0].mxu0
      %v2937 = vadd.f32 0.0, %v2936
      %v2938 = vpop.f32.mrb[0].mxu0
      %2939 = vmatprep.mubr.f32.mxu0 0.0
      %2940 = vmatmul.mubr.f32.gmra.mrb[0].mxu0 %v1170
      %v2941 = vpop.f32.mrb[0].mxu0
      %v2942 = vadd.f32 0.0, %v2941
      %v2943 = vpop.f32.mrb[0].mxu0
      %2944 = vmatprep.mubr.f32.mxu0 0.0
      %2945 = vmatmul.mubr.f32.gmra.mrb[0].mxu0 %v1172
      %v2946 = vpop.f32.mrb[0].mxu0
      %v2947 = vadd.f32 0.0, %v2946
      %v2948 = vpop.f32.mrb[0].mxu0
      %2949 = vmatprep.mubr.f32.mxu0 0.0
      %2950 = vmatmul.mubr.f32.gmra.mrb[0].mxu0 %v1174
      %v2951 = vpop.f32.mrb[0].mxu0
      %v2952 = vadd.f32 0.0, %v2951
      %v2953 = vpop.f32.mrb[0].mxu0
      %2954 = vmatprep.mubr.f32.mxu0 0.0
      %2955 = vmatmul.mubr.f32.gmra.mrb[0].mxu0 %v1176
      %v2956 = vpop.f32.mrb[0].mxu0
      %v2957 = vadd.f32 0.0, %v2956
      %v2958 = vpop.f32.mrb[0].mxu0
      %2959 = vmatprep.mubr.f32.mxu0 0.0
      %2960 = vmatmul.mubr.f32.gmra.mrb[0].mxu0 %v1178
      %v2961 = vpop.f32.mrb[0].mxu0
      %v2962 = vadd.f32 0.0, %v2961
      %v2963 = vpop.f32.mrb[0].mxu0
      %2964 = vmatprep.mubr.f32.mxu0 0.0
      %2965 = vmatmul.mubr.f32.gmra.mrb[0].mxu0 %v1180
      %v2966 = vpop.f32.mrb[0].mxu0
      %v2967 = vadd.f32 0.0, %v2966
      %v2968 = vpop.f32.mrb[0].mxu0
      %2969 = vmatprep.mubr.f32.mxu0 0.0
      %2970 = vmatmul.mubr.f32.gmra.mrb[0].mxu0 %v1182
      %v2971 = vpop.f32.mrb[0].mxu0
      %v2972 = vadd.f32 0.0, %v2971
      %v2973 = vpop.f32.mrb[0].mxu0
      %2974 = vmatprep.mubr.f32.mxu0 0.0
      %2975 = vmatmul.mubr.f32.gmra.mrb[0].mxu0 %v1184
      %v2976 = vpop.f32.mrb[0].mxu0
      %v2977 = vadd.f32 0.0, %v2976
      %v2978 = vpop.f32.mrb[0].mxu0
      %2979 = vmatprep.mubr.f32.mxu0 0.0
      %2980 = vmatmul.mubr.f32.gmra.mrb[0].mxu0 %v1186
      %v2981 = vpop.f32.mrb[0].mxu0
      %v2982 = vadd.f32 0.0, %v2981
      %v2983 = vpop.f32.mrb[0].mxu0
      %2984 = vmatprep.mubr.f32.mxu0 0.0
      %2985 = vmatmul.mubr.f32.gmra.mrb[0].mxu0 %v1188
      %v2986 = vpop.f32.mrb[0].mxu0
      %v2987 = vadd.f32 0.0, %v2986
      %v2988 = vpop.f32.mrb[0].mxu0
      %2989 = vmatprep.mubr.f32.mxu0 0.0
      %2990 = vmatmul.mubr.f32.gmra.mrb[0].mxu0 %v1190
      %v2991 = vpop.f32.mrb[0].mxu0
      %v2992 = vadd.f32 0.0, %v2991
      %v2993 = vpop.f32.mrb[0].mxu0
      %2994 = vmatprep.mubr.f32.mxu0 0.0
      %2995 = vmatmul.mubr.f32.gmra.mrb[0].mxu0 %v1192
      %v2996 = vpop.f32.mrb[0].mxu0
      %v2997 = vadd.f32 0.0, %v2996
      %v2998 = vpop.f32.mrb[0].mxu0
      %2999 = vmatprep.mubr.f32.mxu0 0.0
      %3000 = vmatmul.mubr.f32.gmra.mrb[0].mxu0 %v1194
      %v3001 = vpop.f32.mrb[0].mxu0
      %v3002 = vadd.f32 0.0, %v3001
      %v3003 = vpop.f32.mrb[0].mxu0
      %3004 = vmatprep.mubr.f32.mxu0 0.0
      %3005 = vmatmul.mubr.f32.gmra.mrb[0].mxu0 %v1196
      %v3006 = vpop.f32.mrb[0].mxu0
      %v3007 = vadd.f32 0.0, %v3006
      %v3008 = vpop.f32.mrb[0].mxu0
      %3009 = vmatprep.mubr.f32.mxu0 0.0
      %3010 = vmatmul.mubr.f32.gmra.mrb[0].mxu0 %v1198
      %v3011 = vpop.f32.mrb[0].mxu0
      %v3012 = vadd.f32 0.0, %v3011
      %v3013 = vpop.f32.mrb[0].mxu0
      %3014 = vmatprep.mubr.f32.mxu0 0.0
      %3015 = vmatmul.mubr.f32.gmra.mrb[0].mxu0 %v1200
      %v3016 = vpop.f32.mrb[0].mxu0
      %v3017 = vadd.f32 0.0, %v3016
      %v3018 = vpop.f32.mrb[0].mxu0
      %3019 = vmatprep.mubr.f32.mxu0 0.0
      %3020 = vmatmul.mubr.f32.gmra.mrb[0].mxu0 %v2003
      %v3021 = vpop.f32.mrb[0].mxu0
      %v3022 = vadd.f32 0.0, %v3021
      %v3023 = vpop.f32.mrb[0].mxu0
      %3024 = vmatprep.mubr.f32.mxu0 0.0
      %3025 = vmatmul.mubr.f32.gmra.mrb[0].mxu0 %v2005
      %v3026 = vpop.f32.mrb[0].mxu0
      %v3027 = vadd.f32 0.0, %v3026
      %v3028 = vpop.f32.mrb[0].mxu0
      %3029 = vmatprep.mubr.f32.mxu0 0.0
      %3030 = vmatmul.mubr.f32.gmra.mrb[0].mxu0 %v2808
      %v3031 = vpop.f32.mrb[0].mxu0
      %v3032 = vadd.f32 0.0, %v3031
      %v3033 = vpop.f32.mrb[0].mxu0
      %3034 = vmatprep.mubr.f32.mxu0 0.0
      %3035 = vmatmul.mubr.f32.gmra.mrb[0].mxu0 %v2810
      %v3036 = vpop.f32.mrb[0].mxu0
      %v3037 = vadd.f32 0.0, %v3036
      %v3038 = vpop.f32.mrb[0].mxu0
      %3039 = vdwg.mxu0
      %v3040 = vadd.f32 %v2771, %v2882
      %v3041 = vadd.f32 %v2772, %v2887
      %v3042 = vadd.f32 %v2773, %v2892
      %v3043 = vadd.f32 %v2774, %v2897
      %v3044 = vadd.f32 %v2775, %v2902
      %v3045 = vadd.f32 %v2776, %v2907
      %v3046 = vadd.f32 %v2777, %v2912
      %v3047 = vadd.f32 %v2778, %v2917
      %v3048 = vadd.f32 %v2779, %v2922
      %v3049 = vadd.f32 %v2780, %v2927
      %v3050 = vadd.f32 %v2781, %v2932
      %v3051 = vadd.f32 %v2782, %v2937
      %v3052 = vadd.f32 %v2783, %v2942
      %v3053 = vadd.f32 %v2784, %v2947
      %v3054 = vadd.f32 %v2785, %v2952
      %v3055 = vadd.f32 %v2786, %v2957
      %v3056 = vadd.f32 %v2787, %v2962
      %v3057 = vadd.f32 %v2788, %v2967
      %v3058 = vadd.f32 %v2789, %v2972
      %v3059 = vadd.f32 %v2790, %v2977
      %v3060 = vadd.f32 %v2791, %v2982
      %v3061 = vadd.f32 %v2792, %v2987
      %v3062 = vadd.f32 %v2793, %v2992
      %v3063 = vadd.f32 %v2794, %v2997
      %v3064 = vadd.f32 %v2795, %v3002
      %v3065 = vadd.f32 %v2796, %v3007
      %v3066 = vadd.f32 %v2797, %v3012
      %v3067 = vadd.f32 %v2798, %v3017
      %v3068 = vadd.f32 %v2799, %v3022
      %v3069 = vadd.f32 %v2800, %v3027
      %v3070 = vadd.f32 %v2801, %v3032
      %v3071 = vadd.f32 %v2802, %v3037
      %3072 = vst [vmem:[%s197] sm:$0xff] %v3040
      %3073 = vst [vmem:[%s197 + $0x8] sm:$0xff] %v3041
      %3074 = vst [vmem:[%s197 + $0x10] sm:$0xff] %v3042
      %3075 = vst [vmem:[%s197 + $0x18] sm:$0xff] %v3043
      %3076 = vst [vmem:[%s197 + $0x20] sm:$0xff] %v3044
      %3077 = vst [vmem:[%s197 + $0x28] sm:$0xff] %v3045
      %3078 = vst [vmem:[%s197 + $0x30] sm:$0xff] %v3046
      %3079 = vst [vmem:[%s197 + $0x38] sm:$0xff] %v3047
      %3080 = vst [vmem:[%s197 + $0x40] sm:$0xff] %v3048
      %3081 = vst [vmem:[%s197 + $0x48] sm:$0xff] %v3049
      %3082 = vst [vmem:[%s197 + $0x50] sm:$0xff] %v3050
      %3083 = vst [vmem:[%s197 + $0x58] sm:$0xff] %v3051
      %3084 = vst [vmem:[%s197 + $0x60] sm:$0xff] %v3052
      %3085 = vst [vmem:[%s197 + $0x68] sm:$0xff] %v3053
      %3086 = vst [vmem:[%s197 + $0x70] sm:$0xff] %v3054
      %3087 = vst [vmem:[%s197 + $0x78] sm:$0xff] %v3055
      %3088 = vst [vmem:[%s197 + $0x80] sm:$0xff] %v3056
      %3089 = vst [vmem:[%s197 + $0x88] sm:$0xff] %v3057
      %3090 = vst [vmem:[%s197 + $0x90] sm:$0xff] %v3058
      %3091 = vst [vmem:[%s197 + $0x98] sm:$0xff] %v3059
      %3092 = vst [vmem:[%s197 + $0xa0] sm:$0xff] %v3060
      %3093 = vst [vmem:[%s197 + $0xa8] sm:$0xff] %v3061
      %3094 = vst [vmem:[%s197 + $0xb0] sm:$0xff] %v3062
      %3095 = vst [vmem:[%s197 + $0xb8] sm:$0xff] %v3063
      %3096 = vst [vmem:[%s197 + $0xc0] sm:$0xff] %v3064
      %3097 = vst [vmem:[%s197 + $0xc8] sm:$0xff] %v3065
      %3098 = vst [vmem:[%s197 + $0xd0] sm:$0xff] %v3066
      %3099 = vst [vmem:[%s197 + $0xd8] sm:$0xff] %v3067
      %3100 = vst [vmem:[%s197 + $0xe0] sm:$0xff] %v3068
      %3101 = vst [vmem:[%s197 + $0xe8] sm:$0xff] %v3069
      %3102 = vst [vmem:[%s197 + $0xf0] sm:$0xff] %v3070
      %3103 = vst [vmem:[%s197 + $0xf8] sm:$0xff] %v3071
      %p3104 = scmp.lt.s32.totalorder %s15, 1
      %s3105 = scalar_select %p3104, %s15, 1
      %s3106 = smul.addr %s3105, 32
      %s3107 = smul.addr %s3106, 8
      %s3108 = scalar_lea.vmem %s4, %s3107
      // Predicated region
      $region37: #{masked_conv2d.1} parent=35 // pred_check
        %p3109 = pneg %p122
      $region38: #{masked_conv2d.1} parent=35 // pred_check_branch
        %3111 = sbr.rel (%p3109) target = $region40
      $region39: #{masked_conv2d.1} parent=35 // pred_region
        _
      $region40: #{masked_conv2d.1} parent=35 // pred_fallthru
        _
    $region36: #{masked_conv2d.1} parent=5 // pred_fallthru
      _
    %p3112 = scmp.le.s32.totalorder 2, %s10
    // Predicated region
    $region41: #{masked_conv2d.1} parent=5 // pred_check
      %p3113 = pneg %p3112
    $region42: #{masked_conv2d.1} parent=5 // pred_check_branch
      %3115 = sbr.rel (%p3113) target = $region44
    $region43: #{masked_conv2d.1} parent=5 // pred_region
      %s3116 = ssub.s32 %s10, 2
      // Predicated region
      $region45: #{masked_conv2d.1} parent=43 // pred_check
        %p3117 = pneg %p128
      $region46: #{masked_conv2d.1} parent=43 // pred_check_branch
        %3119 = sbr.rel (%p3117) target = $region48
      $region47: #{masked_conv2d.1} parent=43 // pred_region
        %p3120 = scmp.lt.s32.totalorder %s16, 1
        %s3121 = scalar_select %p3120, %s16, 1
        %s3122 = smul.addr %s3121, 32
        %s3123 = smul.addr %s3122, 8
        %s3124 = scalar_lea.vmem %s4, %s3123
      $region48: #{masked_conv2d.1} parent=43 // pred_fallthru
        _
    $region44: #{masked_conv2d.1} parent=5 // pred_fallthru
      _
  $region6: #{masked_conv2d.1} parent=0 // loop_footer
    %s14 = sadd.s32 1, %s10
  $region7: #{masked_conv2d.1} parent=0 // loop_footer_branch
    %9 = sbr.rel target = $region3
  $region8: #{masked_conv2d.1} parent=0 // loop_exit
    _

</llo_original>
